<compile_context>
chip_gen: v7x
topology: tpu7x:2x2x1
jax: 0.10.0
libtpu: 0.0.40
codegen_flags: <defaults>
</compile_context>

<pallas_src>
import jax
import jax.numpy as jnp
from jax.experimental import pallas as pl
from jax.experimental.pallas import tpu as pltpu

Z_DIM = 32
BN_EPS = 1e-5
LRELU_SLOPE = 0.1

# (cin, cout, kernel, stride) for conv1..conv6 of the reference module.
LAYER_CFG = [
    (3, 32, 5, 1),
    (32, 64, 4, 2),
    (64, 128, 4, 1),
    (128, 256, 4, 2),
    (256, 512, 4, 1),
    (512, 512, 1, 1),
]


def _vmem_spec():
    return pl.BlockSpec(memory_space=pltpu.MemorySpace.VMEM)


def _round_up(n, m):
    return (n + m - 1) // m * m


# ---------------------------------------------------------------------------
# In-kernel helpers
# ---------------------------------------------------------------------------
def _bn_lrelu(y, gamma, beta):
    """Training-mode BatchNorm (single-pass batch stats over rows) + LeakyReLU, f32."""
    m = y.shape[0]
    inv_m = 1.0 / m
    s = jnp.sum(y, axis=0, keepdims=True)
    ss = jnp.sum(y * y, axis=0, keepdims=True)
    mean = s * inv_m
    var = jnp.maximum(ss * inv_m - mean * mean, 0.0)   # biased variance
    y_bn = (y - mean) * jax.lax.rsqrt(var + BN_EPS) * gamma + beta
    return jnp.where(y_bn > 0, y_bn, LRELU_SLOPE * y_bn)


# ---------------------------------------------------------------------------
# Pallas kernels
# ---------------------------------------------------------------------------
def _conv_bn_lrelu_kernel(p_ref, w_ref, g_ref, b_ref, o_ref):
    # Conv as a single bf16 matmul on the MXU, f32 accumulation.
    y = jnp.dot(p_ref[...], w_ref[...], preferred_element_type=jnp.float32)
    o_ref[...] = _bn_lrelu(y, g_ref[...], b_ref[...])


def _tail_kernel(p5_ref, w5_ref, g5_ref, b5_ref,
                 w6_ref, g6_ref, b6_ref,
                 wmu_ref, bmu_ref, wls_ref, bls_ref,
                 eps_ref, o_ref):
    # conv5: (B, 4096) x (4096, 512)
    x5 = _bn_lrelu(
        jnp.dot(p5_ref[...], w5_ref[...], preferred_element_type=jnp.float32),
        g5_ref[...], b5_ref[...])
    # conv6: (B, 512) x (512, 512)
    x6 = _bn_lrelu(
        jnp.dot(x5.astype(jnp.bfloat16), w6_ref[...],
                preferred_element_type=jnp.float32),
        g6_ref[...], b6_ref[...])
    # 1x1 head conv with bias, split into mu / log_sigma halves, fused with the
    # reparameterization  out = mu + eps * exp(log_sigma).
    x6b = x6.astype(jnp.bfloat16)
    mu = jnp.dot(x6b, wmu_ref[...], preferred_element_type=jnp.float32) + bmu_ref[...]
    log_sigma = jnp.dot(x6b, wls_ref[...],
                        preferred_element_type=jnp.float32) + bls_ref[...]
    o_ref[...] = mu + eps_ref[...] * jnp.exp(log_sigma)


# ---------------------------------------------------------------------------
# Wrappers (glue: im2col extraction, padding, parameter plumbing)
# ---------------------------------------------------------------------------
def _im2col(x_nhwc, ksize, stride):
    B, H, W, Cin = x_nhwc.shape
    KH = KW = ksize
    Ho = (H - KH) // stride + 1
    Wo = (W - KW) // stride + 1
    # Feature order (kh, kw, cin) matches the flattened weight layout.
    cols = []
    for kh in range(KH):
        for kw in range(KW):
            cols.append(
                x_nhwc[:, kh:kh + (Ho - 1) * stride + 1:stride,
                       kw:kw + (Wo - 1) * stride + 1:stride, :])
    patches = jnp.concatenate(cols, axis=-1).reshape(B * Ho * Wo, KH * KW * Cin)
    return patches, Ho, Wo


def conv_bn_lrelu(x_nhwc, w_flat, gamma, beta, ksize, stride):
    B = x_nhwc.shape[0]
    patches, Ho, Wo = _im2col(x_nhwc, ksize, stride)
    patches = patches.astype(jnp.bfloat16)
    w = w_flat.astype(jnp.bfloat16)
    K, Cout = w.shape
    Kp = _round_up(K, 128)
    if Kp != K:  # only conv1 (K = 75): pad contraction dim to a lane-dense 128.
        patches = jnp.pad(patches, ((0, 0), (0, Kp - K)))
        w = jnp.pad(w, ((0, Kp - K), (0, 0)))
    out = pl.pallas_call(
        _conv_bn_lrelu_kernel,
        out_shape=jax.ShapeDtypeStruct((patches.shape[0], Cout), jnp.float32),
        in_specs=[_vmem_spec()] * 4,
        out_specs=_vmem_spec(),
    )(patches, w,
      gamma.reshape(1, Cout).astype(jnp.float32),
      beta.reshape(1, Cout).astype(jnp.float32))
    return out.reshape(B, Ho, Wo, Cout)


def tail_fused(x_nhwc, p5, p6, head_w, head_b, eps):
    # x_nhwc is (B, 4, 4, 256); conv5 (k=4, s=1) covers the full spatial extent, so
    # its im2col is exactly the row-major (h, w, c) == (kh, kw, cin) flatten.
    B, H, W, Cin = x_nhwc.shape
    p5_patches = x_nhwc.reshape(B, H * W * Cin).astype(jnp.bfloat16)
    w5 = p5["w"].astype(jnp.bfloat16)
    w6 = p6["w"].astype(jnp.bfloat16)
    w_mu = head_w[:, :Z_DIM].astype(jnp.bfloat16)
    w_ls = head_w[:, Z_DIM:].astype(jnp.bfloat16)
    b_mu = head_b[:Z_DIM].reshape(1, Z_DIM).astype(jnp.float32)
    b_ls = head_b[Z_DIM:].reshape(1, Z_DIM).astype(jnp.float32)
    z = pl.pallas_call(
        _tail_kernel,
        out_shape=jax.ShapeDtypeStruct((B, Z_DIM), jnp.float32),
        in_specs=[_vmem_spec()] * 12,
        out_specs=_vmem_spec(),
    )(p5_patches, w5,
      p5["gamma"].reshape(1, -1).astype(jnp.float32),
      p5["beta"].reshape(1, -1).astype(jnp.float32),
      w6,
      p6["gamma"].reshape(1, -1).astype(jnp.float32),
      p6["beta"].reshape(1, -1).astype(jnp.float32),
      w_mu, b_mu, w_ls, b_ls, eps.astype(jnp.float32))
    return z.reshape(B, Z_DIM, 1, 1)


def encoder_forward(x_nchw, conv_params, head_w, head_b, eps):
    x = jnp.transpose(x_nchw, (0, 2, 3, 1)).astype(jnp.float32)  # NCHW -> NHWC
    # conv1..conv4: one fused (im2col-matmul + BN + LeakyReLU) kernel per layer.
    for p in conv_params[:4]:
        x = conv_bn_lrelu(x, p["w"], p["gamma"], p["beta"], p["k"], p["s"])
    # conv5 + conv6 + 1x1 head + reparameterization fused into a single kernel
    # (all B-row matrices at this point -> launch-latency bound).
    # TODO(synk): the reference forward feeds reparameterize with self.conv6(x)
    # (512 channels), which makes the mu / log_sigma broadcast impossible for any
    # input; we use the clearly-intended 1x1 head conv (512 -> 2*z_dim, bias=True,
    # the layer named `bn7`) instead, and torch.randn_like is replaced by an
    # explicit eps argument drawn from a JAX PRNG.
    return tail_fused(x, conv_params[4], conv_params[5], head_w, head_b, eps)


# ---------------------------------------------------------------------------
# Deterministic parameter initialization (synthetic, no checkpoint load)
# Weights are stored directly in (KH*KW*Cin, Cout) layout; loading real PyTorch
# weights (Cout, Cin, KH, KW) would require a transpose to (KH, KW, Cin, Cout)
# before flattening.
# ---------------------------------------------------------------------------
def init_params(key):
    conv_params = []
    for (cin, cout, k, s) in LAYER_CFG:
        key, kw_, kg, kb = jax.random.split(key, 4)
        fan_in = cin * k * k
        w = jax.random.normal(kw_, (k * k * cin, cout), jnp.float32) / jnp.sqrt(
            jnp.float32(fan_in))
        gamma = 1.0 + 0.1 * jax.random.normal(kg, (cout,), jnp.float32)
        beta = 0.1 * jax.random.normal(kb, (cout,), jnp.float32)
        conv_params.append(dict(w=w, gamma=gamma, beta=beta, k=k, s=s))
    key, kw_, kb = jax.random.split(key, 3)
    head_w = jax.random.normal(kw_, (512, 2 * Z_DIM), jnp.float32) / jnp.sqrt(512.0)
    head_b = 0.1 * jax.random.normal(kb, (2 * Z_DIM,), jnp.float32)
    return conv_params, head_w, head_b


if __name__ == "__main__":
    key = jax.random.PRNGKey(0)
    key, kx, keps, kp = jax.random.split(key, 4)

    # Input spatial size 32x32 so the conv stack reduces to 1x1 (as the module
    # architecture implies); small batch of 2.
    x = jax.random.normal(kx, (2, 3, 32, 32), jnp.float32)   # NCHW, PyTorch-style
    eps = jax.random.normal(keps, (2, Z_DIM), jnp.float32)   # reparameterization noise

    conv_params, head_w, head_b = init_params(kp)

    out = encoder_forward(x, conv_params, head_w, head_b, eps)
    out = jax.block_until_ready(out)
    assert out.shape == (2, Z_DIM, 1, 1), out.shape
    assert jnp.all(jnp.isfinite(out)), "non-finite output"
    print("KERNEL_OK")
</pallas_src>

<mosaic_0001>
module attributes {stable_mosaic.version = 11 : i64} {
  func.func @_conv_bn_lrelu_kernel(%arg0: memref<1568x128xbf16, #tpu.memory_space<vmem>>, %arg1: memref<128x32xbf16, #tpu.memory_space<vmem>>, %arg2: memref<1x32xf32, #tpu.memory_space<vmem>>, %arg3: memref<1x32xf32, #tpu.memory_space<vmem>>, %arg4: memref<1568x32xf32, #tpu.memory_space<vmem>>) attributes {dimension_semantics = [], scalar_prefetch = 0 : i64, scratch_operands = 0 : i64, tpu.core_type = #tpu.core_type<tc>} {
    %c0 = arith.constant 0 : index
    %c0_0 = arith.constant 0 : index
    %0 = vector.load %arg0[%c0, %c0_0] : memref<1568x128xbf16, #tpu.memory_space<vmem>>, vector<1568x128xbf16>
    %c0_1 = arith.constant 0 : index
    %c0_2 = arith.constant 0 : index
    %1 = vector.load %arg1[%c0_1, %c0_2] : memref<128x32xbf16, #tpu.memory_space<vmem>>, vector<128x32xbf16>
    %cst = arith.constant dense<0.000000e+00> : vector<1568x32xf32>
    %2 = tpu.matmul %0, %1, %cst {dimension_numbers = #tpu.dot_dimension_numbers<[1], [0], [0], [1], [0, 0, 1, 1], [], []>} : vector<1568x128xbf16>, vector<128x32xbf16>, vector<1568x32xf32> -> vector<1568x32xf32>
    %c0_3 = arith.constant 0 : index
    %c0_4 = arith.constant 0 : index
    %3 = vector.load %arg2[%c0_3, %c0_4] : memref<1x32xf32, #tpu.memory_space<vmem>>, vector<1x32xf32>
    %c0_5 = arith.constant 0 : index
    %c0_6 = arith.constant 0 : index
    %4 = vector.load %arg3[%c0_5, %c0_6] : memref<1x32xf32, #tpu.memory_space<vmem>>, vector<1x32xf32>
    %cst_7 = arith.constant dense<0.000000e+00> : vector<32xf32>
    %5 = vector.multi_reduction <add>, %2, %cst_7 [0] : vector<1568x32xf32> to vector<32xf32>
    %6 = vector.shape_cast %5 : vector<32xf32> to vector<1x32xf32>
    %7 = arith.mulf %2, %2 : vector<1568x32xf32>
    %cst_8 = arith.constant dense<0.000000e+00> : vector<32xf32>
    %8 = vector.multi_reduction <add>, %7, %cst_8 [0] : vector<1568x32xf32> to vector<32xf32>
    %9 = vector.shape_cast %8 : vector<32xf32> to vector<1x32xf32>
    %cst_9 = arith.constant 6.37755089E-4 : f32
    %10 = vector.broadcast %cst_9 : f32 to vector<1x32xf32>
    %11 = arith.mulf %6, %10 : vector<1x32xf32>
    %cst_10 = arith.constant 6.37755089E-4 : f32
    %12 = vector.broadcast %cst_10 : f32 to vector<1x32xf32>
    %13 = arith.mulf %9, %12 : vector<1x32xf32>
    %14 = arith.mulf %11, %11 : vector<1x32xf32>
    %15 = arith.subf %13, %14 : vector<1x32xf32>
    %cst_11 = arith.constant 0.000000e+00 : f32
    %16 = vector.broadcast %cst_11 : f32 to vector<1x32xf32>
    %17 = arith.maximumf %15, %16 : vector<1x32xf32>
    %18 = vector.broadcast %11 : vector<1x32xf32> to vector<1568x32xf32>
    %19 = arith.subf %2, %18 : vector<1568x32xf32>
    %cst_12 = arith.constant 9.99999974E-6 : f32
    %20 = vector.broadcast %cst_12 : f32 to vector<1x32xf32>
    %21 = arith.addf %17, %20 : vector<1x32xf32>
    %22 = math.rsqrt %21 : vector<1x32xf32>
    %23 = vector.broadcast %22 : vector<1x32xf32> to vector<1568x32xf32>
    %24 = arith.mulf %19, %23 : vector<1568x32xf32>
    %25 = vector.broadcast %3 : vector<1x32xf32> to vector<1568x32xf32>
    %26 = arith.mulf %24, %25 : vector<1568x32xf32>
    %27 = vector.broadcast %4 : vector<1x32xf32> to vector<1568x32xf32>
    %28 = arith.addf %26, %27 : vector<1568x32xf32>
    %cst_13 = arith.constant 0.000000e+00 : f32
    %29 = vector.broadcast %cst_13 : f32 to vector<1568x32xf32>
    %30 = arith.cmpf ogt, %28, %29 : vector<1568x32xf32>
    %cst_14 = arith.constant 1.000000e-01 : f32
    %31 = vector.broadcast %cst_14 : f32 to vector<1568x32xf32>
    %32 = arith.mulf %31, %28 : vector<1568x32xf32>
    %33 = arith.select %30, %28, %32 : vector<1568x32xi1>, vector<1568x32xf32>
    %c0_15 = arith.constant 0 : index
    %c0_16 = arith.constant 0 : index
    %34 = vector.load %arg4[%c0_15, %c0_16] : memref<1568x32xf32, #tpu.memory_space<vmem>>, vector<1568x32xf32>
    tpu.vector_store %arg4[%c0_15, %c0_16], %33 {strides = array<i32>} : memref<1568x32xf32, #tpu.memory_space<vmem>>, vector<1568x32xf32>,
    return
  }
}

</mosaic_0001>

<llo_original>
// kernel: tpu_custom_call.1
$region0: #{tpu_custom_call.1}
  #allocation0 [shape = 'u32[]', space=smem, size = 0x4, offset = 0x4, fixed_abs, tag = 'smem constant byte address 0x4 - core index']
  #allocation1 [shape = 'u32[144,128]{1,0:T(1,128)}', space=vmem, size = 0x12000, scoped, tag = 'internal scratch']
  %s0 = inlined_call_operand.hbm [shape: bf16[1568,128], index: 0, kind: input, shape index: {}]
  %s1 = inlined_call_operand.vmem [shape: bf16[128,32], index: 1, kind: input, shape index: {}]
  %s2 = inlined_call_operand.vmem [shape: f32[1,32], index: 2, kind: input, shape index: {}]
  %s3 = inlined_call_operand.vmem [shape: f32[1,32], index: 3, kind: input, shape index: {}]
  %s4 = inlined_call_operand.vmem [shape: f32[1568,32], index: 4, kind: output, shape index: {}]
  %s5 = sld [smem:[#allocation0]]
  $region30: #{tpu_custom_call.1} parent=0
    _
  %s7 = ssub.s32 1, %s5
  %s8 = scalar_select 0, %s7, %s5
  $region1: #{tpu_custom_call.1} parent=0
    #allocation2 [shape = 'u8[401408]{0}', space=vmem, size = 0x62000, scoped, tag = 'input window, operand 0, single buffered']
    #allocation3 [shape = 's32[1]{0}', space=sflag, size = 0x4, scoped, tag = 'scoped memory for tpu_custom_call.1']
    %9 = vsyncpa [#allocation3], 0
    // Predicated region
    $region2: #{tpu_custom_call.1} parent=1 // pred_check
      _
    $region3: #{tpu_custom_call.1} parent=1 // pred_check_branch
      %11 = sbr.rel (0) target = $region5
    $region4: #{tpu_custom_call.1} parent=1 // pred_region
      %s13 = ssub.s32 12544, 12544
      %14 = vsyncadd [#allocation3], %s13
      %s15 = sshll.u32 [#allocation2], 4
      %s16 = int_to_ptr.vmem [resolvable:$true] %s15
      %21 = dma.hbm_to_vmem [thread:$0]  %s0, 12544, %s16, [#allocation3], 64, 64, 4
    $region5: #{tpu_custom_call.1} parent=1 // pred_fallthru
      _
    // Predicated region
    $region6: #{tpu_custom_call.1} parent=1 // pred_check
      _
    $region7: #{tpu_custom_call.1} parent=1 // pred_check_branch
      %23 = sbr.rel (0) target = $region9
    $region8: #{tpu_custom_call.1} parent=1 // pred_region
      _
    $region9: #{tpu_custom_call.1} parent=1 // pred_fallthru
      _
    // Predicated region
    $region10: #{tpu_custom_call.1} parent=1 // pred_check
      _
    $region11: #{tpu_custom_call.1} parent=1 // pred_check_branch
      %25 = sbr.rel (0) target = $region13
    $region12: #{tpu_custom_call.1} parent=1 // pred_region
      _
    $region13: #{tpu_custom_call.1} parent=1 // pred_fallthru
      _
    // Predicated region
    $region14: #{tpu_custom_call.1} parent=1 // pred_check
      _
    $region15: #{tpu_custom_call.1} parent=1 // pred_check_branch
      %27 = sbr.rel (0) target = $region17
    $region16: #{tpu_custom_call.1} parent=1 // pred_region
      _
    $region17: #{tpu_custom_call.1} parent=1 // pred_fallthru
      _
    // Predicated region
    $region18: #{tpu_custom_call.1} parent=1 // pred_check
      _
    $region19: #{tpu_custom_call.1} parent=1 // pred_check_branch
      %29 = sbr.rel (0) target = $region21
    $region20: #{tpu_custom_call.1} parent=1 // pred_region
      %30 = dma.done [#allocation3], 12544
    $region21: #{tpu_custom_call.1} parent=1 // pred_fallthru
      _
    %v32 = vld [vmem:[#allocation2] sm:$0xf]
    %v33 = vld [vmem:[#allocation2 + $0x4] sm:$0xf]
    %v34 = vld [vmem:[#allocation2 + $0x8] sm:$0xf]
    %v35 = vld [vmem:[#allocation2 + $0xc] sm:$0xf]
    %v36 = vld [vmem:[#allocation2 + $0x10] sm:$0xf]
    %v37 = vld [vmem:[#allocation2 + $0x14] sm:$0xf]
    %v38 = vld [vmem:[#allocation2 + $0x18] sm:$0xf]
    %v39 = vld [vmem:[#allocation2 + $0x1c] sm:$0xf]
    %v40 = vld [vmem:[#allocation2 + $0x20] sm:$0xf]
    %v41 = vld [vmem:[#allocation2 + $0x24] sm:$0xf]
    %v42 = vld [vmem:[#allocation2 + $0x28] sm:$0xf]
    %v43 = vld [vmem:[#allocation2 + $0x2c] sm:$0xf]
    %v44 = vld [vmem:[#allocation2 + $0x30] sm:$0xf]
    %v45 = vld [vmem:[#allocation2 + $0x34] sm:$0xf]
    %v46 = vld [vmem:[#allocation2 + $0x38] sm:$0xf]
    %v47 = vld [vmem:[#allocation2 + $0x3c] sm:$0xf]
    %v48 = vld [vmem:[#allocation2 + $0x40] sm:$0xf]
    %v49 = vld [vmem:[#allocation2 + $0x44] sm:$0xf]
    %v50 = vld [vmem:[#allocation2 + $0x48] sm:$0xf]
    %v51 = vld [vmem:[#allocation2 + $0x4c] sm:$0xf]
    %v52 = vld [vmem:[#allocation2 + $0x50] sm:$0xf]
    %v53 = vld [vmem:[#allocation2 + $0x54] sm:$0xf]
    %v54 = vld [vmem:[#allocation2 + $0x58] sm:$0xf]
    %v55 = vld [vmem:[#allocation2 + $0x5c] sm:$0xf]
    %v56 = vld [vmem:[#allocation2 + $0x60] sm:$0xf]
    %v57 = vld [vmem:[#allocation2 + $0x64] sm:$0xf]
    %v58 = vld [vmem:[#allocation2 + $0x68] sm:$0xf]
    %v59 = vld [vmem:[#allocation2 + $0x6c] sm:$0xf]
    %v60 = vld [vmem:[#allocation2 + $0x70] sm:$0xf]
    %v61 = vld [vmem:[#allocation2 + $0x74] sm:$0xf]
    %v62 = vld [vmem:[#allocation2 + $0x78] sm:$0xf]
    %v63 = vld [vmem:[#allocation2 + $0x7c] sm:$0xf]
    %v64 = vld [vmem:[#allocation2 + $0x80] sm:$0xf]
    %v65 = vld [vmem:[#allocation2 + $0x84] sm:$0xf]
    %v66 = vld [vmem:[#allocation2 + $0x88] sm:$0xf]
    %v67 = vld [vmem:[#allocation2 + $0x8c] sm:$0xf]
    %v68 = vld [vmem:[#allocation2 + $0x90] sm:$0xf]
    %v69 = vld [vmem:[#allocation2 + $0x94] sm:$0xf]
    %v70 = vld [vmem:[#allocation2 + $0x98] sm:$0xf]
    %v71 = vld [vmem:[#allocation2 + $0x9c] sm:$0xf]
    %v72 = vld [vmem:[#allocation2 + $0xa0] sm:$0xf]
    %v73 = vld [vmem:[#allocation2 + $0xa4] sm:$0xf]
    %v74 = vld [vmem:[#allocation2 + $0xa8] sm:$0xf]
    %v75 = vld [vmem:[#allocation2 + $0xac] sm:$0xf]
    %v76 = vld [vmem:[#allocation2 + $0xb0] sm:$0xf]
    %v77 = vld [vmem:[#allocation2 + $0xb4] sm:$0xf]
    %v78 = vld [vmem:[#allocation2 + $0xb8] sm:$0xf]
    %v79 = vld [vmem:[#allocation2 + $0xbc] sm:$0xf]
    %v80 = vld [vmem:[#allocation2 + $0xc0] sm:$0xf]
    %v81 = vld [vmem:[#allocation2 + $0xc4] sm:$0xf]
    %v82 = vld [vmem:[#allocation2 + $0xc8] sm:$0xf]
    %v83 = vld [vmem:[#allocation2 + $0xcc] sm:$0xf]
    %v84 = vld [vmem:[#allocation2 + $0xd0] sm:$0xf]
    %v85 = vld [vmem:[#allocation2 + $0xd4] sm:$0xf]
    %v86 = vld [vmem:[#allocation2 + $0xd8] sm:$0xf]
    %v87 = vld [vmem:[#allocation2 + $0xdc] sm:$0xf]
    %v88 = vld [vmem:[#allocation2 + $0xe0] sm:$0xf]
    %v89 = vld [vmem:[#allocation2 + $0xe4] sm:$0xf]
    %v90 = vld [vmem:[#allocation2 + $0xe8] sm:$0xf]
    %v91 = vld [vmem:[#allocation2 + $0xec] sm:$0xf]
    %v92 = vld [vmem:[#allocation2 + $0xf0] sm:$0xf]
    %v93 = vld [vmem:[#allocation2 + $0xf4] sm:$0xf]
    %v94 = vld [vmem:[#allocation2 + $0xf8] sm:$0xf]
    %v95 = vld [vmem:[#allocation2 + $0xfc] sm:$0xf]
    %v96 = vld [vmem:[#allocation2 + $0x100] sm:$0xf]
    %v97 = vld [vmem:[#allocation2 + $0x104] sm:$0xf]
    %v98 = vld [vmem:[#allocation2 + $0x108] sm:$0xf]
    %v99 = vld [vmem:[#allocation2 + $0x10c] sm:$0xf]
    %v100 = vld [vmem:[#allocation2 + $0x110] sm:$0xf]
    %v101 = vld [vmem:[#allocation2 + $0x114] sm:$0xf]
    %v102 = vld [vmem:[#allocation2 + $0x118] sm:$0xf]
    %v103 = vld [vmem:[#allocation2 + $0x11c] sm:$0xf]
    %v104 = vld [vmem:[#allocation2 + $0x120] sm:$0xf]
    %v105 = vld [vmem:[#allocation2 + $0x124] sm:$0xf]
    %v106 = vld [vmem:[#allocation2 + $0x128] sm:$0xf]
    %v107 = vld [vmem:[#allocation2 + $0x12c] sm:$0xf]
    %v108 = vld [vmem:[#allocation2 + $0x130] sm:$0xf]
    %v109 = vld [vmem:[#allocation2 + $0x134] sm:$0xf]
    %v110 = vld [vmem:[#allocation2 + $0x138] sm:$0xf]
    %v111 = vld [vmem:[#allocation2 + $0x13c] sm:$0xf]
    %v112 = vld [vmem:[#allocation2 + $0x140] sm:$0xf]
    %v113 = vld [vmem:[#allocation2 + $0x144] sm:$0xf]
    %v114 = vld [vmem:[#allocation2 + $0x148] sm:$0xf]
    %v115 = vld [vmem:[#allocation2 + $0x14c] sm:$0xf]
    %v116 = vld [vmem:[#allocation2 + $0x150] sm:$0xf]
    %v117 = vld [vmem:[#allocation2 + $0x154] sm:$0xf]
    %v118 = vld [vmem:[#allocation2 + $0x158] sm:$0xf]
    %v119 = vld [vmem:[#allocation2 + $0x15c] sm:$0xf]
    %v120 = vld [vmem:[#allocation2 + $0x160] sm:$0xf]
    %v121 = vld [vmem:[#allocation2 + $0x164] sm:$0xf]
    %v122 = vld [vmem:[#allocation2 + $0x168] sm:$0xf]
    %v123 = vld [vmem:[#allocation2 + $0x16c] sm:$0xf]
    %v124 = vld [vmem:[#allocation2 + $0x170] sm:$0xf]
    %v125 = vld [vmem:[#allocation2 + $0x174] sm:$0xf]
    %v126 = vld [vmem:[#allocation2 + $0x178] sm:$0xf]
    %v127 = vld [vmem:[#allocation2 + $0x17c] sm:$0xf]
    %v128 = vld [vmem:[#allocation2 + $0x180] sm:$0xf]
    %v129 = vld [vmem:[#allocation2 + $0x184] sm:$0xf]
    %v130 = vld [vmem:[#allocation2 + $0x188] sm:$0xf]
    %v131 = vld [vmem:[#allocation2 + $0x18c] sm:$0xf]
    %v132 = vld [vmem:[#allocation2 + $0x190] sm:$0xf]
    %v133 = vld [vmem:[#allocation2 + $0x194] sm:$0xf]
    %v134 = vld [vmem:[#allocation2 + $0x198] sm:$0xf]
    %v135 = vld [vmem:[#allocation2 + $0x19c] sm:$0xf]
    %v136 = vld [vmem:[#allocation2 + $0x1a0] sm:$0xf]
    %v137 = vld [vmem:[#allocation2 + $0x1a4] sm:$0xf]
    %v138 = vld [vmem:[#allocation2 + $0x1a8] sm:$0xf]
    %v139 = vld [vmem:[#allocation2 + $0x1ac] sm:$0xf]
    %v140 = vld [vmem:[#allocation2 + $0x1b0] sm:$0xf]
    %v141 = vld [vmem:[#allocation2 + $0x1b4] sm:$0xf]
    %v142 = vld [vmem:[#allocation2 + $0x1b8] sm:$0xf]
    %v143 = vld [vmem:[#allocation2 + $0x1bc] sm:$0xf]
    %v144 = vld [vmem:[#allocation2 + $0x1c0] sm:$0xf]
    %v145 = vld [vmem:[#allocation2 + $0x1c4] sm:$0xf]
    %v146 = vld [vmem:[#allocation2 + $0x1c8] sm:$0xf]
    %v147 = vld [vmem:[#allocation2 + $0x1cc] sm:$0xf]
    %v148 = vld [vmem:[#allocation2 + $0x1d0] sm:$0xf]
    %v149 = vld [vmem:[#allocation2 + $0x1d4] sm:$0xf]
    %v150 = vld [vmem:[#allocation2 + $0x1d8] sm:$0xf]
    %v151 = vld [vmem:[#allocation2 + $0x1dc] sm:$0xf]
    %v152 = vld [vmem:[#allocation2 + $0x1e0] sm:$0xf]
    %v153 = vld [vmem:[#allocation2 + $0x1e4] sm:$0xf]
    %v154 = vld [vmem:[#allocation2 + $0x1e8] sm:$0xf]
    %v155 = vld [vmem:[#allocation2 + $0x1ec] sm:$0xf]
    %v156 = vld [vmem:[#allocation2 + $0x1f0] sm:$0xf]
    %v157 = vld [vmem:[#allocation2 + $0x1f4] sm:$0xf]
    %v158 = vld [vmem:[#allocation2 + $0x1f8] sm:$0xf]
    %v159 = vld [vmem:[#allocation2 + $0x1fc] sm:$0xf]
    %v160 = vld [vmem:[#allocation2 + $0x200] sm:$0xf]
    %v161 = vld [vmem:[#allocation2 + $0x204] sm:$0xf]
    %v162 = vld [vmem:[#allocation2 + $0x208] sm:$0xf]
    %v163 = vld [vmem:[#allocation2 + $0x20c] sm:$0xf]
    %v164 = vld [vmem:[#allocation2 + $0x210] sm:$0xf]
    %v165 = vld [vmem:[#allocation2 + $0x214] sm:$0xf]
    %v166 = vld [vmem:[#allocation2 + $0x218] sm:$0xf]
    %v167 = vld [vmem:[#allocation2 + $0x21c] sm:$0xf]
    %v168 = vld [vmem:[#allocation2 + $0x220] sm:$0xf]
    %v169 = vld [vmem:[#allocation2 + $0x224] sm:$0xf]
    %v170 = vld [vmem:[#allocation2 + $0x228] sm:$0xf]
    %v171 = vld [vmem:[#allocation2 + $0x22c] sm:$0xf]
    %v172 = vld [vmem:[#allocation2 + $0x230] sm:$0xf]
    %v173 = vld [vmem:[#allocation2 + $0x234] sm:$0xf]
    %v174 = vld [vmem:[#allocation2 + $0x238] sm:$0xf]
    %v175 = vld [vmem:[#allocation2 + $0x23c] sm:$0xf]
    %v176 = vld [vmem:[#allocation2 + $0x240] sm:$0xf]
    %v177 = vld [vmem:[#allocation2 + $0x244] sm:$0xf]
    %v178 = vld [vmem:[#allocation2 + $0x248] sm:$0xf]
    %v179 = vld [vmem:[#allocation2 + $0x24c] sm:$0xf]
    %v180 = vld [vmem:[#allocation2 + $0x250] sm:$0xf]
    %v181 = vld [vmem:[#allocation2 + $0x254] sm:$0xf]
    %v182 = vld [vmem:[#allocation2 + $0x258] sm:$0xf]
    %v183 = vld [vmem:[#allocation2 + $0x25c] sm:$0xf]
    %v184 = vld [vmem:[#allocation2 + $0x260] sm:$0xf]
    %v185 = vld [vmem:[#allocation2 + $0x264] sm:$0xf]
    %v186 = vld [vmem:[#allocation2 + $0x268] sm:$0xf]
    %v187 = vld [vmem:[#allocation2 + $0x26c] sm:$0xf]
    %v188 = vld [vmem:[#allocation2 + $0x270] sm:$0xf]
    %v189 = vld [vmem:[#allocation2 + $0x274] sm:$0xf]
    %v190 = vld [vmem:[#allocation2 + $0x278] sm:$0xf]
    %v191 = vld [vmem:[#allocation2 + $0x27c] sm:$0xf]
    %v192 = vld [vmem:[#allocation2 + $0x280] sm:$0xf]
    %v193 = vld [vmem:[#allocation2 + $0x284] sm:$0xf]
    %v194 = vld [vmem:[#allocation2 + $0x288] sm:$0xf]
    %v195 = vld [vmem:[#allocation2 + $0x28c] sm:$0xf]
    %v196 = vld [vmem:[#allocation2 + $0x290] sm:$0xf]
    %v197 = vld [vmem:[#allocation2 + $0x294] sm:$0xf]
    %v198 = vld [vmem:[#allocation2 + $0x298] sm:$0xf]
    %v199 = vld [vmem:[#allocation2 + $0x29c] sm:$0xf]
    %v200 = vld [vmem:[#allocation2 + $0x2a0] sm:$0xf]
    %v201 = vld [vmem:[#allocation2 + $0x2a4] sm:$0xf]
    %v202 = vld [vmem:[#allocation2 + $0x2a8] sm:$0xf]
    %v203 = vld [vmem:[#allocation2 + $0x2ac] sm:$0xf]
    %v204 = vld [vmem:[#allocation2 + $0x2b0] sm:$0xf]
    %v205 = vld [vmem:[#allocation2 + $0x2b4] sm:$0xf]
    %v206 = vld [vmem:[#allocation2 + $0x2b8] sm:$0xf]
    %v207 = vld [vmem:[#allocation2 + $0x2bc] sm:$0xf]
    %v208 = vld [vmem:[#allocation2 + $0x2c0] sm:$0xf]
    %v209 = vld [vmem:[#allocation2 + $0x2c4] sm:$0xf]
    %v210 = vld [vmem:[#allocation2 + $0x2c8] sm:$0xf]
    %v211 = vld [vmem:[#allocation2 + $0x2cc] sm:$0xf]
    %v212 = vld [vmem:[#allocation2 + $0x2d0] sm:$0xf]
    %v213 = vld [vmem:[#allocation2 + $0x2d4] sm:$0xf]
    %v214 = vld [vmem:[#allocation2 + $0x2d8] sm:$0xf]
    %v215 = vld [vmem:[#allocation2 + $0x2dc] sm:$0xf]
    %v216 = vld [vmem:[#allocation2 + $0x2e0] sm:$0xf]
    %v217 = vld [vmem:[#allocation2 + $0x2e4] sm:$0xf]
    %v218 = vld [vmem:[#allocation2 + $0x2e8] sm:$0xf]
    %v219 = vld [vmem:[#allocation2 + $0x2ec] sm:$0xf]
    %v220 = vld [vmem:[#allocation2 + $0x2f0] sm:$0xf]
    %v221 = vld [vmem:[#allocation2 + $0x2f4] sm:$0xf]
    %v222 = vld [vmem:[#allocation2 + $0x2f8] sm:$0xf]
    %v223 = vld [vmem:[#allocation2 + $0x2fc] sm:$0xf]
    %v224 = vld [vmem:[#allocation2 + $0x300] sm:$0xf]
    %v225 = vld [vmem:[#allocation2 + $0x304] sm:$0xf]
    %v226 = vld [vmem:[#allocation2 + $0x308] sm:$0xf]
    %v227 = vld [vmem:[#allocation2 + $0x30c] sm:$0xf]
    %v228 = vld [vmem:[%s1] sm:$0xf]
    %v229 = vld [vmem:[%s1 + $0x4] sm:$0xf]
    %v230 = vld [vmem:[%s1 + $0x8] sm:$0xf]
    %v231 = vld [vmem:[%s1 + $0xc] sm:$0xf]
    %v232 = vld [vmem:[%s1 + $0x10] sm:$0xf]
    %v233 = vld [vmem:[%s1 + $0x14] sm:$0xf]
    %v234 = vld [vmem:[%s1 + $0x18] sm:$0xf]
    %v235 = vld [vmem:[%s1 + $0x1c] sm:$0xf]
    %v236 = vld [vmem:[%s1 + $0x20] sm:$0xf]
    %v237 = vld [vmem:[%s1 + $0x24] sm:$0xf]
    %v238 = vld [vmem:[%s1 + $0x28] sm:$0xf]
    %v239 = vld [vmem:[%s1 + $0x2c] sm:$0xf]
    %v240 = vld [vmem:[%s1 + $0x30] sm:$0xf]
    %v241 = vld [vmem:[%s1 + $0x34] sm:$0xf]
    %v242 = vld [vmem:[%s1 + $0x38] sm:$0xf]
    %v243 = vld [vmem:[%s1 + $0x3c] sm:$0xf]
    %v440 = vunpack.c.l.b16 %v32
    %v441 = vunpack.c.l.b16 %v33
    %v442 = vunpack.c.l.b16 %v34
    %v443 = vunpack.c.l.b16 %v35
    %v444 = vunpack.c.l.b16 %v36
    %v445 = vunpack.c.l.b16 %v37
    %v446 = vunpack.c.l.b16 %v38
    %v447 = vunpack.c.l.b16 %v39
    %v448 = vunpack.c.l.b16 %v40
    %v449 = vunpack.c.l.b16 %v41
    %v450 = vunpack.c.l.b16 %v42
    %v451 = vunpack.c.l.b16 %v43
    %v452 = vunpack.c.l.b16 %v44
    %v453 = vunpack.c.l.b16 %v45
    %v454 = vunpack.c.l.b16 %v46
    %v455 = vunpack.c.l.b16 %v47
    %v456 = vunpack.c.l.b16 %v48
    %v457 = vunpack.c.l.b16 %v49
    %v458 = vunpack.c.l.b16 %v50
    %v459 = vunpack.c.l.b16 %v51
    %v460 = vunpack.c.l.b16 %v52
    %v461 = vunpack.c.l.b16 %v53
    %v462 = vunpack.c.l.b16 %v54
    %v463 = vunpack.c.l.b16 %v55
    %v464 = vunpack.c.l.b16 %v56
    %v465 = vunpack.c.l.b16 %v57
    %v466 = vunpack.c.l.b16 %v58
    %v467 = vunpack.c.l.b16 %v59
    %v468 = vunpack.c.l.b16 %v60
    %v469 = vunpack.c.l.b16 %v61
    %v470 = vunpack.c.l.b16 %v62
    %v471 = vunpack.c.l.b16 %v63
    %v472 = vunpack.c.l.b16 %v64
    %v473 = vunpack.c.l.b16 %v65
    %v474 = vunpack.c.l.b16 %v66
    %v475 = vunpack.c.l.b16 %v67
    %v476 = vunpack.c.l.b16 %v68
    %v477 = vunpack.c.l.b16 %v69
    %v478 = vunpack.c.l.b16 %v70
    %v479 = vunpack.c.l.b16 %v71
    %v480 = vunpack.c.l.b16 %v72
    %v481 = vunpack.c.l.b16 %v73
    %v482 = vunpack.c.l.b16 %v74
    %v483 = vunpack.c.l.b16 %v75
    %v484 = vunpack.c.l.b16 %v76
    %v485 = vunpack.c.l.b16 %v77
    %v486 = vunpack.c.l.b16 %v78
    %v487 = vunpack.c.l.b16 %v79
    %v488 = vunpack.c.l.b16 %v80
    %v489 = vunpack.c.l.b16 %v81
    %v490 = vunpack.c.l.b16 %v82
    %v491 = vunpack.c.l.b16 %v83
    %v492 = vunpack.c.l.b16 %v84
    %v493 = vunpack.c.l.b16 %v85
    %v494 = vunpack.c.l.b16 %v86
    %v495 = vunpack.c.l.b16 %v87
    %v496 = vunpack.c.l.b16 %v88
    %v497 = vunpack.c.l.b16 %v89
    %v498 = vunpack.c.l.b16 %v90
    %v499 = vunpack.c.l.b16 %v91
    %v500 = vunpack.c.l.b16 %v92
    %v501 = vunpack.c.l.b16 %v93
    %v502 = vunpack.c.l.b16 %v94
    %v503 = vunpack.c.l.b16 %v95
    %v504 = vunpack.c.l.b16 %v96
    %v505 = vunpack.c.l.b16 %v97
    %v506 = vunpack.c.l.b16 %v98
    %v507 = vunpack.c.l.b16 %v99
    %v508 = vunpack.c.l.b16 %v100
    %v509 = vunpack.c.l.b16 %v101
    %v510 = vunpack.c.l.b16 %v102
    %v511 = vunpack.c.l.b16 %v103
    %v512 = vunpack.c.l.b16 %v104
    %v513 = vunpack.c.l.b16 %v105
    %v514 = vunpack.c.l.b16 %v106
    %v515 = vunpack.c.l.b16 %v107
    %v516 = vunpack.c.l.b16 %v108
    %v517 = vunpack.c.l.b16 %v109
    %v518 = vunpack.c.l.b16 %v110
    %v519 = vunpack.c.l.b16 %v111
    %v520 = vunpack.c.l.b16 %v112
    %v521 = vunpack.c.l.b16 %v113
    %v522 = vunpack.c.l.b16 %v114
    %v523 = vunpack.c.l.b16 %v115
    %v524 = vunpack.c.l.b16 %v116
    %v525 = vunpack.c.l.b16 %v117
    %v526 = vunpack.c.l.b16 %v118
    %v527 = vunpack.c.l.b16 %v119
    %v528 = vunpack.c.l.b16 %v120
    %v529 = vunpack.c.l.b16 %v121
    %v530 = vunpack.c.l.b16 %v122
    %v531 = vunpack.c.l.b16 %v123
    %v532 = vunpack.c.l.b16 %v124
    %v533 = vunpack.c.l.b16 %v125
    %v534 = vunpack.c.l.b16 %v126
    %v535 = vunpack.c.l.b16 %v127
    %v536 = vunpack.c.l.b16 %v128
    %v537 = vunpack.c.l.b16 %v129
    %v538 = vunpack.c.l.b16 %v130
    %v539 = vunpack.c.l.b16 %v131
    %v540 = vunpack.c.l.b16 %v132
    %v541 = vunpack.c.l.b16 %v133
    %v542 = vunpack.c.l.b16 %v134
    %v543 = vunpack.c.l.b16 %v135
    %v544 = vunpack.c.l.b16 %v136
    %v545 = vunpack.c.l.b16 %v137
    %v546 = vunpack.c.l.b16 %v138
    %v547 = vunpack.c.l.b16 %v139
    %v548 = vunpack.c.l.b16 %v140
    %v549 = vunpack.c.l.b16 %v141
    %v550 = vunpack.c.l.b16 %v142
    %v551 = vunpack.c.l.b16 %v143
    %v552 = vunpack.c.l.b16 %v144
    %v553 = vunpack.c.l.b16 %v145
    %v554 = vunpack.c.l.b16 %v146
    %v555 = vunpack.c.l.b16 %v147
    %v556 = vunpack.c.l.b16 %v148
    %v557 = vunpack.c.l.b16 %v149
    %v558 = vunpack.c.l.b16 %v150
    %v559 = vunpack.c.l.b16 %v151
    %v560 = vunpack.c.l.b16 %v152
    %v561 = vunpack.c.l.b16 %v153
    %v562 = vunpack.c.l.b16 %v154
    %v563 = vunpack.c.l.b16 %v155
    %v564 = vunpack.c.l.b16 %v156
    %v565 = vunpack.c.l.b16 %v157
    %v566 = vunpack.c.l.b16 %v158
    %v567 = vunpack.c.l.b16 %v159
    %v568 = vunpack.c.l.b16 %v160
    %v569 = vunpack.c.l.b16 %v161
    %v570 = vunpack.c.l.b16 %v162
    %v571 = vunpack.c.l.b16 %v163
    %v572 = vunpack.c.l.b16 %v164
    %v573 = vunpack.c.l.b16 %v165
    %v574 = vunpack.c.l.b16 %v166
    %v575 = vunpack.c.l.b16 %v167
    %v576 = vunpack.c.l.b16 %v168
    %v577 = vunpack.c.l.b16 %v169
    %v578 = vunpack.c.l.b16 %v170
    %v579 = vunpack.c.l.b16 %v171
    %v580 = vunpack.c.l.b16 %v172
    %v581 = vunpack.c.l.b16 %v173
    %v582 = vunpack.c.l.b16 %v174
    %v583 = vunpack.c.l.b16 %v175
    %v584 = vunpack.c.l.b16 %v176
    %v585 = vunpack.c.l.b16 %v177
    %v586 = vunpack.c.l.b16 %v178
    %v587 = vunpack.c.l.b16 %v179
    %v588 = vunpack.c.l.b16 %v180
    %v589 = vunpack.c.l.b16 %v181
    %v590 = vunpack.c.l.b16 %v182
    %v591 = vunpack.c.l.b16 %v183
    %v592 = vunpack.c.l.b16 %v184
    %v593 = vunpack.c.l.b16 %v185
    %v594 = vunpack.c.l.b16 %v186
    %v595 = vunpack.c.l.b16 %v187
    %v596 = vunpack.c.l.b16 %v188
    %v597 = vunpack.c.l.b16 %v189
    %v598 = vunpack.c.l.b16 %v190
    %v599 = vunpack.c.l.b16 %v191
    %v600 = vunpack.c.l.b16 %v192
    %v601 = vunpack.c.l.b16 %v193
    %v602 = vunpack.c.l.b16 %v194
    %v603 = vunpack.c.l.b16 %v195
    %v604 = vunpack.c.l.b16 %v196
    %v605 = vunpack.c.l.b16 %v197
    %v606 = vunpack.c.l.b16 %v198
    %v607 = vunpack.c.l.b16 %v199
    %v608 = vunpack.c.l.b16 %v200
    %v609 = vunpack.c.l.b16 %v201
    %v610 = vunpack.c.l.b16 %v202
    %v611 = vunpack.c.l.b16 %v203
    %v612 = vunpack.c.l.b16 %v204
    %v613 = vunpack.c.l.b16 %v205
    %v614 = vunpack.c.l.b16 %v206
    %v615 = vunpack.c.l.b16 %v207
    %v616 = vunpack.c.l.b16 %v208
    %v617 = vunpack.c.l.b16 %v209
    %v618 = vunpack.c.l.b16 %v210
    %v619 = vunpack.c.l.b16 %v211
    %v620 = vunpack.c.l.b16 %v212
    %v621 = vunpack.c.l.b16 %v213
    %v622 = vunpack.c.l.b16 %v214
    %v623 = vunpack.c.l.b16 %v215
    %v624 = vunpack.c.l.b16 %v216
    %v625 = vunpack.c.l.b16 %v217
    %v626 = vunpack.c.l.b16 %v218
    %v627 = vunpack.c.l.b16 %v219
    %v628 = vunpack.c.l.b16 %v220
    %v629 = vunpack.c.l.b16 %v221
    %v630 = vunpack.c.l.b16 %v222
    %v631 = vunpack.c.l.b16 %v223
    %v632 = vunpack.c.l.b16 %v224
    %v633 = vunpack.c.l.b16 %v225
    %v634 = vunpack.c.l.b16 %v226
    %v635 = vunpack.c.l.b16 %v227
    %v636 = vpack.c.b16 %v441, %v440
    %v637 = vpack.c.b16 %v443, %v442
    %v638 = vpack.c.b16 %v445, %v444
    %v639 = vpack.c.b16 %v447, %v446
    %v640 = vpack.c.b16 %v449, %v448
    %v641 = vpack.c.b16 %v451, %v450
    %v642 = vpack.c.b16 %v453, %v452
    %v643 = vpack.c.b16 %v455, %v454
    %v644 = vpack.c.b16 %v457, %v456
    %v645 = vpack.c.b16 %v459, %v458
    %v646 = vpack.c.b16 %v461, %v460
    %v647 = vpack.c.b16 %v463, %v462
    %v648 = vpack.c.b16 %v465, %v464
    %v649 = vpack.c.b16 %v467, %v466
    %v650 = vpack.c.b16 %v469, %v468
    %v651 = vpack.c.b16 %v471, %v470
    %v652 = vpack.c.b16 %v473, %v472
    %v653 = vpack.c.b16 %v475, %v474
    %v654 = vpack.c.b16 %v477, %v476
    %v655 = vpack.c.b16 %v479, %v478
    %v656 = vpack.c.b16 %v481, %v480
    %v657 = vpack.c.b16 %v483, %v482
    %v658 = vpack.c.b16 %v485, %v484
    %v659 = vpack.c.b16 %v487, %v486
    %v660 = vpack.c.b16 %v489, %v488
    %v661 = vpack.c.b16 %v491, %v490
    %v662 = vpack.c.b16 %v493, %v492
    %v663 = vpack.c.b16 %v495, %v494
    %v664 = vpack.c.b16 %v497, %v496
    %v665 = vpack.c.b16 %v499, %v498
    %v666 = vpack.c.b16 %v501, %v500
    %v667 = vpack.c.b16 %v503, %v502
    %v668 = vpack.c.b16 %v505, %v504
    %v669 = vpack.c.b16 %v507, %v506
    %v670 = vpack.c.b16 %v509, %v508
    %v671 = vpack.c.b16 %v511, %v510
    %v672 = vpack.c.b16 %v513, %v512
    %v673 = vpack.c.b16 %v515, %v514
    %v674 = vpack.c.b16 %v517, %v516
    %v675 = vpack.c.b16 %v519, %v518
    %v676 = vpack.c.b16 %v521, %v520
    %v677 = vpack.c.b16 %v523, %v522
    %v678 = vpack.c.b16 %v525, %v524
    %v679 = vpack.c.b16 %v527, %v526
    %v680 = vpack.c.b16 %v529, %v528
    %v681 = vpack.c.b16 %v531, %v530
    %v682 = vpack.c.b16 %v533, %v532
    %v683 = vpack.c.b16 %v535, %v534
    %v684 = vpack.c.b16 %v537, %v536
    %v685 = vpack.c.b16 %v539, %v538
    %v686 = vpack.c.b16 %v541, %v540
    %v687 = vpack.c.b16 %v543, %v542
    %v688 = vpack.c.b16 %v545, %v544
    %v689 = vpack.c.b16 %v547, %v546
    %v690 = vpack.c.b16 %v549, %v548
    %v691 = vpack.c.b16 %v551, %v550
    %v692 = vpack.c.b16 %v553, %v552
    %v693 = vpack.c.b16 %v555, %v554
    %v694 = vpack.c.b16 %v557, %v556
    %v695 = vpack.c.b16 %v559, %v558
    %v696 = vpack.c.b16 %v561, %v560
    %v697 = vpack.c.b16 %v563, %v562
    %v698 = vpack.c.b16 %v565, %v564
    %v699 = vpack.c.b16 %v567, %v566
    %v700 = vpack.c.b16 %v569, %v568
    %v701 = vpack.c.b16 %v571, %v570
    %v702 = vpack.c.b16 %v573, %v572
    %v703 = vpack.c.b16 %v575, %v574
    %v704 = vpack.c.b16 %v577, %v576
    %v705 = vpack.c.b16 %v579, %v578
    %v706 = vpack.c.b16 %v581, %v580
    %v707 = vpack.c.b16 %v583, %v582
    %v708 = vpack.c.b16 %v585, %v584
    %v709 = vpack.c.b16 %v587, %v586
    %v710 = vpack.c.b16 %v589, %v588
    %v711 = vpack.c.b16 %v591, %v590
    %v712 = vpack.c.b16 %v593, %v592
    %v713 = vpack.c.b16 %v595, %v594
    %v714 = vpack.c.b16 %v597, %v596
    %v715 = vpack.c.b16 %v599, %v598
    %v716 = vpack.c.b16 %v601, %v600
    %v717 = vpack.c.b16 %v603, %v602
    %v718 = vpack.c.b16 %v605, %v604
    %v719 = vpack.c.b16 %v607, %v606
    %v720 = vpack.c.b16 %v609, %v608
    %v721 = vpack.c.b16 %v611, %v610
    %v722 = vpack.c.b16 %v613, %v612
    %v723 = vpack.c.b16 %v615, %v614
    %v724 = vpack.c.b16 %v617, %v616
    %v725 = vpack.c.b16 %v619, %v618
    %v726 = vpack.c.b16 %v621, %v620
    %v727 = vpack.c.b16 %v623, %v622
    %v728 = vpack.c.b16 %v625, %v624
    %v729 = vpack.c.b16 %v627, %v626
    %v730 = vpack.c.b16 %v629, %v628
    %v731 = vpack.c.b16 %v631, %v630
    %v732 = vpack.c.b16 %v633, %v632
    %v733 = vpack.c.b16 %v635, %v634
    %v848 = vunpack.c.l.b16 %v228
    %v849 = vunpack.c.l.b16 %v229
    %v850 = vunpack.c.l.b16 %v230
    %v851 = vunpack.c.l.b16 %v231
    %v852 = vunpack.c.l.b16 %v232
    %v853 = vunpack.c.l.b16 %v233
    %v854 = vunpack.c.l.b16 %v234
    %v855 = vunpack.c.l.b16 %v235
    %v856 = vunpack.c.l.b16 %v236
    %v857 = vunpack.c.l.b16 %v237
    %v858 = vunpack.c.l.b16 %v238
    %v859 = vunpack.c.l.b16 %v239
    %v860 = vunpack.c.l.b16 %v240
    %v861 = vunpack.c.l.b16 %v241
    %v862 = vunpack.c.l.b16 %v242
    %v863 = vunpack.c.l.b16 %v243
    %v864 = vpack.c.b16 %v849, %v848
    %v865 = vpack.c.b16 %v851, %v850
    %v866 = vpack.c.b16 %v853, %v852
    %v867 = vpack.c.b16 %v855, %v854
    %v868 = vpack.c.b16 %v857, %v856
    %v869 = vpack.c.b16 %v859, %v858
    %v870 = vpack.c.b16 %v861, %v860
    %v871 = vpack.c.b16 %v863, %v862
    %880 = vmatprep.subr.bf16.mxu0 0
    %881 = vmatpush1.bf16.msra.mxu0 %v864
    %882 = vmatprep.subr.bf16.mxu0 0
    %883 = vmatpush1.bf16.msra.mxu0 %v865
    %884 = vmatprep.subr.bf16.mxu0 0
    %885 = vmatpush1.bf16.msra.mxu0 %v866
    %886 = vmatprep.subr.bf16.mxu0 0
    %887 = vmatpush1.bf16.msra.mxu0 %v867
    %888 = vmatprep.subr.bf16.mxu0 0
    %889 = vmatpush1.bf16.msra.mxu0 %v868
    %890 = vmatprep.subr.bf16.mxu0 0
    %891 = vmatpush1.bf16.msra.mxu0 %v869
    %892 = vmatprep.subr.bf16.mxu0 0
    %893 = vmatpush1.bf16.msra.mxu0 %v870
    %894 = vmatprep.subr.bf16.mxu0 0
    %895 = vmatpush1.bf16.msra.mxu0 %v871
    %896 = vmatprep.subr.bf16.mxu0 0
    %897 = vmatpush1.bf16.msra.mxu0 0
    %898 = vmatprep.subr.bf16.mxu0 0
    %899 = vmatpush1.bf16.msra.mxu0 0
    %900 = vmatprep.subr.bf16.mxu0 0
    %901 = vmatpush1.bf16.msra.mxu0 0
    %902 = vmatprep.subr.bf16.mxu0 0
    %903 = vmatpush1.bf16.msra.mxu0 0
    %904 = vmatprep.subr.bf16.mxu0 0
    %905 = vmatpush1.bf16.msra.mxu0 0
    %906 = vmatprep.subr.bf16.mxu0 0
    %907 = vmatpush1.bf16.msra.mxu0 0
    %908 = vmatprep.subr.bf16.mxu0 0
    %909 = vmatpush1.bf16.msra.mxu0 0
    %910 = vmatprep.subr.bf16.mxu0 0
    %911 = vmatpush1.bf16.msra.mxu0 0
    %912 = vmatprep.mubr.bf16.mxu0 0
    %913 = vmatmul.mubr.bf16.gmra.mrb[0].mxu0 %v636
    %v914 = vpop.f32.mrb[0].mxu0
    %v915 = vadd.f32 0.0, %v914
    %v916 = vpop.f32.mrb[0].mxu0
    %v917 = vpop.f32.mrb[0].mxu0
    %v918 = vadd.f32 0.0, %v917
    %v919 = vpop.f32.mrb[0].mxu0
    %920 = vmatprep.mubr.bf16.mxu0 0
    %921 = vmatmul.mubr.bf16.gmra.mrb[0].mxu0 %v637
    %v922 = vpop.f32.mrb[0].mxu0
    %v923 = vadd.f32 0.0, %v922
    %v924 = vpop.f32.mrb[0].mxu0
    %v925 = vpop.f32.mrb[0].mxu0
    %v926 = vadd.f32 0.0, %v925
    %v927 = vpop.f32.mrb[0].mxu0
    %928 = vmatprep.mubr.bf16.mxu0 0
    %929 = vmatmul.mubr.bf16.gmra.mrb[0].mxu0 %v638
    %v930 = vpop.f32.mrb[0].mxu0
    %v931 = vadd.f32 0.0, %v930
    %v932 = vpop.f32.mrb[0].mxu0
    %v933 = vpop.f32.mrb[0].mxu0
    %v934 = vadd.f32 0.0, %v933
    %v935 = vpop.f32.mrb[0].mxu0
    %936 = vmatprep.mubr.bf16.mxu0 0
    %937 = vmatmul.mubr.bf16.gmra.mrb[0].mxu0 %v639
    %v938 = vpop.f32.mrb[0].mxu0
    %v939 = vadd.f32 0.0, %v938
    %v940 = vpop.f32.mrb[0].mxu0
    %v941 = vpop.f32.mrb[0].mxu0
    %v942 = vadd.f32 0.0, %v941
    %v943 = vpop.f32.mrb[0].mxu0
    %944 = vmatprep.mubr.bf16.mxu0 0
    %945 = vmatmul.mubr.bf16.gmra.mrb[0].mxu0 %v640
    %v946 = vpop.f32.mrb[0].mxu0
    %v947 = vadd.f32 0.0, %v946
    %v948 = vpop.f32.mrb[0].mxu0
    %v949 = vpop.f32.mrb[0].mxu0
    %v950 = vadd.f32 0.0, %v949
    %v951 = vpop.f32.mrb[0].mxu0
    %952 = vmatprep.mubr.bf16.mxu0 0
    %953 = vmatmul.mubr.bf16.gmra.mrb[0].mxu0 %v641
    %v954 = vpop.f32.mrb[0].mxu0
    %v955 = vadd.f32 0.0, %v954
    %v956 = vpop.f32.mrb[0].mxu0
    %v957 = vpop.f32.mrb[0].mxu0
    %v958 = vadd.f32 0.0, %v957
    %v959 = vpop.f32.mrb[0].mxu0
    %960 = vmatprep.mubr.bf16.mxu0 0
    %961 = vmatmul.mubr.bf16.gmra.mrb[0].mxu0 %v642
    %v962 = vpop.f32.mrb[0].mxu0
    %v963 = vadd.f32 0.0, %v962
    %v964 = vpop.f32.mrb[0].mxu0
    %v965 = vpop.f32.mrb[0].mxu0
    %v966 = vadd.f32 0.0, %v965
    %v967 = vpop.f32.mrb[0].mxu0
    %968 = vmatprep.mubr.bf16.mxu0 0
    %969 = vmatmul.mubr.bf16.gmra.mrb[0].mxu0 %v643
    %v970 = vpop.f32.mrb[0].mxu0
    %v971 = vadd.f32 0.0, %v970
    %v972 = vpop.f32.mrb[0].mxu0
    %v973 = vpop.f32.mrb[0].mxu0
    %v974 = vadd.f32 0.0, %v973
    %v975 = vpop.f32.mrb[0].mxu0
    %976 = vmatprep.mubr.bf16.mxu0 0
    %977 = vmatmul.mubr.bf16.gmra.mrb[0].mxu0 %v644
    %v978 = vpop.f32.mrb[0].mxu0
    %v979 = vadd.f32 0.0, %v978
    %v980 = vpop.f32.mrb[0].mxu0
    %v981 = vpop.f32.mrb[0].mxu0
    %v982 = vadd.f32 0.0, %v981
    %v983 = vpop.f32.mrb[0].mxu0
    %984 = vmatprep.mubr.bf16.mxu0 0
    %985 = vmatmul.mubr.bf16.gmra.mrb[0].mxu0 %v645
    %v986 = vpop.f32.mrb[0].mxu0
    %v987 = vadd.f32 0.0, %v986
    %v988 = vpop.f32.mrb[0].mxu0
    %v989 = vpop.f32.mrb[0].mxu0
    %v990 = vadd.f32 0.0, %v989
    %v991 = vpop.f32.mrb[0].mxu0
    %992 = vmatprep.mubr.bf16.mxu0 0
    %993 = vmatmul.mubr.bf16.gmra.mrb[0].mxu0 %v646
    %v994 = vpop.f32.mrb[0].mxu0
    %v995 = vadd.f32 0.0, %v994
    %v996 = vpop.f32.mrb[0].mxu0
    %v997 = vpop.f32.mrb[0].mxu0
    %v998 = vadd.f32 0.0, %v997
    %v999 = vpop.f32.mrb[0].mxu0
    %1000 = vmatprep.mubr.bf16.mxu0 0
    %1001 = vmatmul.mubr.bf16.gmra.mrb[0].mxu0 %v647
    %v1002 = vpop.f32.mrb[0].mxu0
    %v1003 = vadd.f32 0.0, %v1002
    %v1004 = vpop.f32.mrb[0].mxu0
    %v1005 = vpop.f32.mrb[0].mxu0
    %v1006 = vadd.f32 0.0, %v1005
    %v1007 = vpop.f32.mrb[0].mxu0
    %1008 = vmatprep.mubr.bf16.mxu0 0
    %1009 = vmatmul.mubr.bf16.gmra.mrb[0].mxu0 %v648
    %v1010 = vpop.f32.mrb[0].mxu0
    %v1011 = vadd.f32 0.0, %v1010
    %v1012 = vpop.f32.mrb[0].mxu0
    %v1013 = vpop.f32.mrb[0].mxu0
    %v1014 = vadd.f32 0.0, %v1013
    %v1015 = vpop.f32.mrb[0].mxu0
    %1016 = vmatprep.mubr.bf16.mxu0 0
    %1017 = vmatmul.mubr.bf16.gmra.mrb[0].mxu0 %v649
    %v1018 = vpop.f32.mrb[0].mxu0
    %v1019 = vadd.f32 0.0, %v1018
    %v1020 = vpop.f32.mrb[0].mxu0
    %v1021 = vpop.f32.mrb[0].mxu0
    %v1022 = vadd.f32 0.0, %v1021
    %v1023 = vpop.f32.mrb[0].mxu0
    %1024 = vmatprep.mubr.bf16.mxu0 0
    %1025 = vmatmul.mubr.bf16.gmra.mrb[0].mxu0 %v650
    %v1026 = vpop.f32.mrb[0].mxu0
    %v1027 = vadd.f32 0.0, %v1026
    %v1028 = vpop.f32.mrb[0].mxu0
    %v1029 = vpop.f32.mrb[0].mxu0
    %v1030 = vadd.f32 0.0, %v1029
    %v1031 = vpop.f32.mrb[0].mxu0
    %1032 = vmatprep.mubr.bf16.mxu0 0
    %1033 = vmatmul.mubr.bf16.gmra.mrb[0].mxu0 %v651
    %v1034 = vpop.f32.mrb[0].mxu0
    %v1035 = vadd.f32 0.0, %v1034
    %v1036 = vpop.f32.mrb[0].mxu0
    %v1037 = vpop.f32.mrb[0].mxu0
    %v1038 = vadd.f32 0.0, %v1037
    %v1039 = vpop.f32.mrb[0].mxu0
    %1040 = vmatprep.mubr.bf16.mxu0 0
    %1041 = vmatmul.mubr.bf16.gmra.mrb[0].mxu0 %v652
    %v1042 = vpop.f32.mrb[0].mxu0
    %v1043 = vadd.f32 0.0, %v1042
    %v1044 = vpop.f32.mrb[0].mxu0
    %v1045 = vpop.f32.mrb[0].mxu0
    %v1046 = vadd.f32 0.0, %v1045
    %v1047 = vpop.f32.mrb[0].mxu0
    %1048 = vmatprep.mubr.bf16.mxu0 0
    %1049 = vmatmul.mubr.bf16.gmra.mrb[0].mxu0 %v653
    %v1050 = vpop.f32.mrb[0].mxu0
    %v1051 = vadd.f32 0.0, %v1050
    %v1052 = vpop.f32.mrb[0].mxu0
    %v1053 = vpop.f32.mrb[0].mxu0
    %v1054 = vadd.f32 0.0, %v1053
    %v1055 = vpop.f32.mrb[0].mxu0
    %1056 = vmatprep.mubr.bf16.mxu0 0
    %1057 = vmatmul.mubr.bf16.gmra.mrb[0].mxu0 %v654
    %v1058 = vpop.f32.mrb[0].mxu0
    %v1059 = vadd.f32 0.0, %v1058
    %v1060 = vpop.f32.mrb[0].mxu0
    %v1061 = vpop.f32.mrb[0].mxu0
    %v1062 = vadd.f32 0.0, %v1061
    %v1063 = vpop.f32.mrb[0].mxu0
    %1064 = vmatprep.mubr.bf16.mxu0 0
    %1065 = vmatmul.mubr.bf16.gmra.mrb[0].mxu0 %v655
    %v1066 = vpop.f32.mrb[0].mxu0
    %v1067 = vadd.f32 0.0, %v1066
    %v1068 = vpop.f32.mrb[0].mxu0
    %v1069 = vpop.f32.mrb[0].mxu0
    %v1070 = vadd.f32 0.0, %v1069
    %v1071 = vpop.f32.mrb[0].mxu0
    %1072 = vmatprep.mubr.bf16.mxu0 0
    %1073 = vmatmul.mubr.bf16.gmra.mrb[0].mxu0 %v656
    %v1074 = vpop.f32.mrb[0].mxu0
    %v1075 = vadd.f32 0.0, %v1074
    %v1076 = vpop.f32.mrb[0].mxu0
    %v1077 = vpop.f32.mrb[0].mxu0
    %v1078 = vadd.f32 0.0, %v1077
    %v1079 = vpop.f32.mrb[0].mxu0
    %1080 = vmatprep.mubr.bf16.mxu0 0
    %1081 = vmatmul.mubr.bf16.gmra.mrb[0].mxu0 %v657
    %v1082 = vpop.f32.mrb[0].mxu0
    %v1083 = vadd.f32 0.0, %v1082
    %v1084 = vpop.f32.mrb[0].mxu0
    %v1085 = vpop.f32.mrb[0].mxu0
    %v1086 = vadd.f32 0.0, %v1085
    %v1087 = vpop.f32.mrb[0].mxu0
    %1088 = vmatprep.mubr.bf16.mxu0 0
    %1089 = vmatmul.mubr.bf16.gmra.mrb[0].mxu0 %v658
    %v1090 = vpop.f32.mrb[0].mxu0
    %v1091 = vadd.f32 0.0, %v1090
    %v1092 = vpop.f32.mrb[0].mxu0
    %v1093 = vpop.f32.mrb[0].mxu0
    %v1094 = vadd.f32 0.0, %v1093
    %v1095 = vpop.f32.mrb[0].mxu0
    %1096 = vmatprep.mubr.bf16.mxu0 0
    %1097 = vmatmul.mubr.bf16.gmra.mrb[0].mxu0 %v659
    %v1098 = vpop.f32.mrb[0].mxu0
    %v1099 = vadd.f32 0.0, %v1098
    %v1100 = vpop.f32.mrb[0].mxu0
    %v1101 = vpop.f32.mrb[0].mxu0
    %v1102 = vadd.f32 0.0, %v1101
    %v1103 = vpop.f32.mrb[0].mxu0
    %1104 = vmatprep.mubr.bf16.mxu0 0
    %1105 = vmatmul.mubr.bf16.gmra.mrb[0].mxu0 %v660
    %v1106 = vpop.f32.mrb[0].mxu0
    %v1107 = vadd.f32 0.0, %v1106
    %v1108 = vpop.f32.mrb[0].mxu0
    %v1109 = vpop.f32.mrb[0].mxu0
    %v1110 = vadd.f32 0.0, %v1109
    %v1111 = vpop.f32.mrb[0].mxu0
    %1112 = vmatprep.mubr.bf16.mxu0 0
    %1113 = vmatmul.mubr.bf16.gmra.mrb[0].mxu0 %v661
    %v1114 = vpop.f32.mrb[0].mxu0
    %v1115 = vadd.f32 0.0, %v1114
    %v1116 = vpop.f32.mrb[0].mxu0
    %v1117 = vpop.f32.mrb[0].mxu0
    %v1118 = vadd.f32 0.0, %v1117
    %v1119 = vpop.f32.mrb[0].mxu0
    %1120 = vmatprep.mubr.bf16.mxu0 0
    %1121 = vmatmul.mubr.bf16.gmra.mrb[0].mxu0 %v662
    %v1122 = vpop.f32.mrb[0].mxu0
    %v1123 = vadd.f32 0.0, %v1122
    %v1124 = vpop.f32.mrb[0].mxu0
    %v1125 = vpop.f32.mrb[0].mxu0
    %v1126 = vadd.f32 0.0, %v1125
    %v1127 = vpop.f32.mrb[0].mxu0
    %1128 = vmatprep.mubr.bf16.mxu0 0
    %1129 = vmatmul.mubr.bf16.gmra.mrb[0].mxu0 %v663
    %v1130 = vpop.f32.mrb[0].mxu0
    %v1131 = vadd.f32 0.0, %v1130
    %v1132 = vpop.f32.mrb[0].mxu0
    %v1133 = vpop.f32.mrb[0].mxu0
    %v1134 = vadd.f32 0.0, %v1133
    %v1135 = vpop.f32.mrb[0].mxu0
    %1136 = vmatprep.mubr.bf16.mxu0 0
    %1137 = vmatmul.mubr.bf16.gmra.mrb[0].mxu0 %v664
    %v1138 = vpop.f32.mrb[0].mxu0
    %v1139 = vadd.f32 0.0, %v1138
    %v1140 = vpop.f32.mrb[0].mxu0
    %v1141 = vpop.f32.mrb[0].mxu0
    %v1142 = vadd.f32 0.0, %v1141
    %v1143 = vpop.f32.mrb[0].mxu0
    %1144 = vmatprep.mubr.bf16.mxu0 0
    %1145 = vmatmul.mubr.bf16.gmra.mrb[0].mxu0 %v665
    %v1146 = vpop.f32.mrb[0].mxu0
    %v1147 = vadd.f32 0.0, %v1146
    %v1148 = vpop.f32.mrb[0].mxu0
    %v1149 = vpop.f32.mrb[0].mxu0
    %v1150 = vadd.f32 0.0, %v1149
    %v1151 = vpop.f32.mrb[0].mxu0
    %1152 = vmatprep.mubr.bf16.mxu0 0
    %1153 = vmatmul.mubr.bf16.gmra.mrb[0].mxu0 %v666
    %v1154 = vpop.f32.mrb[0].mxu0
    %v1155 = vadd.f32 0.0, %v1154
    %v1156 = vpop.f32.mrb[0].mxu0
    %v1157 = vpop.f32.mrb[0].mxu0
    %v1158 = vadd.f32 0.0, %v1157
    %v1159 = vpop.f32.mrb[0].mxu0
    %1160 = vmatprep.mubr.bf16.mxu0 0
    %1161 = vmatmul.mubr.bf16.gmra.mrb[0].mxu0 %v667
    %v1162 = vpop.f32.mrb[0].mxu0
    %v1163 = vadd.f32 0.0, %v1162
    %v1164 = vpop.f32.mrb[0].mxu0
    %v1165 = vpop.f32.mrb[0].mxu0
    %v1166 = vadd.f32 0.0, %v1165
    %v1167 = vpop.f32.mrb[0].mxu0
    %1168 = vmatprep.mubr.bf16.mxu0 0
    %1169 = vmatmul.mubr.bf16.gmra.mrb[0].mxu0 %v668
    %v1170 = vpop.f32.mrb[0].mxu0
    %v1171 = vadd.f32 0.0, %v1170
    %v1172 = vpop.f32.mrb[0].mxu0
    %v1173 = vpop.f32.mrb[0].mxu0
    %v1174 = vadd.f32 0.0, %v1173
    %v1175 = vpop.f32.mrb[0].mxu0
    %1176 = vmatprep.mubr.bf16.mxu0 0
    %1177 = vmatmul.mubr.bf16.gmra.mrb[0].mxu0 %v669
    %v1178 = vpop.f32.mrb[0].mxu0
    %v1179 = vadd.f32 0.0, %v1178
    %v1180 = vpop.f32.mrb[0].mxu0
    %v1181 = vpop.f32.mrb[0].mxu0
    %v1182 = vadd.f32 0.0, %v1181
    %v1183 = vpop.f32.mrb[0].mxu0
    %1184 = vmatprep.mubr.bf16.mxu0 0
    %1185 = vmatmul.mubr.bf16.gmra.mrb[0].mxu0 %v670
    %v1186 = vpop.f32.mrb[0].mxu0
    %v1187 = vadd.f32 0.0, %v1186
    %v1188 = vpop.f32.mrb[0].mxu0
    %v1189 = vpop.f32.mrb[0].mxu0
    %v1190 = vadd.f32 0.0, %v1189
    %v1191 = vpop.f32.mrb[0].mxu0
    %1192 = vmatprep.mubr.bf16.mxu0 0
    %1193 = vmatmul.mubr.bf16.gmra.mrb[0].mxu0 %v671
    %v1194 = vpop.f32.mrb[0].mxu0
    %v1195 = vadd.f32 0.0, %v1194
    %v1196 = vpop.f32.mrb[0].mxu0
    %v1197 = vpop.f32.mrb[0].mxu0
    %v1198 = vadd.f32 0.0, %v1197
    %v1199 = vpop.f32.mrb[0].mxu0
    %1200 = vmatprep.mubr.bf16.mxu0 0
    %1201 = vmatmul.mubr.bf16.gmra.mrb[0].mxu0 %v672
    %v1202 = vpop.f32.mrb[0].mxu0
    %v1203 = vadd.f32 0.0, %v1202
    %v1204 = vpop.f32.mrb[0].mxu0
    %v1205 = vpop.f32.mrb[0].mxu0
    %v1206 = vadd.f32 0.0, %v1205
    %v1207 = vpop.f32.mrb[0].mxu0
    %1208 = vmatprep.mubr.bf16.mxu0 0
    %1209 = vmatmul.mubr.bf16.gmra.mrb[0].mxu0 %v673
    %v1210 = vpop.f32.mrb[0].mxu0
    %v1211 = vadd.f32 0.0, %v1210
    %v1212 = vpop.f32.mrb[0].mxu0
    %v1213 = vpop.f32.mrb[0].mxu0
    %v1214 = vadd.f32 0.0, %v1213
    %v1215 = vpop.f32.mrb[0].mxu0
    %1216 = vmatprep.mubr.bf16.mxu0 0
    %1217 = vmatmul.mubr.bf16.gmra.mrb[0].mxu0 %v674
    %v1218 = vpop.f32.mrb[0].mxu0
    %v1219 = vadd.f32 0.0, %v1218
    %v1220 = vpop.f32.mrb[0].mxu0
    %v1221 = vpop.f32.mrb[0].mxu0
    %v1222 = vadd.f32 0.0, %v1221
    %v1223 = vpop.f32.mrb[0].mxu0
    %1224 = vmatprep.mubr.bf16.mxu0 0
    %1225 = vmatmul.mubr.bf16.gmra.mrb[0].mxu0 %v675
    %v1226 = vpop.f32.mrb[0].mxu0
    %v1227 = vadd.f32 0.0, %v1226
    %v1228 = vpop.f32.mrb[0].mxu0
    %v1229 = vpop.f32.mrb[0].mxu0
    %v1230 = vadd.f32 0.0, %v1229
    %v1231 = vpop.f32.mrb[0].mxu0
    %1232 = vmatprep.mubr.bf16.mxu0 0
    %1233 = vmatmul.mubr.bf16.gmra.mrb[0].mxu0 %v676
    %v1234 = vpop.f32.mrb[0].mxu0
    %v1235 = vadd.f32 0.0, %v1234
    %v1236 = vpop.f32.mrb[0].mxu0
    %v1237 = vpop.f32.mrb[0].mxu0
    %v1238 = vadd.f32 0.0, %v1237
    %v1239 = vpop.f32.mrb[0].mxu0
    %1240 = vmatprep.mubr.bf16.mxu0 0
    %1241 = vmatmul.mubr.bf16.gmra.mrb[0].mxu0 %v677
    %v1242 = vpop.f32.mrb[0].mxu0
    %v1243 = vadd.f32 0.0, %v1242
    %v1244 = vpop.f32.mrb[0].mxu0
    %v1245 = vpop.f32.mrb[0].mxu0
    %v1246 = vadd.f32 0.0, %v1245
    %v1247 = vpop.f32.mrb[0].mxu0
    %1248 = vmatprep.mubr.bf16.mxu0 0
    %1249 = vmatmul.mubr.bf16.gmra.mrb[0].mxu0 %v678
    %v1250 = vpop.f32.mrb[0].mxu0
    %v1251 = vadd.f32 0.0, %v1250
    %v1252 = vpop.f32.mrb[0].mxu0
    %v1253 = vpop.f32.mrb[0].mxu0
    %v1254 = vadd.f32 0.0, %v1253
    %v1255 = vpop.f32.mrb[0].mxu0
    %1256 = vmatprep.mubr.bf16.mxu0 0
    %1257 = vmatmul.mubr.bf16.gmra.mrb[0].mxu0 %v679
    %v1258 = vpop.f32.mrb[0].mxu0
    %v1259 = vadd.f32 0.0, %v1258
    %v1260 = vpop.f32.mrb[0].mxu0
    %v1261 = vpop.f32.mrb[0].mxu0
    %v1262 = vadd.f32 0.0, %v1261
    %v1263 = vpop.f32.mrb[0].mxu0
    %1264 = vmatprep.mubr.bf16.mxu0 0
    %1265 = vmatmul.mubr.bf16.gmra.mrb[0].mxu0 %v680
    %v1266 = vpop.f32.mrb[0].mxu0
    %v1267 = vadd.f32 0.0, %v1266
    %v1268 = vpop.f32.mrb[0].mxu0
    %v1269 = vpop.f32.mrb[0].mxu0
    %v1270 = vadd.f32 0.0, %v1269
    %v1271 = vpop.f32.mrb[0].mxu0
    %1272 = vmatprep.mubr.bf16.mxu0 0
    %1273 = vmatmul.mubr.bf16.gmra.mrb[0].mxu0 %v681
    %v1274 = vpop.f32.mrb[0].mxu0
    %v1275 = vadd.f32 0.0, %v1274
    %v1276 = vpop.f32.mrb[0].mxu0
    %v1277 = vpop.f32.mrb[0].mxu0
    %v1278 = vadd.f32 0.0, %v1277
    %v1279 = vpop.f32.mrb[0].mxu0
    %1280 = vmatprep.mubr.bf16.mxu0 0
    %1281 = vmatmul.mubr.bf16.gmra.mrb[0].mxu0 %v682
    %v1282 = vpop.f32.mrb[0].mxu0
    %v1283 = vadd.f32 0.0, %v1282
    %v1284 = vpop.f32.mrb[0].mxu0
    %v1285 = vpop.f32.mrb[0].mxu0
    %v1286 = vadd.f32 0.0, %v1285
    %v1287 = vpop.f32.mrb[0].mxu0
    %1288 = vmatprep.mubr.bf16.mxu0 0
    %1289 = vmatmul.mubr.bf16.gmra.mrb[0].mxu0 %v683
    %v1290 = vpop.f32.mrb[0].mxu0
    %v1291 = vadd.f32 0.0, %v1290
    %v1292 = vpop.f32.mrb[0].mxu0
    %v1293 = vpop.f32.mrb[0].mxu0
    %v1294 = vadd.f32 0.0, %v1293
    %v1295 = vpop.f32.mrb[0].mxu0
    %1296 = vmatprep.mubr.bf16.mxu0 0
    %1297 = vmatmul.mubr.bf16.gmra.mrb[0].mxu0 %v684
    %v1298 = vpop.f32.mrb[0].mxu0
    %v1299 = vadd.f32 0.0, %v1298
    %v1300 = vpop.f32.mrb[0].mxu0
    %v1301 = vpop.f32.mrb[0].mxu0
    %v1302 = vadd.f32 0.0, %v1301
    %v1303 = vpop.f32.mrb[0].mxu0
    %1304 = vmatprep.mubr.bf16.mxu0 0
    %1305 = vmatmul.mubr.bf16.gmra.mrb[0].mxu0 %v685
    %v1306 = vpop.f32.mrb[0].mxu0
    %v1307 = vadd.f32 0.0, %v1306
    %v1308 = vpop.f32.mrb[0].mxu0
    %v1309 = vpop.f32.mrb[0].mxu0
    %v1310 = vadd.f32 0.0, %v1309
    %v1311 = vpop.f32.mrb[0].mxu0
    %1312 = vmatprep.mubr.bf16.mxu0 0
    %1313 = vmatmul.mubr.bf16.gmra.mrb[0].mxu0 %v686
    %v1314 = vpop.f32.mrb[0].mxu0
    %v1315 = vadd.f32 0.0, %v1314
    %v1316 = vpop.f32.mrb[0].mxu0
    %v1317 = vpop.f32.mrb[0].mxu0
    %v1318 = vadd.f32 0.0, %v1317
    %v1319 = vpop.f32.mrb[0].mxu0
    %1320 = vmatprep.mubr.bf16.mxu0 0
    %1321 = vmatmul.mubr.bf16.gmra.mrb[0].mxu0 %v687
    %v1322 = vpop.f32.mrb[0].mxu0
    %v1323 = vadd.f32 0.0, %v1322
    %v1324 = vpop.f32.mrb[0].mxu0
    %v1325 = vpop.f32.mrb[0].mxu0
    %v1326 = vadd.f32 0.0, %v1325
    %v1327 = vpop.f32.mrb[0].mxu0
    %1328 = vmatprep.mubr.bf16.mxu0 0
    %1329 = vmatmul.mubr.bf16.gmra.mrb[0].mxu0 %v688
    %v1330 = vpop.f32.mrb[0].mxu0
    %v1331 = vadd.f32 0.0, %v1330
    %v1332 = vpop.f32.mrb[0].mxu0
    %v1333 = vpop.f32.mrb[0].mxu0
    %v1334 = vadd.f32 0.0, %v1333
    %v1335 = vpop.f32.mrb[0].mxu0
    %1336 = vmatprep.mubr.bf16.mxu0 0
    %1337 = vmatmul.mubr.bf16.gmra.mrb[0].mxu0 %v689
    %v1338 = vpop.f32.mrb[0].mxu0
    %v1339 = vadd.f32 0.0, %v1338
    %v1340 = vpop.f32.mrb[0].mxu0
    %v1341 = vpop.f32.mrb[0].mxu0
    %v1342 = vadd.f32 0.0, %v1341
    %v1343 = vpop.f32.mrb[0].mxu0
    %1344 = vmatprep.mubr.bf16.mxu0 0
    %1345 = vmatmul.mubr.bf16.gmra.mrb[0].mxu0 %v690
    %v1346 = vpop.f32.mrb[0].mxu0
    %v1347 = vadd.f32 0.0, %v1346
    %v1348 = vpop.f32.mrb[0].mxu0
    %v1349 = vpop.f32.mrb[0].mxu0
    %v1350 = vadd.f32 0.0, %v1349
    %v1351 = vpop.f32.mrb[0].mxu0
    %1352 = vmatprep.mubr.bf16.mxu0 0
    %1353 = vmatmul.mubr.bf16.gmra.mrb[0].mxu0 %v691
    %v1354 = vpop.f32.mrb[0].mxu0
    %v1355 = vadd.f32 0.0, %v1354
    %v1356 = vpop.f32.mrb[0].mxu0
    %v1357 = vpop.f32.mrb[0].mxu0
    %v1358 = vadd.f32 0.0, %v1357
    %v1359 = vpop.f32.mrb[0].mxu0
    %1360 = vmatprep.mubr.bf16.mxu0 0
    %1361 = vmatmul.mubr.bf16.gmra.mrb[0].mxu0 %v692
    %v1362 = vpop.f32.mrb[0].mxu0
    %v1363 = vadd.f32 0.0, %v1362
    %v1364 = vpop.f32.mrb[0].mxu0
    %v1365 = vpop.f32.mrb[0].mxu0
    %v1366 = vadd.f32 0.0, %v1365
    %v1367 = vpop.f32.mrb[0].mxu0
    %1368 = vmatprep.mubr.bf16.mxu0 0
    %1369 = vmatmul.mubr.bf16.gmra.mrb[0].mxu0 %v693
    %v1370 = vpop.f32.mrb[0].mxu0
    %v1371 = vadd.f32 0.0, %v1370
    %v1372 = vpop.f32.mrb[0].mxu0
    %v1373 = vpop.f32.mrb[0].mxu0
    %v1374 = vadd.f32 0.0, %v1373
    %v1375 = vpop.f32.mrb[0].mxu0
    %1376 = vmatprep.mubr.bf16.mxu0 0
    %1377 = vmatmul.mubr.bf16.gmra.mrb[0].mxu0 %v694
    %v1378 = vpop.f32.mrb[0].mxu0
    %v1379 = vadd.f32 0.0, %v1378
    %v1380 = vpop.f32.mrb[0].mxu0
    %v1381 = vpop.f32.mrb[0].mxu0
    %v1382 = vadd.f32 0.0, %v1381
    %v1383 = vpop.f32.mrb[0].mxu0
    %1384 = vmatprep.mubr.bf16.mxu0 0
    %1385 = vmatmul.mubr.bf16.gmra.mrb[0].mxu0 %v695
    %v1386 = vpop.f32.mrb[0].mxu0
    %v1387 = vadd.f32 0.0, %v1386
    %v1388 = vpop.f32.mrb[0].mxu0
    %v1389 = vpop.f32.mrb[0].mxu0
    %v1390 = vadd.f32 0.0, %v1389
    %v1391 = vpop.f32.mrb[0].mxu0
    %1392 = vmatprep.mubr.bf16.mxu0 0
    %1393 = vmatmul.mubr.bf16.gmra.mrb[0].mxu0 %v696
    %v1394 = vpop.f32.mrb[0].mxu0
    %v1395 = vadd.f32 0.0, %v1394
    %v1396 = vpop.f32.mrb[0].mxu0
    %v1397 = vpop.f32.mrb[0].mxu0
    %v1398 = vadd.f32 0.0, %v1397
    %v1399 = vpop.f32.mrb[0].mxu0
    %1400 = vmatprep.mubr.bf16.mxu0 0
    %1401 = vmatmul.mubr.bf16.gmra.mrb[0].mxu0 %v697
    %v1402 = vpop.f32.mrb[0].mxu0
    %v1403 = vadd.f32 0.0, %v1402
    %v1404 = vpop.f32.mrb[0].mxu0
    %v1405 = vpop.f32.mrb[0].mxu0
    %v1406 = vadd.f32 0.0, %v1405
    %v1407 = vpop.f32.mrb[0].mxu0
    %1408 = vmatprep.mubr.bf16.mxu0 0
    %1409 = vmatmul.mubr.bf16.gmra.mrb[0].mxu0 %v698
    %v1410 = vpop.f32.mrb[0].mxu0
    %v1411 = vadd.f32 0.0, %v1410
    %v1412 = vpop.f32.mrb[0].mxu0
    %v1413 = vpop.f32.mrb[0].mxu0
    %v1414 = vadd.f32 0.0, %v1413
    %v1415 = vpop.f32.mrb[0].mxu0
    %1416 = vmatprep.mubr.bf16.mxu0 0
    %1417 = vmatmul.mubr.bf16.gmra.mrb[0].mxu0 %v699
    %v1418 = vpop.f32.mrb[0].mxu0
    %v1419 = vadd.f32 0.0, %v1418
    %v1420 = vpop.f32.mrb[0].mxu0
    %v1421 = vpop.f32.mrb[0].mxu0
    %v1422 = vadd.f32 0.0, %v1421
    %v1423 = vpop.f32.mrb[0].mxu0
    %1424 = vmatprep.mubr.bf16.mxu0 0
    %1425 = vmatmul.mubr.bf16.gmra.mrb[0].mxu0 %v700
    %v1426 = vpop.f32.mrb[0].mxu0
    %v1427 = vadd.f32 0.0, %v1426
    %v1428 = vpop.f32.mrb[0].mxu0
    %v1429 = vpop.f32.mrb[0].mxu0
    %v1430 = vadd.f32 0.0, %v1429
    %v1431 = vpop.f32.mrb[0].mxu0
    %1432 = vmatprep.mubr.bf16.mxu0 0
    %1433 = vmatmul.mubr.bf16.gmra.mrb[0].mxu0 %v701
    %v1434 = vpop.f32.mrb[0].mxu0
    %v1435 = vadd.f32 0.0, %v1434
    %v1436 = vpop.f32.mrb[0].mxu0
    %v1437 = vpop.f32.mrb[0].mxu0
    %v1438 = vadd.f32 0.0, %v1437
    %v1439 = vpop.f32.mrb[0].mxu0
    %1440 = vmatprep.mubr.bf16.mxu0 0
    %1441 = vmatmul.mubr.bf16.gmra.mrb[0].mxu0 %v702
    %v1442 = vpop.f32.mrb[0].mxu0
    %v1443 = vadd.f32 0.0, %v1442
    %v1444 = vpop.f32.mrb[0].mxu0
    %v1445 = vpop.f32.mrb[0].mxu0
    %v1446 = vadd.f32 0.0, %v1445
    %v1447 = vpop.f32.mrb[0].mxu0
    %1448 = vmatprep.mubr.bf16.mxu0 0
    %1449 = vmatmul.mubr.bf16.gmra.mrb[0].mxu0 %v703
    %v1450 = vpop.f32.mrb[0].mxu0
    %v1451 = vadd.f32 0.0, %v1450
    %v1452 = vpop.f32.mrb[0].mxu0
    %v1453 = vpop.f32.mrb[0].mxu0
    %v1454 = vadd.f32 0.0, %v1453
    %v1455 = vpop.f32.mrb[0].mxu0
    %1456 = vmatprep.mubr.bf16.mxu0 0
    %1457 = vmatmul.mubr.bf16.gmra.mrb[0].mxu0 %v704
    %v1458 = vpop.f32.mrb[0].mxu0
    %v1459 = vadd.f32 0.0, %v1458
    %v1460 = vpop.f32.mrb[0].mxu0
    %v1461 = vpop.f32.mrb[0].mxu0
    %v1462 = vadd.f32 0.0, %v1461
    %v1463 = vpop.f32.mrb[0].mxu0
    %1464 = vmatprep.mubr.bf16.mxu0 0
    %1465 = vmatmul.mubr.bf16.gmra.mrb[0].mxu0 %v705
    %v1466 = vpop.f32.mrb[0].mxu0
    %v1467 = vadd.f32 0.0, %v1466
    %v1468 = vpop.f32.mrb[0].mxu0
    %v1469 = vpop.f32.mrb[0].mxu0
    %v1470 = vadd.f32 0.0, %v1469
    %v1471 = vpop.f32.mrb[0].mxu0
    %1472 = vmatprep.mubr.bf16.mxu0 0
    %1473 = vmatmul.mubr.bf16.gmra.mrb[0].mxu0 %v706
    %v1474 = vpop.f32.mrb[0].mxu0
    %v1475 = vadd.f32 0.0, %v1474
    %v1476 = vpop.f32.mrb[0].mxu0
    %v1477 = vpop.f32.mrb[0].mxu0
    %v1478 = vadd.f32 0.0, %v1477
    %v1479 = vpop.f32.mrb[0].mxu0
    %1480 = vmatprep.mubr.bf16.mxu0 0
    %1481 = vmatmul.mubr.bf16.gmra.mrb[0].mxu0 %v707
    %v1482 = vpop.f32.mrb[0].mxu0
    %v1483 = vadd.f32 0.0, %v1482
    %v1484 = vpop.f32.mrb[0].mxu0
    %v1485 = vpop.f32.mrb[0].mxu0
    %v1486 = vadd.f32 0.0, %v1485
    %v1487 = vpop.f32.mrb[0].mxu0
    %1488 = vmatprep.mubr.bf16.mxu0 0
    %1489 = vmatmul.mubr.bf16.gmra.mrb[0].mxu0 %v708
    %v1490 = vpop.f32.mrb[0].mxu0
    %v1491 = vadd.f32 0.0, %v1490
    %v1492 = vpop.f32.mrb[0].mxu0
    %v1493 = vpop.f32.mrb[0].mxu0
    %v1494 = vadd.f32 0.0, %v1493
    %v1495 = vpop.f32.mrb[0].mxu0
    %1496 = vmatprep.mubr.bf16.mxu0 0
    %1497 = vmatmul.mubr.bf16.gmra.mrb[0].mxu0 %v709
    %v1498 = vpop.f32.mrb[0].mxu0
    %v1499 = vadd.f32 0.0, %v1498
    %v1500 = vpop.f32.mrb[0].mxu0
    %v1501 = vpop.f32.mrb[0].mxu0
    %v1502 = vadd.f32 0.0, %v1501
    %v1503 = vpop.f32.mrb[0].mxu0
    %1504 = vmatprep.mubr.bf16.mxu0 0
    %1505 = vmatmul.mubr.bf16.gmra.mrb[0].mxu0 %v710
    %v1506 = vpop.f32.mrb[0].mxu0
    %v1507 = vadd.f32 0.0, %v1506
    %v1508 = vpop.f32.mrb[0].mxu0
    %v1509 = vpop.f32.mrb[0].mxu0
    %v1510 = vadd.f32 0.0, %v1509
    %v1511 = vpop.f32.mrb[0].mxu0
    %1512 = vmatprep.mubr.bf16.mxu0 0
    %1513 = vmatmul.mubr.bf16.gmra.mrb[0].mxu0 %v711
    %v1514 = vpop.f32.mrb[0].mxu0
    %v1515 = vadd.f32 0.0, %v1514
    %v1516 = vpop.f32.mrb[0].mxu0
    %v1517 = vpop.f32.mrb[0].mxu0
    %v1518 = vadd.f32 0.0, %v1517
    %v1519 = vpop.f32.mrb[0].mxu0
    %1520 = vmatprep.mubr.bf16.mxu0 0
    %1521 = vmatmul.mubr.bf16.gmra.mrb[0].mxu0 %v712
    %v1522 = vpop.f32.mrb[0].mxu0
    %v1523 = vadd.f32 0.0, %v1522
    %v1524 = vpop.f32.mrb[0].mxu0
    %v1525 = vpop.f32.mrb[0].mxu0
    %v1526 = vadd.f32 0.0, %v1525
    %v1527 = vpop.f32.mrb[0].mxu0
    %1528 = vmatprep.mubr.bf16.mxu0 0
    %1529 = vmatmul.mubr.bf16.gmra.mrb[0].mxu0 %v713
    %v1530 = vpop.f32.mrb[0].mxu0
    %v1531 = vadd.f32 0.0, %v1530
    %v1532 = vpop.f32.mrb[0].mxu0
    %v1533 = vpop.f32.mrb[0].mxu0
    %v1534 = vadd.f32 0.0, %v1533
    %v1535 = vpop.f32.mrb[0].mxu0
    %1536 = vmatprep.mubr.bf16.mxu0 0
    %1537 = vmatmul.mubr.bf16.gmra.mrb[0].mxu0 %v714
    %v1538 = vpop.f32.mrb[0].mxu0
    %v1539 = vadd.f32 0.0, %v1538
    %v1540 = vpop.f32.mrb[0].mxu0
    %v1541 = vpop.f32.mrb[0].mxu0
    %v1542 = vadd.f32 0.0, %v1541
    %v1543 = vpop.f32.mrb[0].mxu0
    %1544 = vmatprep.mubr.bf16.mxu0 0
    %1545 = vmatmul.mubr.bf16.gmra.mrb[0].mxu0 %v715
    %v1546 = vpop.f32.mrb[0].mxu0
    %v1547 = vadd.f32 0.0, %v1546
    %v1548 = vpop.f32.mrb[0].mxu0
    %v1549 = vpop.f32.mrb[0].mxu0
    %v1550 = vadd.f32 0.0, %v1549
    %v1551 = vpop.f32.mrb[0].mxu0
    %1552 = vmatprep.mubr.bf16.mxu0 0
    %1553 = vmatmul.mubr.bf16.gmra.mrb[0].mxu0 %v716
    %v1554 = vpop.f32.mrb[0].mxu0
    %v1555 = vadd.f32 0.0, %v1554
    %v1556 = vpop.f32.mrb[0].mxu0
    %v1557 = vpop.f32.mrb[0].mxu0
    %v1558 = vadd.f32 0.0, %v1557
    %v1559 = vpop.f32.mrb[0].mxu0
    %1560 = vmatprep.mubr.bf16.mxu0 0
    %1561 = vmatmul.mubr.bf16.gmra.mrb[0].mxu0 %v717
    %v1562 = vpop.f32.mrb[0].mxu0
    %v1563 = vadd.f32 0.0, %v1562
    %v1564 = vpop.f32.mrb[0].mxu0
    %v1565 = vpop.f32.mrb[0].mxu0
    %v1566 = vadd.f32 0.0, %v1565
    %v1567 = vpop.f32.mrb[0].mxu0
    %1568 = vmatprep.mubr.bf16.mxu0 0
    %1569 = vmatmul.mubr.bf16.gmra.mrb[0].mxu0 %v718
    %v1570 = vpop.f32.mrb[0].mxu0
    %v1571 = vadd.f32 0.0, %v1570
    %v1572 = vpop.f32.mrb[0].mxu0
    %v1573 = vpop.f32.mrb[0].mxu0
    %v1574 = vadd.f32 0.0, %v1573
    %v1575 = vpop.f32.mrb[0].mxu0
    %1576 = vmatprep.mubr.bf16.mxu0 0
    %1577 = vmatmul.mubr.bf16.gmra.mrb[0].mxu0 %v719
    %v1578 = vpop.f32.mrb[0].mxu0
    %v1579 = vadd.f32 0.0, %v1578
    %v1580 = vpop.f32.mrb[0].mxu0
    %v1581 = vpop.f32.mrb[0].mxu0
    %v1582 = vadd.f32 0.0, %v1581
    %v1583 = vpop.f32.mrb[0].mxu0
    %1584 = vmatprep.mubr.bf16.mxu0 0
    %1585 = vmatmul.mubr.bf16.gmra.mrb[0].mxu0 %v720
    %v1586 = vpop.f32.mrb[0].mxu0
    %v1587 = vadd.f32 0.0, %v1586
    %v1588 = vpop.f32.mrb[0].mxu0
    %v1589 = vpop.f32.mrb[0].mxu0
    %v1590 = vadd.f32 0.0, %v1589
    %v1591 = vpop.f32.mrb[0].mxu0
    %1592 = vmatprep.mubr.bf16.mxu0 0
    %1593 = vmatmul.mubr.bf16.gmra.mrb[0].mxu0 %v721
    %v1594 = vpop.f32.mrb[0].mxu0
    %v1595 = vadd.f32 0.0, %v1594
    %v1596 = vpop.f32.mrb[0].mxu0
    %v1597 = vpop.f32.mrb[0].mxu0
    %v1598 = vadd.f32 0.0, %v1597
    %v1599 = vpop.f32.mrb[0].mxu0
    %1600 = vmatprep.mubr.bf16.mxu0 0
    %1601 = vmatmul.mubr.bf16.gmra.mrb[0].mxu0 %v722
    %v1602 = vpop.f32.mrb[0].mxu0
    %v1603 = vadd.f32 0.0, %v1602
    %v1604 = vpop.f32.mrb[0].mxu0
    %v1605 = vpop.f32.mrb[0].mxu0
    %v1606 = vadd.f32 0.0, %v1605
    %v1607 = vpop.f32.mrb[0].mxu0
    %1608 = vmatprep.mubr.bf16.mxu0 0
    %1609 = vmatmul.mubr.bf16.gmra.mrb[0].mxu0 %v723
    %v1610 = vpop.f32.mrb[0].mxu0
    %v1611 = vadd.f32 0.0, %v1610
    %v1612 = vpop.f32.mrb[0].mxu0
    %v1613 = vpop.f32.mrb[0].mxu0
    %v1614 = vadd.f32 0.0, %v1613
    %v1615 = vpop.f32.mrb[0].mxu0
    %1616 = vmatprep.mubr.bf16.mxu0 0
    %1617 = vmatmul.mubr.bf16.gmra.mrb[0].mxu0 %v724
    %v1618 = vpop.f32.mrb[0].mxu0
    %v1619 = vadd.f32 0.0, %v1618
    %v1620 = vpop.f32.mrb[0].mxu0
    %v1621 = vpop.f32.mrb[0].mxu0
    %v1622 = vadd.f32 0.0, %v1621
    %v1623 = vpop.f32.mrb[0].mxu0
    %1624 = vmatprep.mubr.bf16.mxu0 0
    %1625 = vmatmul.mubr.bf16.gmra.mrb[0].mxu0 %v725
    %v1626 = vpop.f32.mrb[0].mxu0
    %v1627 = vadd.f32 0.0, %v1626
    %v1628 = vpop.f32.mrb[0].mxu0
    %v1629 = vpop.f32.mrb[0].mxu0
    %v1630 = vadd.f32 0.0, %v1629
    %v1631 = vpop.f32.mrb[0].mxu0
    %1632 = vmatprep.mubr.bf16.mxu0 0
    %1633 = vmatmul.mubr.bf16.gmra.mrb[0].mxu0 %v726
    %v1634 = vpop.f32.mrb[0].mxu0
    %v1635 = vadd.f32 0.0, %v1634
    %v1636 = vpop.f32.mrb[0].mxu0
    %v1637 = vpop.f32.mrb[0].mxu0
    %v1638 = vadd.f32 0.0, %v1637
    %v1639 = vpop.f32.mrb[0].mxu0
    %1640 = vmatprep.mubr.bf16.mxu0 0
    %1641 = vmatmul.mubr.bf16.gmra.mrb[0].mxu0 %v727
    %v1642 = vpop.f32.mrb[0].mxu0
    %v1643 = vadd.f32 0.0, %v1642
    %v1644 = vpop.f32.mrb[0].mxu0
    %v1645 = vpop.f32.mrb[0].mxu0
    %v1646 = vadd.f32 0.0, %v1645
    %v1647 = vpop.f32.mrb[0].mxu0
    %1648 = vmatprep.mubr.bf16.mxu0 0
    %1649 = vmatmul.mubr.bf16.gmra.mrb[0].mxu0 %v728
    %v1650 = vpop.f32.mrb[0].mxu0
    %v1651 = vadd.f32 0.0, %v1650
    %v1652 = vpop.f32.mrb[0].mxu0
    %v1653 = vpop.f32.mrb[0].mxu0
    %v1654 = vadd.f32 0.0, %v1653
    %v1655 = vpop.f32.mrb[0].mxu0
    %1656 = vmatprep.mubr.bf16.mxu0 0
    %1657 = vmatmul.mubr.bf16.gmra.mrb[0].mxu0 %v729
    %v1658 = vpop.f32.mrb[0].mxu0
    %v1659 = vadd.f32 0.0, %v1658
    %v1660 = vpop.f32.mrb[0].mxu0
    %v1661 = vpop.f32.mrb[0].mxu0
    %v1662 = vadd.f32 0.0, %v1661
    %v1663 = vpop.f32.mrb[0].mxu0
    %1664 = vmatprep.mubr.bf16.mxu0 0
    %1665 = vmatmul.mubr.bf16.gmra.mrb[0].mxu0 %v730
    %v1666 = vpop.f32.mrb[0].mxu0
    %v1667 = vadd.f32 0.0, %v1666
    %v1668 = vpop.f32.mrb[0].mxu0
    %v1669 = vpop.f32.mrb[0].mxu0
    %v1670 = vadd.f32 0.0, %v1669
    %v1671 = vpop.f32.mrb[0].mxu0
    %1672 = vmatprep.mubr.bf16.mxu0 0
    %1673 = vmatmul.mubr.bf16.gmra.mrb[0].mxu0 %v731
    %v1674 = vpop.f32.mrb[0].mxu0
    %v1675 = vadd.f32 0.0, %v1674
    %v1676 = vpop.f32.mrb[0].mxu0
    %v1677 = vpop.f32.mrb[0].mxu0
    %v1678 = vadd.f32 0.0, %v1677
    %v1679 = vpop.f32.mrb[0].mxu0
    %1680 = vmatprep.mubr.bf16.mxu0 0
    %1681 = vmatmul.mubr.bf16.gmra.mrb[0].mxu0 %v732
    %v1682 = vpop.f32.mrb[0].mxu0
    %v1683 = vadd.f32 0.0, %v1682
    %v1684 = vpop.f32.mrb[0].mxu0
    %v1685 = vpop.f32.mrb[0].mxu0
    %v1686 = vadd.f32 0.0, %v1685
    %v1687 = vpop.f32.mrb[0].mxu0
    %1688 = vmatprep.mubr.bf16.mxu0 0
    %1689 = vmatmul.mubr.bf16.gmra.mrb[0].mxu0 %v733
    %v1690 = vpop.f32.mrb[0].mxu0
    %v1691 = vadd.f32 0.0, %v1690
    %v1692 = vpop.f32.mrb[0].mxu0
    %v1693 = vpop.f32.mrb[0].mxu0
    %v1694 = vadd.f32 0.0, %v1693
    %v1695 = vpop.f32.mrb[0].mxu0
    %1696 = vdwg.mxu0
    %v1697 = vld [vmem:[%s2] sm:$0x1]
    %v1698 = vld [vmem:[%s3] sm:$0x1]
    %vm1699 = vcmask 261120
    %v1700 = vsel %vm1699, %v915, 0.0
    %v1701 = vsel %vm1699, %v918, 0.0
    %v1702 = vadd.f32 %v1700, %v1701
    %v1703 = vsel %vm1699, %v923, 0.0
    %v1704 = vadd.f32 %v1702, %v1703
    %v1705 = vsel %vm1699, %v926, 0.0
    %v1706 = vadd.f32 %v1704, %v1705
    %v1707 = vsel %vm1699, %v931, 0.0
    %v1708 = vadd.f32 %v1706, %v1707
    %v1709 = vsel %vm1699, %v934, 0.0
    %v1710 = vadd.f32 %v1708, %v1709
    %v1711 = vsel %vm1699, %v939, 0.0
    %v1712 = vadd.f32 %v1710, %v1711
    %v1713 = vsel %vm1699, %v942, 0.0
    %v1714 = vadd.f32 %v1712, %v1713
    %v1715 = vsel %vm1699, %v947, 0.0
    %v1716 = vadd.f32 %v1714, %v1715
    %v1717 = vsel %vm1699, %v950, 0.0
    %v1718 = vadd.f32 %v1716, %v1717
    %v1719 = vsel %vm1699, %v955, 0.0
    %v1720 = vadd.f32 %v1718, %v1719
    %v1721 = vsel %vm1699, %v958, 0.0
    %v1722 = vadd.f32 %v1720, %v1721
    %v1723 = vsel %vm1699, %v963, 0.0
    %v1724 = vadd.f32 %v1722, %v1723
    %v1725 = vsel %vm1699, %v966, 0.0
    %v1726 = vadd.f32 %v1724, %v1725
    %v1727 = vsel %vm1699, %v971, 0.0
    %v1728 = vadd.f32 %v1726, %v1727
    %v1729 = vsel %vm1699, %v974, 0.0
    %v1730 = vadd.f32 %v1728, %v1729
    %v1731 = vsel %vm1699, %v979, 0.0
    %v1732 = vadd.f32 %v1730, %v1731
    %v1733 = vsel %vm1699, %v982, 0.0
    %v1734 = vadd.f32 %v1732, %v1733
    %v1735 = vsel %vm1699, %v987, 0.0
    %v1736 = vadd.f32 %v1734, %v1735
    %v1737 = vsel %vm1699, %v990, 0.0
    %v1738 = vadd.f32 %v1736, %v1737
    %v1739 = vsel %vm1699, %v995, 0.0
    %v1740 = vadd.f32 %v1738, %v1739
    %v1741 = vsel %vm1699, %v998, 0.0
    %v1742 = vadd.f32 %v1740, %v1741
    %v1743 = vsel %vm1699, %v1003, 0.0
    %v1744 = vadd.f32 %v1742, %v1743
    %v1745 = vsel %vm1699, %v1006, 0.0
    %v1746 = vadd.f32 %v1744, %v1745
    %v1747 = vsel %vm1699, %v1011, 0.0
    %v1748 = vadd.f32 %v1746, %v1747
    %v1749 = vsel %vm1699, %v1014, 0.0
    %v1750 = vadd.f32 %v1748, %v1749
    %v1751 = vsel %vm1699, %v1019, 0.0
    %v1752 = vadd.f32 %v1750, %v1751
    %v1753 = vsel %vm1699, %v1022, 0.0
    %v1754 = vadd.f32 %v1752, %v1753
    %v1755 = vsel %vm1699, %v1027, 0.0
    %v1756 = vadd.f32 %v1754, %v1755
    %v1757 = vsel %vm1699, %v1030, 0.0
    %v1758 = vadd.f32 %v1756, %v1757
    %v1759 = vsel %vm1699, %v1035, 0.0
    %v1760 = vadd.f32 %v1758, %v1759
    %v1761 = vsel %vm1699, %v1038, 0.0
    %v1762 = vadd.f32 %v1760, %v1761
    %v1763 = vsel %vm1699, %v1043, 0.0
    %v1764 = vadd.f32 %v1762, %v1763
    %v1765 = vsel %vm1699, %v1046, 0.0
    %v1766 = vadd.f32 %v1764, %v1765
    %v1767 = vsel %vm1699, %v1051, 0.0
    %v1768 = vadd.f32 %v1766, %v1767
    %v1769 = vsel %vm1699, %v1054, 0.0
    %v1770 = vadd.f32 %v1768, %v1769
    %v1771 = vsel %vm1699, %v1059, 0.0
    %v1772 = vadd.f32 %v1770, %v1771
    %v1773 = vsel %vm1699, %v1062, 0.0
    %v1774 = vadd.f32 %v1772, %v1773
    %v1775 = vsel %vm1699, %v1067, 0.0
    %v1776 = vadd.f32 %v1774, %v1775
    %v1777 = vsel %vm1699, %v1070, 0.0
    %v1778 = vadd.f32 %v1776, %v1777
    %v1779 = vsel %vm1699, %v1075, 0.0
    %v1780 = vadd.f32 %v1778, %v1779
    %v1781 = vsel %vm1699, %v1078, 0.0
    %v1782 = vadd.f32 %v1780, %v1781
    %v1783 = vsel %vm1699, %v1083, 0.0
    %v1784 = vadd.f32 %v1782, %v1783
    %v1785 = vsel %vm1699, %v1086, 0.0
    %v1786 = vadd.f32 %v1784, %v1785
    %v1787 = vsel %vm1699, %v1091, 0.0
    %v1788 = vadd.f32 %v1786, %v1787
    %v1789 = vsel %vm1699, %v1094, 0.0
    %v1790 = vadd.f32 %v1788, %v1789
    %v1791 = vsel %vm1699, %v1099, 0.0
    %v1792 = vadd.f32 %v1790, %v1791
    %v1793 = vsel %vm1699, %v1102, 0.0
    %v1794 = vadd.f32 %v1792, %v1793
    %v1795 = vsel %vm1699, %v1107, 0.0
    %v1796 = vadd.f32 %v1794, %v1795
    %v1797 = vsel %vm1699, %v1110, 0.0
    %v1798 = vadd.f32 %v1796, %v1797
    %v1799 = vsel %vm1699, %v1115, 0.0
    %v1800 = vadd.f32 %v1798, %v1799
    %v1801 = vsel %vm1699, %v1118, 0.0
    %v1802 = vadd.f32 %v1800, %v1801
    %v1803 = vsel %vm1699, %v1123, 0.0
    %v1804 = vadd.f32 %v1802, %v1803
    %v1805 = vsel %vm1699, %v1126, 0.0
    %v1806 = vadd.f32 %v1804, %v1805
    %v1807 = vsel %vm1699, %v1131, 0.0
    %v1808 = vadd.f32 %v1806, %v1807
    %v1809 = vsel %vm1699, %v1134, 0.0
    %v1810 = vadd.f32 %v1808, %v1809
    %v1811 = vsel %vm1699, %v1139, 0.0
    %v1812 = vadd.f32 %v1810, %v1811
    %v1813 = vsel %vm1699, %v1142, 0.0
    %v1814 = vadd.f32 %v1812, %v1813
    %v1815 = vsel %vm1699, %v1147, 0.0
    %v1816 = vadd.f32 %v1814, %v1815
    %v1817 = vsel %vm1699, %v1150, 0.0
    %v1818 = vadd.f32 %v1816, %v1817
    %v1819 = vsel %vm1699, %v1155, 0.0
    %v1820 = vadd.f32 %v1818, %v1819
    %v1821 = vsel %vm1699, %v1158, 0.0
    %v1822 = vadd.f32 %v1820, %v1821
    %v1823 = vsel %vm1699, %v1163, 0.0
    %v1824 = vadd.f32 %v1822, %v1823
    %v1825 = vsel %vm1699, %v1166, 0.0
    %v1826 = vadd.f32 %v1824, %v1825
    %v1827 = vsel %vm1699, %v1171, 0.0
    %v1828 = vadd.f32 %v1826, %v1827
    %v1829 = vsel %vm1699, %v1174, 0.0
    %v1830 = vadd.f32 %v1828, %v1829
    %v1831 = vsel %vm1699, %v1179, 0.0
    %v1832 = vadd.f32 %v1830, %v1831
    %v1833 = vsel %vm1699, %v1182, 0.0
    %v1834 = vadd.f32 %v1832, %v1833
    %v1835 = vsel %vm1699, %v1187, 0.0
    %v1836 = vadd.f32 %v1834, %v1835
    %v1837 = vsel %vm1699, %v1190, 0.0
    %v1838 = vadd.f32 %v1836, %v1837
    %v1839 = vsel %vm1699, %v1195, 0.0
    %v1840 = vadd.f32 %v1838, %v1839
    %v1841 = vsel %vm1699, %v1198, 0.0
    %v1842 = vadd.f32 %v1840, %v1841
    %v1843 = vsel %vm1699, %v1203, 0.0
    %v1844 = vadd.f32 %v1842, %v1843
    %v1845 = vsel %vm1699, %v1206, 0.0
    %v1846 = vadd.f32 %v1844, %v1845
    %v1847 = vsel %vm1699, %v1211, 0.0
    %v1848 = vadd.f32 %v1846, %v1847
    %v1849 = vsel %vm1699, %v1214, 0.0
    %v1850 = vadd.f32 %v1848, %v1849
    %v1851 = vsel %vm1699, %v1219, 0.0
    %v1852 = vadd.f32 %v1850, %v1851
    %v1853 = vsel %vm1699, %v1222, 0.0
    %v1854 = vadd.f32 %v1852, %v1853
    %v1855 = vsel %vm1699, %v1227, 0.0
    %v1856 = vadd.f32 %v1854, %v1855
    %v1857 = vsel %vm1699, %v1230, 0.0
    %v1858 = vadd.f32 %v1856, %v1857
    %v1859 = vsel %vm1699, %v1235, 0.0
    %v1860 = vadd.f32 %v1858, %v1859
    %v1861 = vsel %vm1699, %v1238, 0.0
    %v1862 = vadd.f32 %v1860, %v1861
    %v1863 = vsel %vm1699, %v1243, 0.0
    %v1864 = vadd.f32 %v1862, %v1863
    %v1865 = vsel %vm1699, %v1246, 0.0
    %v1866 = vadd.f32 %v1864, %v1865
    %v1867 = vsel %vm1699, %v1251, 0.0
    %v1868 = vadd.f32 %v1866, %v1867
    %v1869 = vsel %vm1699, %v1254, 0.0
    %v1870 = vadd.f32 %v1868, %v1869
    %v1871 = vsel %vm1699, %v1259, 0.0
    %v1872 = vadd.f32 %v1870, %v1871
    %v1873 = vsel %vm1699, %v1262, 0.0
    %v1874 = vadd.f32 %v1872, %v1873
    %v1875 = vsel %vm1699, %v1267, 0.0
    %v1876 = vadd.f32 %v1874, %v1875
    %v1877 = vsel %vm1699, %v1270, 0.0
    %v1878 = vadd.f32 %v1876, %v1877
    %v1879 = vsel %vm1699, %v1275, 0.0
    %v1880 = vadd.f32 %v1878, %v1879
    %v1881 = vsel %vm1699, %v1278, 0.0
    %v1882 = vadd.f32 %v1880, %v1881
    %v1883 = vsel %vm1699, %v1283, 0.0
    %v1884 = vadd.f32 %v1882, %v1883
    %v1885 = vsel %vm1699, %v1286, 0.0
    %v1886 = vadd.f32 %v1884, %v1885
    %v1887 = vsel %vm1699, %v1291, 0.0
    %v1888 = vadd.f32 %v1886, %v1887
    %v1889 = vsel %vm1699, %v1294, 0.0
    %v1890 = vadd.f32 %v1888, %v1889
    %v1891 = vsel %vm1699, %v1299, 0.0
    %v1892 = vadd.f32 %v1890, %v1891
    %v1893 = vsel %vm1699, %v1302, 0.0
    %v1894 = vadd.f32 %v1892, %v1893
    %v1895 = vsel %vm1699, %v1307, 0.0
    %v1896 = vadd.f32 %v1894, %v1895
    %v1897 = vsel %vm1699, %v1310, 0.0
    %v1898 = vadd.f32 %v1896, %v1897
    %v1899 = vsel %vm1699, %v1315, 0.0
    %v1900 = vadd.f32 %v1898, %v1899
    %v1901 = vsel %vm1699, %v1318, 0.0
    %v1902 = vadd.f32 %v1900, %v1901
    %v1903 = vsel %vm1699, %v1323, 0.0
    %v1904 = vadd.f32 %v1902, %v1903
    %v1905 = vsel %vm1699, %v1326, 0.0
    %v1906 = vadd.f32 %v1904, %v1905
    %v1907 = vsel %vm1699, %v1331, 0.0
    %v1908 = vadd.f32 %v1906, %v1907
    %v1909 = vsel %vm1699, %v1334, 0.0
    %v1910 = vadd.f32 %v1908, %v1909
    %v1911 = vsel %vm1699, %v1339, 0.0
    %v1912 = vadd.f32 %v1910, %v1911
    %v1913 = vsel %vm1699, %v1342, 0.0
    %v1914 = vadd.f32 %v1912, %v1913
    %v1915 = vsel %vm1699, %v1347, 0.0
    %v1916 = vadd.f32 %v1914, %v1915
    %v1917 = vsel %vm1699, %v1350, 0.0
    %v1918 = vadd.f32 %v1916, %v1917
    %v1919 = vsel %vm1699, %v1355, 0.0
    %v1920 = vadd.f32 %v1918, %v1919
    %v1921 = vsel %vm1699, %v1358, 0.0
    %v1922 = vadd.f32 %v1920, %v1921
    %v1923 = vsel %vm1699, %v1363, 0.0
    %v1924 = vadd.f32 %v1922, %v1923
    %v1925 = vsel %vm1699, %v1366, 0.0
    %v1926 = vadd.f32 %v1924, %v1925
    %v1927 = vsel %vm1699, %v1371, 0.0
    %v1928 = vadd.f32 %v1926, %v1927
    %v1929 = vsel %vm1699, %v1374, 0.0
    %v1930 = vadd.f32 %v1928, %v1929
    %v1931 = vsel %vm1699, %v1379, 0.0
    %v1932 = vadd.f32 %v1930, %v1931
    %v1933 = vsel %vm1699, %v1382, 0.0
    %v1934 = vadd.f32 %v1932, %v1933
    %v1935 = vsel %vm1699, %v1387, 0.0
    %v1936 = vadd.f32 %v1934, %v1935
    %v1937 = vsel %vm1699, %v1390, 0.0
    %v1938 = vadd.f32 %v1936, %v1937
    %v1939 = vsel %vm1699, %v1395, 0.0
    %v1940 = vadd.f32 %v1938, %v1939
    %v1941 = vsel %vm1699, %v1398, 0.0
    %v1942 = vadd.f32 %v1940, %v1941
    %v1943 = vsel %vm1699, %v1403, 0.0
    %v1944 = vadd.f32 %v1942, %v1943
    %v1945 = vsel %vm1699, %v1406, 0.0
    %v1946 = vadd.f32 %v1944, %v1945
    %v1947 = vsel %vm1699, %v1411, 0.0
    %v1948 = vadd.f32 %v1946, %v1947
    %v1949 = vsel %vm1699, %v1414, 0.0
    %v1950 = vadd.f32 %v1948, %v1949
    %v1951 = vsel %vm1699, %v1419, 0.0
    %v1952 = vadd.f32 %v1950, %v1951
    %v1953 = vsel %vm1699, %v1422, 0.0
    %v1954 = vadd.f32 %v1952, %v1953
    %v1955 = vsel %vm1699, %v1427, 0.0
    %v1956 = vadd.f32 %v1954, %v1955
    %v1957 = vsel %vm1699, %v1430, 0.0
    %v1958 = vadd.f32 %v1956, %v1957
    %v1959 = vsel %vm1699, %v1435, 0.0
    %v1960 = vadd.f32 %v1958, %v1959
    %v1961 = vsel %vm1699, %v1438, 0.0
    %v1962 = vadd.f32 %v1960, %v1961
    %v1963 = vsel %vm1699, %v1443, 0.0
    %v1964 = vadd.f32 %v1962, %v1963
    %v1965 = vsel %vm1699, %v1446, 0.0
    %v1966 = vadd.f32 %v1964, %v1965
    %v1967 = vsel %vm1699, %v1451, 0.0
    %v1968 = vadd.f32 %v1966, %v1967
    %v1969 = vsel %vm1699, %v1454, 0.0
    %v1970 = vadd.f32 %v1968, %v1969
    %v1971 = vsel %vm1699, %v1459, 0.0
    %v1972 = vadd.f32 %v1970, %v1971
    %v1973 = vsel %vm1699, %v1462, 0.0
    %v1974 = vadd.f32 %v1972, %v1973
    %v1975 = vsel %vm1699, %v1467, 0.0
    %v1976 = vadd.f32 %v1974, %v1975
    %v1977 = vsel %vm1699, %v1470, 0.0
    %v1978 = vadd.f32 %v1976, %v1977
    %v1979 = vsel %vm1699, %v1475, 0.0
    %v1980 = vadd.f32 %v1978, %v1979
    %v1981 = vsel %vm1699, %v1478, 0.0
    %v1982 = vadd.f32 %v1980, %v1981
    %v1983 = vsel %vm1699, %v1483, 0.0
    %v1984 = vadd.f32 %v1982, %v1983
    %v1985 = vsel %vm1699, %v1486, 0.0
    %v1986 = vadd.f32 %v1984, %v1985
    %v1987 = vsel %vm1699, %v1491, 0.0
    %v1988 = vadd.f32 %v1986, %v1987
    %v1989 = vsel %vm1699, %v1494, 0.0
    %v1990 = vadd.f32 %v1988, %v1989
    %v1991 = vsel %vm1699, %v1499, 0.0
    %v1992 = vadd.f32 %v1990, %v1991
    %v1993 = vsel %vm1699, %v1502, 0.0
    %v1994 = vadd.f32 %v1992, %v1993
    %v1995 = vsel %vm1699, %v1507, 0.0
    %v1996 = vadd.f32 %v1994, %v1995
    %v1997 = vsel %vm1699, %v1510, 0.0
    %v1998 = vadd.f32 %v1996, %v1997
    %v1999 = vsel %vm1699, %v1515, 0.0
    %v2000 = vadd.f32 %v1998, %v1999
    %v2001 = vsel %vm1699, %v1518, 0.0
    %v2002 = vadd.f32 %v2000, %v2001
    %v2003 = vsel %vm1699, %v1523, 0.0
    %v2004 = vadd.f32 %v2002, %v2003
    %v2005 = vsel %vm1699, %v1526, 0.0
    %v2006 = vadd.f32 %v2004, %v2005
    %v2007 = vsel %vm1699, %v1531, 0.0
    %v2008 = vadd.f32 %v2006, %v2007
    %v2009 = vsel %vm1699, %v1534, 0.0
    %v2010 = vadd.f32 %v2008, %v2009
    %v2011 = vsel %vm1699, %v1539, 0.0
    %v2012 = vadd.f32 %v2010, %v2011
    %v2013 = vsel %vm1699, %v1542, 0.0
    %v2014 = vadd.f32 %v2012, %v2013
    %v2015 = vsel %vm1699, %v1547, 0.0
    %v2016 = vadd.f32 %v2014, %v2015
    %v2017 = vsel %vm1699, %v1550, 0.0
    %v2018 = vadd.f32 %v2016, %v2017
    %v2019 = vsel %vm1699, %v1555, 0.0
    %v2020 = vadd.f32 %v2018, %v2019
    %v2021 = vsel %vm1699, %v1558, 0.0
    %v2022 = vadd.f32 %v2020, %v2021
    %v2023 = vsel %vm1699, %v1563, 0.0
    %v2024 = vadd.f32 %v2022, %v2023
    %v2025 = vsel %vm1699, %v1566, 0.0
    %v2026 = vadd.f32 %v2024, %v2025
    %v2027 = vsel %vm1699, %v1571, 0.0
    %v2028 = vadd.f32 %v2026, %v2027
    %v2029 = vsel %vm1699, %v1574, 0.0
    %v2030 = vadd.f32 %v2028, %v2029
    %v2031 = vsel %vm1699, %v1579, 0.0
    %v2032 = vadd.f32 %v2030, %v2031
    %v2033 = vsel %vm1699, %v1582, 0.0
    %v2034 = vadd.f32 %v2032, %v2033
    %v2035 = vsel %vm1699, %v1587, 0.0
    %v2036 = vadd.f32 %v2034, %v2035
    %v2037 = vsel %vm1699, %v1590, 0.0
    %v2038 = vadd.f32 %v2036, %v2037
    %v2039 = vsel %vm1699, %v1595, 0.0
    %v2040 = vadd.f32 %v2038, %v2039
    %v2041 = vsel %vm1699, %v1598, 0.0
    %v2042 = vadd.f32 %v2040, %v2041
    %v2043 = vsel %vm1699, %v1603, 0.0
    %v2044 = vadd.f32 %v2042, %v2043
    %v2045 = vsel %vm1699, %v1606, 0.0
    %v2046 = vadd.f32 %v2044, %v2045
    %v2047 = vsel %vm1699, %v1611, 0.0
    %v2048 = vadd.f32 %v2046, %v2047
    %v2049 = vsel %vm1699, %v1614, 0.0
    %v2050 = vadd.f32 %v2048, %v2049
    %v2051 = vsel %vm1699, %v1619, 0.0
    %v2052 = vadd.f32 %v2050, %v2051
    %v2053 = vsel %vm1699, %v1622, 0.0
    %v2054 = vadd.f32 %v2052, %v2053
    %v2055 = vsel %vm1699, %v1627, 0.0
    %v2056 = vadd.f32 %v2054, %v2055
    %v2057 = vsel %vm1699, %v1630, 0.0
    %v2058 = vadd.f32 %v2056, %v2057
    %v2059 = vsel %vm1699, %v1635, 0.0
    %v2060 = vadd.f32 %v2058, %v2059
    %v2061 = vsel %vm1699, %v1638, 0.0
    %v2062 = vadd.f32 %v2060, %v2061
    %v2063 = vsel %vm1699, %v1643, 0.0
    %v2064 = vadd.f32 %v2062, %v2063
    %v2065 = vsel %vm1699, %v1646, 0.0
    %v2066 = vadd.f32 %v2064, %v2065
    %v2067 = vsel %vm1699, %v1651, 0.0
    %v2068 = vadd.f32 %v2066, %v2067
    %v2069 = vsel %vm1699, %v1654, 0.0
    %v2070 = vadd.f32 %v2068, %v2069
    %v2071 = vsel %vm1699, %v1659, 0.0
    %v2072 = vadd.f32 %v2070, %v2071
    %v2073 = vsel %vm1699, %v1662, 0.0
    %v2074 = vadd.f32 %v2072, %v2073
    %v2075 = vsel %vm1699, %v1667, 0.0
    %v2076 = vadd.f32 %v2074, %v2075
    %v2077 = vsel %vm1699, %v1670, 0.0
    %v2078 = vadd.f32 %v2076, %v2077
    %v2079 = vsel %vm1699, %v1675, 0.0
    %v2080 = vadd.f32 %v2078, %v2079
    %v2081 = vsel %vm1699, %v1678, 0.0
    %v2082 = vadd.f32 %v2080, %v2081
    %v2083 = vsel %vm1699, %v1683, 0.0
    %v2084 = vadd.f32 %v2082, %v2083
    %v2085 = vsel %vm1699, %v1686, 0.0
    %v2086 = vadd.f32 %v2084, %v2085
    %v2087 = vsel %vm1699, %v1691, 0.0
    %v2088 = vadd.f32 %v2086, %v2087
    %v2089 = vsel %vm1699, %v1694, 0.0
    %v2090 = vadd.f32 %v2088, %v2089
    %v2091 = vrot.slane %v2090, 4
    %v2092 = vadd.f32 %v2090, %v2091
    %v2093 = vrot.slane %v2092, 2
    %v2094 = vadd.f32 %v2092, %v2093
    %v2095 = vrot.slane %v2094, 1
    %v2096 = vadd.f32 %v2094, %v2095
    %v2097 = vmul.f32 %v915, %v915
    %v2098 = vmul.f32 %v918, %v918
    %v2099 = vmul.f32 %v923, %v923
    %v2100 = vmul.f32 %v926, %v926
    %v2101 = vmul.f32 %v931, %v931
    %v2102 = vmul.f32 %v934, %v934
    %v2103 = vmul.f32 %v939, %v939
    %v2104 = vmul.f32 %v942, %v942
    %v2105 = vmul.f32 %v947, %v947
    %v2106 = vmul.f32 %v950, %v950
    %v2107 = vmul.f32 %v955, %v955
    %v2108 = vmul.f32 %v958, %v958
    %v2109 = vmul.f32 %v963, %v963
    %v2110 = vmul.f32 %v966, %v966
    %v2111 = vmul.f32 %v971, %v971
    %v2112 = vmul.f32 %v974, %v974
    %v2113 = vmul.f32 %v979, %v979
    %v2114 = vmul.f32 %v982, %v982
    %v2115 = vmul.f32 %v987, %v987
    %v2116 = vmul.f32 %v990, %v990
    %v2117 = vmul.f32 %v995, %v995
    %v2118 = vmul.f32 %v998, %v998
    %v2119 = vmul.f32 %v1003, %v1003
    %v2120 = vmul.f32 %v1006, %v1006
    %v2121 = vmul.f32 %v1011, %v1011
    %v2122 = vmul.f32 %v1014, %v1014
    %v2123 = vmul.f32 %v1019, %v1019
    %v2124 = vmul.f32 %v1022, %v1022
    %v2125 = vmul.f32 %v1027, %v1027
    %v2126 = vmul.f32 %v1030, %v1030
    %v2127 = vmul.f32 %v1035, %v1035
    %v2128 = vmul.f32 %v1038, %v1038
    %v2129 = vmul.f32 %v1043, %v1043
    %v2130 = vmul.f32 %v1046, %v1046
    %v2131 = vmul.f32 %v1051, %v1051
    %v2132 = vmul.f32 %v1054, %v1054
    %v2133 = vmul.f32 %v1059, %v1059
    %v2134 = vmul.f32 %v1062, %v1062
    %v2135 = vmul.f32 %v1067, %v1067
    %v2136 = vmul.f32 %v1070, %v1070
    %v2137 = vmul.f32 %v1075, %v1075
    %v2138 = vmul.f32 %v1078, %v1078
    %v2139 = vmul.f32 %v1083, %v1083
    %v2140 = vmul.f32 %v1086, %v1086
    %v2141 = vmul.f32 %v1091, %v1091
    %v2142 = vmul.f32 %v1094, %v1094
    %v2143 = vmul.f32 %v1099, %v1099
    %v2144 = vmul.f32 %v1102, %v1102
    %v2145 = vmul.f32 %v1107, %v1107
    %v2146 = vmul.f32 %v1110, %v1110
    %v2147 = vmul.f32 %v1115, %v1115
    %v2148 = vmul.f32 %v1118, %v1118
    %v2149 = vmul.f32 %v1123, %v1123
    %v2150 = vmul.f32 %v1126, %v1126
    %v2151 = vmul.f32 %v1131, %v1131
    %v2152 = vmul.f32 %v1134, %v1134
    %v2153 = vmul.f32 %v1139, %v1139
    %v2154 = vmul.f32 %v1142, %v1142
    %v2155 = vmul.f32 %v1147, %v1147
    %v2156 = vmul.f32 %v1150, %v1150
    %v2157 = vmul.f32 %v1155, %v1155
    %v2158 = vmul.f32 %v1158, %v1158
    %v2159 = vmul.f32 %v1163, %v1163
    %v2160 = vmul.f32 %v1166, %v1166
    %v2161 = vmul.f32 %v1171, %v1171
    %v2162 = vmul.f32 %v1174, %v1174
    %v2163 = vmul.f32 %v1179, %v1179
    %v2164 = vmul.f32 %v1182, %v1182
    %v2165 = vmul.f32 %v1187, %v1187
    %v2166 = vmul.f32 %v1190, %v1190
    %v2167 = vmul.f32 %v1195, %v1195
    %v2168 = vmul.f32 %v1198, %v1198
    %v2169 = vmul.f32 %v1203, %v1203
    %v2170 = vmul.f32 %v1206, %v1206
    %v2171 = vmul.f32 %v1211, %v1211
    %v2172 = vmul.f32 %v1214, %v1214
    %v2173 = vmul.f32 %v1219, %v1219
    %v2174 = vmul.f32 %v1222, %v1222
    %v2175 = vmul.f32 %v1227, %v1227
    %v2176 = vmul.f32 %v1230, %v1230
    %v2177 = vmul.f32 %v1235, %v1235
    %v2178 = vmul.f32 %v1238, %v1238
    %v2179 = vmul.f32 %v1243, %v1243
    %v2180 = vmul.f32 %v1246, %v1246
    %v2181 = vmul.f32 %v1251, %v1251
    %v2182 = vmul.f32 %v1254, %v1254
    %v2183 = vmul.f32 %v1259, %v1259
    %v2184 = vmul.f32 %v1262, %v1262
    %v2185 = vmul.f32 %v1267, %v1267
    %v2186 = vmul.f32 %v1270, %v1270
    %v2187 = vmul.f32 %v1275, %v1275
    %v2188 = vmul.f32 %v1278, %v1278
    %v2189 = vmul.f32 %v1283, %v1283
    %v2190 = vmul.f32 %v1286, %v1286
    %v2191 = vmul.f32 %v1291, %v1291
    %v2192 = vmul.f32 %v1294, %v1294
    %v2193 = vmul.f32 %v1299, %v1299
    %v2194 = vmul.f32 %v1302, %v1302
    %v2195 = vmul.f32 %v1307, %v1307
    %v2196 = vmul.f32 %v1310, %v1310
    %v2197 = vmul.f32 %v1315, %v1315
    %v2198 = vmul.f32 %v1318, %v1318
    %v2199 = vmul.f32 %v1323, %v1323
    %v2200 = vmul.f32 %v1326, %v1326
    %v2201 = vmul.f32 %v1331, %v1331
    %v2202 = vmul.f32 %v1334, %v1334
    %v2203 = vmul.f32 %v1339, %v1339
    %v2204 = vmul.f32 %v1342, %v1342
    %v2205 = vmul.f32 %v1347, %v1347
    %v2206 = vmul.f32 %v1350, %v1350
    %v2207 = vmul.f32 %v1355, %v1355
    %v2208 = vmul.f32 %v1358, %v1358
    %v2209 = vmul.f32 %v1363, %v1363
    %v2210 = vmul.f32 %v1366, %v1366
    %v2211 = vmul.f32 %v1371, %v1371
    %v2212 = vmul.f32 %v1374, %v1374
    %v2213 = vmul.f32 %v1379, %v1379
    %v2214 = vmul.f32 %v1382, %v1382
    %v2215 = vmul.f32 %v1387, %v1387
    %v2216 = vmul.f32 %v1390, %v1390
    %v2217 = vmul.f32 %v1395, %v1395
    %v2218 = vmul.f32 %v1398, %v1398
    %v2219 = vmul.f32 %v1403, %v1403
    %v2220 = vmul.f32 %v1406, %v1406
    %v2221 = vmul.f32 %v1411, %v1411
    %v2222 = vmul.f32 %v1414, %v1414
    %v2223 = vmul.f32 %v1419, %v1419
    %v2224 = vmul.f32 %v1422, %v1422
    %v2225 = vmul.f32 %v1427, %v1427
    %v2226 = vmul.f32 %v1430, %v1430
    %v2227 = vmul.f32 %v1435, %v1435
    %v2228 = vmul.f32 %v1438, %v1438
    %v2229 = vmul.f32 %v1443, %v1443
    %v2230 = vmul.f32 %v1446, %v1446
    %v2231 = vmul.f32 %v1451, %v1451
    %v2232 = vmul.f32 %v1454, %v1454
    %v2233 = vmul.f32 %v1459, %v1459
    %v2234 = vmul.f32 %v1462, %v1462
    %v2235 = vmul.f32 %v1467, %v1467
    %v2236 = vmul.f32 %v1470, %v1470
    %v2237 = vmul.f32 %v1475, %v1475
    %v2238 = vmul.f32 %v1478, %v1478
    %v2239 = vmul.f32 %v1483, %v1483
    %v2240 = vmul.f32 %v1486, %v1486
    %v2241 = vmul.f32 %v1491, %v1491
    %v2242 = vmul.f32 %v1494, %v1494
    %v2243 = vmul.f32 %v1499, %v1499
    %v2244 = vmul.f32 %v1502, %v1502
    %v2245 = vmul.f32 %v1507, %v1507
    %v2246 = vmul.f32 %v1510, %v1510
    %v2247 = vmul.f32 %v1515, %v1515
    %v2248 = vmul.f32 %v1518, %v1518
    %v2249 = vmul.f32 %v1523, %v1523
    %v2250 = vmul.f32 %v1526, %v1526
    %v2251 = vmul.f32 %v1531, %v1531
    %v2252 = vmul.f32 %v1534, %v1534
    %v2253 = vmul.f32 %v1539, %v1539
    %v2254 = vmul.f32 %v1542, %v1542
    %v2255 = vmul.f32 %v1547, %v1547
    %v2256 = vmul.f32 %v1550, %v1550
    %v2257 = vmul.f32 %v1555, %v1555
    %v2258 = vmul.f32 %v1558, %v1558
    %v2259 = vmul.f32 %v1563, %v1563
    %v2260 = vmul.f32 %v1566, %v1566
    %v2261 = vmul.f32 %v1571, %v1571
    %v2262 = vmul.f32 %v1574, %v1574
    %v2263 = vmul.f32 %v1579, %v1579
    %v2264 = vmul.f32 %v1582, %v1582
    %v2265 = vmul.f32 %v1587, %v1587
    %v2266 = vmul.f32 %v1590, %v1590
    %v2267 = vmul.f32 %v1595, %v1595
    %v2268 = vmul.f32 %v1598, %v1598
    %v2269 = vmul.f32 %v1603, %v1603
    %v2270 = vmul.f32 %v1606, %v1606
    %v2271 = vmul.f32 %v1611, %v1611
    %v2272 = vmul.f32 %v1614, %v1614
    %v2273 = vmul.f32 %v1619, %v1619
    %v2274 = vmul.f32 %v1622, %v1622
    %v2275 = vmul.f32 %v1627, %v1627
    %v2276 = vmul.f32 %v1630, %v1630
    %v2277 = vmul.f32 %v1635, %v1635
    %v2278 = vmul.f32 %v1638, %v1638
    %v2279 = vmul.f32 %v1643, %v1643
    %v2280 = vmul.f32 %v1646, %v1646
    %v2281 = vmul.f32 %v1651, %v1651
    %v2282 = vmul.f32 %v1654, %v1654
    %v2283 = vmul.f32 %v1659, %v1659
    %v2284 = vmul.f32 %v1662, %v1662
    %v2285 = vmul.f32 %v1667, %v1667
    %v2286 = vmul.f32 %v1670, %v1670
    %v2287 = vmul.f32 %v1675, %v1675
    %v2288 = vmul.f32 %v1678, %v1678
    %v2289 = vmul.f32 %v1683, %v1683
    %v2290 = vmul.f32 %v1686, %v1686
    %v2291 = vmul.f32 %v1691, %v1691
    %v2292 = vmul.f32 %v1694, %v1694
    %v2293 = vsel %vm1699, %v2097, 0.0
    %v2294 = vsel %vm1699, %v2098, 0.0
    %v2295 = vadd.f32 %v2293, %v2294
    %v2296 = vsel %vm1699, %v2099, 0.0
    %v2297 = vadd.f32 %v2295, %v2296
    %v2298 = vsel %vm1699, %v2100, 0.0
    %v2299 = vadd.f32 %v2297, %v2298
    %v2300 = vsel %vm1699, %v2101, 0.0
    %v2301 = vadd.f32 %v2299, %v2300
    %v2302 = vsel %vm1699, %v2102, 0.0
    %v2303 = vadd.f32 %v2301, %v2302
    %v2304 = vsel %vm1699, %v2103, 0.0
    %v2305 = vadd.f32 %v2303, %v2304
    %v2306 = vsel %vm1699, %v2104, 0.0
    %v2307 = vadd.f32 %v2305, %v2306
    %v2308 = vsel %vm1699, %v2105, 0.0
    %v2309 = vadd.f32 %v2307, %v2308
    %v2310 = vsel %vm1699, %v2106, 0.0
    %v2311 = vadd.f32 %v2309, %v2310
    %v2312 = vsel %vm1699, %v2107, 0.0
    %v2313 = vadd.f32 %v2311, %v2312
    %v2314 = vsel %vm1699, %v2108, 0.0
    %v2315 = vadd.f32 %v2313, %v2314
    %v2316 = vsel %vm1699, %v2109, 0.0
    %v2317 = vadd.f32 %v2315, %v2316
    %v2318 = vsel %vm1699, %v2110, 0.0
    %v2319 = vadd.f32 %v2317, %v2318
    %v2320 = vsel %vm1699, %v2111, 0.0
    %v2321 = vadd.f32 %v2319, %v2320
    %v2322 = vsel %vm1699, %v2112, 0.0
    %v2323 = vadd.f32 %v2321, %v2322
    %v2324 = vsel %vm1699, %v2113, 0.0
    %v2325 = vadd.f32 %v2323, %v2324
    %v2326 = vsel %vm1699, %v2114, 0.0
    %v2327 = vadd.f32 %v2325, %v2326
    %v2328 = vsel %vm1699, %v2115, 0.0
    %v2329 = vadd.f32 %v2327, %v2328
    %v2330 = vsel %vm1699, %v2116, 0.0
    %v2331 = vadd.f32 %v2329, %v2330
    %v2332 = vsel %vm1699, %v2117, 0.0
    %v2333 = vadd.f32 %v2331, %v2332
    %v2334 = vsel %vm1699, %v2118, 0.0
    %v2335 = vadd.f32 %v2333, %v2334
    %v2336 = vsel %vm1699, %v2119, 0.0
    %v2337 = vadd.f32 %v2335, %v2336
    %v2338 = vsel %vm1699, %v2120, 0.0
    %v2339 = vadd.f32 %v2337, %v2338
    %v2340 = vsel %vm1699, %v2121, 0.0
    %v2341 = vadd.f32 %v2339, %v2340
    %v2342 = vsel %vm1699, %v2122, 0.0
    %v2343 = vadd.f32 %v2341, %v2342
    %v2344 = vsel %vm1699, %v2123, 0.0
    %v2345 = vadd.f32 %v2343, %v2344
    %v2346 = vsel %vm1699, %v2124, 0.0
    %v2347 = vadd.f32 %v2345, %v2346
    %v2348 = vsel %vm1699, %v2125, 0.0
    %v2349 = vadd.f32 %v2347, %v2348
    %v2350 = vsel %vm1699, %v2126, 0.0
    %v2351 = vadd.f32 %v2349, %v2350
    %v2352 = vsel %vm1699, %v2127, 0.0
    %v2353 = vadd.f32 %v2351, %v2352
    %v2354 = vsel %vm1699, %v2128, 0.0
    %v2355 = vadd.f32 %v2353, %v2354
    %v2356 = vsel %vm1699, %v2129, 0.0
    %v2357 = vadd.f32 %v2355, %v2356
    %v2358 = vsel %vm1699, %v2130, 0.0
    %v2359 = vadd.f32 %v2357, %v2358
    %v2360 = vsel %vm1699, %v2131, 0.0
    %v2361 = vadd.f32 %v2359, %v2360
    %v2362 = vsel %vm1699, %v2132, 0.0
    %v2363 = vadd.f32 %v2361, %v2362
    %v2364 = vsel %vm1699, %v2133, 0.0
    %v2365 = vadd.f32 %v2363, %v2364
    %v2366 = vsel %vm1699, %v2134, 0.0
    %v2367 = vadd.f32 %v2365, %v2366
    %v2368 = vsel %vm1699, %v2135, 0.0
    %v2369 = vadd.f32 %v2367, %v2368
    %v2370 = vsel %vm1699, %v2136, 0.0
    %v2371 = vadd.f32 %v2369, %v2370
    %v2372 = vsel %vm1699, %v2137, 0.0
    %v2373 = vadd.f32 %v2371, %v2372
    %v2374 = vsel %vm1699, %v2138, 0.0
    %v2375 = vadd.f32 %v2373, %v2374
    %v2376 = vsel %vm1699, %v2139, 0.0
    %v2377 = vadd.f32 %v2375, %v2376
    %v2378 = vsel %vm1699, %v2140, 0.0
    %v2379 = vadd.f32 %v2377, %v2378
    %v2380 = vsel %vm1699, %v2141, 0.0
    %v2381 = vadd.f32 %v2379, %v2380
    %v2382 = vsel %vm1699, %v2142, 0.0
    %v2383 = vadd.f32 %v2381, %v2382
    %v2384 = vsel %vm1699, %v2143, 0.0
    %v2385 = vadd.f32 %v2383, %v2384
    %v2386 = vsel %vm1699, %v2144, 0.0
    %v2387 = vadd.f32 %v2385, %v2386
    %v2388 = vsel %vm1699, %v2145, 0.0
    %v2389 = vadd.f32 %v2387, %v2388
    %v2390 = vsel %vm1699, %v2146, 0.0
    %v2391 = vadd.f32 %v2389, %v2390
    %v2392 = vsel %vm1699, %v2147, 0.0
    %v2393 = vadd.f32 %v2391, %v2392
    %v2394 = vsel %vm1699, %v2148, 0.0
    %v2395 = vadd.f32 %v2393, %v2394
    %v2396 = vsel %vm1699, %v2149, 0.0
    %v2397 = vadd.f32 %v2395, %v2396
    %v2398 = vsel %vm1699, %v2150, 0.0
    %v2399 = vadd.f32 %v2397, %v2398
    %v2400 = vsel %vm1699, %v2151, 0.0
    %v2401 = vadd.f32 %v2399, %v2400
    %v2402 = vsel %vm1699, %v2152, 0.0
    %v2403 = vadd.f32 %v2401, %v2402
    %v2404 = vsel %vm1699, %v2153, 0.0
    %v2405 = vadd.f32 %v2403, %v2404
    %v2406 = vsel %vm1699, %v2154, 0.0
    %v2407 = vadd.f32 %v2405, %v2406
    %v2408 = vsel %vm1699, %v2155, 0.0
    %v2409 = vadd.f32 %v2407, %v2408
    %v2410 = vsel %vm1699, %v2156, 0.0
    %v2411 = vadd.f32 %v2409, %v2410
    %v2412 = vsel %vm1699, %v2157, 0.0
    %v2413 = vadd.f32 %v2411, %v2412
    %v2414 = vsel %vm1699, %v2158, 0.0
    %v2415 = vadd.f32 %v2413, %v2414
    %v2416 = vsel %vm1699, %v2159, 0.0
    %v2417 = vadd.f32 %v2415, %v2416
    %v2418 = vsel %vm1699, %v2160, 0.0
    %v2419 = vadd.f32 %v2417, %v2418
    %v2420 = vsel %vm1699, %v2161, 0.0
    %v2421 = vadd.f32 %v2419, %v2420
    %v2422 = vsel %vm1699, %v2162, 0.0
    %v2423 = vadd.f32 %v2421, %v2422
    %v2424 = vsel %vm1699, %v2163, 0.0
    %v2425 = vadd.f32 %v2423, %v2424
    %v2426 = vsel %vm1699, %v2164, 0.0
    %v2427 = vadd.f32 %v2425, %v2426
    %v2428 = vsel %vm1699, %v2165, 0.0
    %v2429 = vadd.f32 %v2427, %v2428
    %v2430 = vsel %vm1699, %v2166, 0.0
    %v2431 = vadd.f32 %v2429, %v2430
    %v2432 = vsel %vm1699, %v2167, 0.0
    %v2433 = vadd.f32 %v2431, %v2432
    %v2434 = vsel %vm1699, %v2168, 0.0
    %v2435 = vadd.f32 %v2433, %v2434
    %v2436 = vsel %vm1699, %v2169, 0.0
    %v2437 = vadd.f32 %v2435, %v2436
    %v2438 = vsel %vm1699, %v2170, 0.0
    %v2439 = vadd.f32 %v2437, %v2438
    %v2440 = vsel %vm1699, %v2171, 0.0
    %v2441 = vadd.f32 %v2439, %v2440
    %v2442 = vsel %vm1699, %v2172, 0.0
    %v2443 = vadd.f32 %v2441, %v2442
    %v2444 = vsel %vm1699, %v2173, 0.0
    %v2445 = vadd.f32 %v2443, %v2444
    %v2446 = vsel %vm1699, %v2174, 0.0
    %v2447 = vadd.f32 %v2445, %v2446
    %v2448 = vsel %vm1699, %v2175, 0.0
    %v2449 = vadd.f32 %v2447, %v2448
    %v2450 = vsel %vm1699, %v2176, 0.0
    %v2451 = vadd.f32 %v2449, %v2450
    %v2452 = vsel %vm1699, %v2177, 0.0
    %v2453 = vadd.f32 %v2451, %v2452
    %v2454 = vsel %vm1699, %v2178, 0.0
    %v2455 = vadd.f32 %v2453, %v2454
    %v2456 = vsel %vm1699, %v2179, 0.0
    %v2457 = vadd.f32 %v2455, %v2456
    %v2458 = vsel %vm1699, %v2180, 0.0
    %v2459 = vadd.f32 %v2457, %v2458
    %v2460 = vsel %vm1699, %v2181, 0.0
    %v2461 = vadd.f32 %v2459, %v2460
    %v2462 = vsel %vm1699, %v2182, 0.0
    %v2463 = vadd.f32 %v2461, %v2462
    %v2464 = vsel %vm1699, %v2183, 0.0
    %v2465 = vadd.f32 %v2463, %v2464
    %v2466 = vsel %vm1699, %v2184, 0.0
    %v2467 = vadd.f32 %v2465, %v2466
    %v2468 = vsel %vm1699, %v2185, 0.0
    %v2469 = vadd.f32 %v2467, %v2468
    %v2470 = vsel %vm1699, %v2186, 0.0
    %v2471 = vadd.f32 %v2469, %v2470
    %v2472 = vsel %vm1699, %v2187, 0.0
    %v2473 = vadd.f32 %v2471, %v2472
    %v2474 = vsel %vm1699, %v2188, 0.0
    %v2475 = vadd.f32 %v2473, %v2474
    %v2476 = vsel %vm1699, %v2189, 0.0
    %v2477 = vadd.f32 %v2475, %v2476
    %v2478 = vsel %vm1699, %v2190, 0.0
    %v2479 = vadd.f32 %v2477, %v2478
    %v2480 = vsel %vm1699, %v2191, 0.0
    %v2481 = vadd.f32 %v2479, %v2480
    %v2482 = vsel %vm1699, %v2192, 0.0
    %v2483 = vadd.f32 %v2481, %v2482
    %v2484 = vsel %vm1699, %v2193, 0.0
    %v2485 = vadd.f32 %v2483, %v2484
    %v2486 = vsel %vm1699, %v2194, 0.0
    %v2487 = vadd.f32 %v2485, %v2486
    %v2488 = vsel %vm1699, %v2195, 0.0
    %v2489 = vadd.f32 %v2487, %v2488
    %v2490 = vsel %vm1699, %v2196, 0.0
    %v2491 = vadd.f32 %v2489, %v2490
    %v2492 = vsel %vm1699, %v2197, 0.0
    %v2493 = vadd.f32 %v2491, %v2492
    %v2494 = vsel %vm1699, %v2198, 0.0
    %v2495 = vadd.f32 %v2493, %v2494
    %v2496 = vsel %vm1699, %v2199, 0.0
    %v2497 = vadd.f32 %v2495, %v2496
    %v2498 = vsel %vm1699, %v2200, 0.0
    %v2499 = vadd.f32 %v2497, %v2498
    %v2500 = vsel %vm1699, %v2201, 0.0
    %v2501 = vadd.f32 %v2499, %v2500
    %v2502 = vsel %vm1699, %v2202, 0.0
    %v2503 = vadd.f32 %v2501, %v2502
    %v2504 = vsel %vm1699, %v2203, 0.0
    %v2505 = vadd.f32 %v2503, %v2504
    %v2506 = vsel %vm1699, %v2204, 0.0
    %v2507 = vadd.f32 %v2505, %v2506
    %v2508 = vsel %vm1699, %v2205, 0.0
    %v2509 = vadd.f32 %v2507, %v2508
    %v2510 = vsel %vm1699, %v2206, 0.0
    %v2511 = vadd.f32 %v2509, %v2510
    %v2512 = vsel %vm1699, %v2207, 0.0
    %v2513 = vadd.f32 %v2511, %v2512
    %v2514 = vsel %vm1699, %v2208, 0.0
    %v2515 = vadd.f32 %v2513, %v2514
    %v2516 = vsel %vm1699, %v2209, 0.0
    %v2517 = vadd.f32 %v2515, %v2516
    %v2518 = vsel %vm1699, %v2210, 0.0
    %v2519 = vadd.f32 %v2517, %v2518
    %v2520 = vsel %vm1699, %v2211, 0.0
    %v2521 = vadd.f32 %v2519, %v2520
    %v2522 = vsel %vm1699, %v2212, 0.0
    %v2523 = vadd.f32 %v2521, %v2522
    %v2524 = vsel %vm1699, %v2213, 0.0
    %v2525 = vadd.f32 %v2523, %v2524
    %v2526 = vsel %vm1699, %v2214, 0.0
    %v2527 = vadd.f32 %v2525, %v2526
    %v2528 = vsel %vm1699, %v2215, 0.0
    %v2529 = vadd.f32 %v2527, %v2528
    %v2530 = vsel %vm1699, %v2216, 0.0
    %v2531 = vadd.f32 %v2529, %v2530
    %v2532 = vsel %vm1699, %v2217, 0.0
    %v2533 = vadd.f32 %v2531, %v2532
    %v2534 = vsel %vm1699, %v2218, 0.0
    %v2535 = vadd.f32 %v2533, %v2534
    %v2536 = vsel %vm1699, %v2219, 0.0
    %v2537 = vadd.f32 %v2535, %v2536
    %v2538 = vsel %vm1699, %v2220, 0.0
    %v2539 = vadd.f32 %v2537, %v2538
    %v2540 = vsel %vm1699, %v2221, 0.0
    %v2541 = vadd.f32 %v2539, %v2540
    %v2542 = vsel %vm1699, %v2222, 0.0
    %v2543 = vadd.f32 %v2541, %v2542
    %v2544 = vsel %vm1699, %v2223, 0.0
    %v2545 = vadd.f32 %v2543, %v2544
    %v2546 = vsel %vm1699, %v2224, 0.0
    %v2547 = vadd.f32 %v2545, %v2546
    %v2548 = vsel %vm1699, %v2225, 0.0
    %v2549 = vadd.f32 %v2547, %v2548
    %v2550 = vsel %vm1699, %v2226, 0.0
    %v2551 = vadd.f32 %v2549, %v2550
    %v2552 = vsel %vm1699, %v2227, 0.0
    %v2553 = vadd.f32 %v2551, %v2552
    %v2554 = vsel %vm1699, %v2228, 0.0
    %v2555 = vadd.f32 %v2553, %v2554
    %v2556 = vsel %vm1699, %v2229, 0.0
    %v2557 = vadd.f32 %v2555, %v2556
    %v2558 = vsel %vm1699, %v2230, 0.0
    %v2559 = vadd.f32 %v2557, %v2558
    %v2560 = vsel %vm1699, %v2231, 0.0
    %v2561 = vadd.f32 %v2559, %v2560
    %v2562 = vsel %vm1699, %v2232, 0.0
    %v2563 = vadd.f32 %v2561, %v2562
    %v2564 = vsel %vm1699, %v2233, 0.0
    %v2565 = vadd.f32 %v2563, %v2564
    %v2566 = vsel %vm1699, %v2234, 0.0
    %v2567 = vadd.f32 %v2565, %v2566
    %v2568 = vsel %vm1699, %v2235, 0.0
    %v2569 = vadd.f32 %v2567, %v2568
    %v2570 = vsel %vm1699, %v2236, 0.0
    %v2571 = vadd.f32 %v2569, %v2570
    %v2572 = vsel %vm1699, %v2237, 0.0
    %v2573 = vadd.f32 %v2571, %v2572
    %v2574 = vsel %vm1699, %v2238, 0.0
    %v2575 = vadd.f32 %v2573, %v2574
    %v2576 = vsel %vm1699, %v2239, 0.0
    %v2577 = vadd.f32 %v2575, %v2576
    %v2578 = vsel %vm1699, %v2240, 0.0
    %v2579 = vadd.f32 %v2577, %v2578
    %v2580 = vsel %vm1699, %v2241, 0.0
    %v2581 = vadd.f32 %v2579, %v2580
    %v2582 = vsel %vm1699, %v2242, 0.0
    %v2583 = vadd.f32 %v2581, %v2582
    %v2584 = vsel %vm1699, %v2243, 0.0
    %v2585 = vadd.f32 %v2583, %v2584
    %v2586 = vsel %vm1699, %v2244, 0.0
    %v2587 = vadd.f32 %v2585, %v2586
    %v2588 = vsel %vm1699, %v2245, 0.0
    %v2589 = vadd.f32 %v2587, %v2588
    %v2590 = vsel %vm1699, %v2246, 0.0
    %v2591 = vadd.f32 %v2589, %v2590
    %v2592 = vsel %vm1699, %v2247, 0.0
    %v2593 = vadd.f32 %v2591, %v2592
    %v2594 = vsel %vm1699, %v2248, 0.0
    %v2595 = vadd.f32 %v2593, %v2594
    %v2596 = vsel %vm1699, %v2249, 0.0
    %v2597 = vadd.f32 %v2595, %v2596
    %v2598 = vsel %vm1699, %v2250, 0.0
    %v2599 = vadd.f32 %v2597, %v2598
    %v2600 = vsel %vm1699, %v2251, 0.0
    %v2601 = vadd.f32 %v2599, %v2600
    %v2602 = vsel %vm1699, %v2252, 0.0
    %v2603 = vadd.f32 %v2601, %v2602
    %v2604 = vsel %vm1699, %v2253, 0.0
    %v2605 = vadd.f32 %v2603, %v2604
    %v2606 = vsel %vm1699, %v2254, 0.0
    %v2607 = vadd.f32 %v2605, %v2606
    %v2608 = vsel %vm1699, %v2255, 0.0
    %v2609 = vadd.f32 %v2607, %v2608
    %v2610 = vsel %vm1699, %v2256, 0.0
    %v2611 = vadd.f32 %v2609, %v2610
    %v2612 = vsel %vm1699, %v2257, 0.0
    %v2613 = vadd.f32 %v2611, %v2612
    %v2614 = vsel %vm1699, %v2258, 0.0
    %v2615 = vadd.f32 %v2613, %v2614
    %v2616 = vsel %vm1699, %v2259, 0.0
    %v2617 = vadd.f32 %v2615, %v2616
    %v2618 = vsel %vm1699, %v2260, 0.0
    %v2619 = vadd.f32 %v2617, %v2618
    %v2620 = vsel %vm1699, %v2261, 0.0
    %v2621 = vadd.f32 %v2619, %v2620
    %v2622 = vsel %vm1699, %v2262, 0.0
    %v2623 = vadd.f32 %v2621, %v2622
    %v2624 = vsel %vm1699, %v2263, 0.0
    %v2625 = vadd.f32 %v2623, %v2624
    %v2626 = vsel %vm1699, %v2264, 0.0
    %v2627 = vadd.f32 %v2625, %v2626
    %v2628 = vsel %vm1699, %v2265, 0.0
    %v2629 = vadd.f32 %v2627, %v2628
    %v2630 = vsel %vm1699, %v2266, 0.0
    %v2631 = vadd.f32 %v2629, %v2630
    %v2632 = vsel %vm1699, %v2267, 0.0
    %v2633 = vadd.f32 %v2631, %v2632
    %v2634 = vsel %vm1699, %v2268, 0.0
    %v2635 = vadd.f32 %v2633, %v2634
    %v2636 = vsel %vm1699, %v2269, 0.0
    %v2637 = vadd.f32 %v2635, %v2636
    %v2638 = vsel %vm1699, %v2270, 0.0
    %v2639 = vadd.f32 %v2637, %v2638
    %v2640 = vsel %vm1699, %v2271, 0.0
    %v2641 = vadd.f32 %v2639, %v2640
    %v2642 = vsel %vm1699, %v2272, 0.0
    %v2643 = vadd.f32 %v2641, %v2642
    %v2644 = vsel %vm1699, %v2273, 0.0
    %v2645 = vadd.f32 %v2643, %v2644
    %v2646 = vsel %vm1699, %v2274, 0.0
    %v2647 = vadd.f32 %v2645, %v2646
    %v2648 = vsel %vm1699, %v2275, 0.0
    %v2649 = vadd.f32 %v2647, %v2648
    %v2650 = vsel %vm1699, %v2276, 0.0
    %v2651 = vadd.f32 %v2649, %v2650
    %v2652 = vsel %vm1699, %v2277, 0.0
    %v2653 = vadd.f32 %v2651, %v2652
    %v2654 = vsel %vm1699, %v2278, 0.0
    %v2655 = vadd.f32 %v2653, %v2654
    %v2656 = vsel %vm1699, %v2279, 0.0
    %v2657 = vadd.f32 %v2655, %v2656
    %v2658 = vsel %vm1699, %v2280, 0.0
    %v2659 = vadd.f32 %v2657, %v2658
    %v2660 = vsel %vm1699, %v2281, 0.0
    %v2661 = vadd.f32 %v2659, %v2660
    %v2662 = vsel %vm1699, %v2282, 0.0
    %v2663 = vadd.f32 %v2661, %v2662
    %v2664 = vsel %vm1699, %v2283, 0.0
    %v2665 = vadd.f32 %v2663, %v2664
    %v2666 = vsel %vm1699, %v2284, 0.0
    %v2667 = vadd.f32 %v2665, %v2666
    %v2668 = vsel %vm1699, %v2285, 0.0
    %v2669 = vadd.f32 %v2667, %v2668
    %v2670 = vsel %vm1699, %v2286, 0.0
    %v2671 = vadd.f32 %v2669, %v2670
    %v2672 = vsel %vm1699, %v2287, 0.0
    %v2673 = vadd.f32 %v2671, %v2672
    %v2674 = vsel %vm1699, %v2288, 0.0
    %v2675 = vadd.f32 %v2673, %v2674
    %v2676 = vsel %vm1699, %v2289, 0.0
    %v2677 = vadd.f32 %v2675, %v2676
    %v2678 = vsel %vm1699, %v2290, 0.0
    %v2679 = vadd.f32 %v2677, %v2678
    %v2680 = vsel %vm1699, %v2291, 0.0
    %v2681 = vadd.f32 %v2679, %v2680
    %v2682 = vsel %vm1699, %v2292, 0.0
    %v2683 = vadd.f32 %v2681, %v2682
    %v2684 = vrot.slane %v2683, 4
    %v2685 = vadd.f32 %v2683, %v2684
    %v2686 = vrot.slane %v2685, 2
    %v2687 = vadd.f32 %v2685, %v2686
    %v2688 = vrot.slane %v2687, 1
    %v2689 = vadd.f32 %v2687, %v2688
    %v2690 = vmul.f32 %v2096, 0.0006377551
    %v2691 = vmul.f32 %v2689, 0.0006377551
    %v2692 = vmul.f32 %v2690, %v2690
    %v2693 = vsub.f32 %v2691, %v2692
    %v2694 = vmax.f32 %v2693, 0.0
    %v2695 = vsub.f32 %v915, %v2690
    %v2696 = vsub.f32 %v918, %v2690
    %v2697 = vsub.f32 %v923, %v2690
    %v2698 = vsub.f32 %v926, %v2690
    %v2699 = vsub.f32 %v931, %v2690
    %v2700 = vsub.f32 %v934, %v2690
    %v2701 = vsub.f32 %v939, %v2690
    %v2702 = vsub.f32 %v942, %v2690
    %v2703 = vsub.f32 %v947, %v2690
    %v2704 = vsub.f32 %v950, %v2690
    %v2705 = vsub.f32 %v955, %v2690
    %v2706 = vsub.f32 %v958, %v2690
    %v2707 = vsub.f32 %v963, %v2690
    %v2708 = vsub.f32 %v966, %v2690
    %v2709 = vsub.f32 %v971, %v2690
    %v2710 = vsub.f32 %v974, %v2690
    %v2711 = vsub.f32 %v979, %v2690
    %v2712 = vsub.f32 %v982, %v2690
    %v2713 = vsub.f32 %v987, %v2690
    %v2714 = vsub.f32 %v990, %v2690
    %v2715 = vsub.f32 %v995, %v2690
    %v2716 = vsub.f32 %v998, %v2690
    %v2717 = vsub.f32 %v1003, %v2690
    %v2718 = vsub.f32 %v1006, %v2690
    %v2719 = vsub.f32 %v1011, %v2690
    %v2720 = vsub.f32 %v1014, %v2690
    %v2721 = vsub.f32 %v1019, %v2690
    %v2722 = vsub.f32 %v1022, %v2690
    %v2723 = vsub.f32 %v1027, %v2690
    %v2724 = vsub.f32 %v1030, %v2690
    %v2725 = vsub.f32 %v1035, %v2690
    %v2726 = vsub.f32 %v1038, %v2690
    %v2727 = vsub.f32 %v1043, %v2690
    %v2728 = vsub.f32 %v1046, %v2690
    %v2729 = vsub.f32 %v1051, %v2690
    %v2730 = vsub.f32 %v1054, %v2690
    %v2731 = vsub.f32 %v1059, %v2690
    %v2732 = vsub.f32 %v1062, %v2690
    %v2733 = vsub.f32 %v1067, %v2690
    %v2734 = vsub.f32 %v1070, %v2690
    %v2735 = vsub.f32 %v1075, %v2690
    %v2736 = vsub.f32 %v1078, %v2690
    %v2737 = vsub.f32 %v1083, %v2690
    %v2738 = vsub.f32 %v1086, %v2690
    %v2739 = vsub.f32 %v1091, %v2690
    %v2740 = vsub.f32 %v1094, %v2690
    %v2741 = vsub.f32 %v1099, %v2690
    %v2742 = vsub.f32 %v1102, %v2690
    %v2743 = vsub.f32 %v1107, %v2690
    %v2744 = vsub.f32 %v1110, %v2690
    %v2745 = vsub.f32 %v1115, %v2690
    %v2746 = vsub.f32 %v1118, %v2690
    %v2747 = vsub.f32 %v1123, %v2690
    %v2748 = vsub.f32 %v1126, %v2690
    %v2749 = vsub.f32 %v1131, %v2690
    %v2750 = vsub.f32 %v1134, %v2690
    %v2751 = vsub.f32 %v1139, %v2690
    %v2752 = vsub.f32 %v1142, %v2690
    %v2753 = vsub.f32 %v1147, %v2690
    %v2754 = vsub.f32 %v1150, %v2690
    %v2755 = vsub.f32 %v1155, %v2690
    %v2756 = vsub.f32 %v1158, %v2690
    %v2757 = vsub.f32 %v1163, %v2690
    %v2758 = vsub.f32 %v1166, %v2690
    %v2759 = vsub.f32 %v1171, %v2690
    %v2760 = vsub.f32 %v1174, %v2690
    %v2761 = vsub.f32 %v1179, %v2690
    %v2762 = vsub.f32 %v1182, %v2690
    %v2763 = vsub.f32 %v1187, %v2690
    %v2764 = vsub.f32 %v1190, %v2690
    %v2765 = vsub.f32 %v1195, %v2690
    %v2766 = vsub.f32 %v1198, %v2690
    %v2767 = vsub.f32 %v1203, %v2690
    %v2768 = vsub.f32 %v1206, %v2690
    %v2769 = vsub.f32 %v1211, %v2690
    %v2770 = vsub.f32 %v1214, %v2690
    %v2771 = vsub.f32 %v1219, %v2690
    %v2772 = vsub.f32 %v1222, %v2690
    %v2773 = vsub.f32 %v1227, %v2690
    %v2774 = vsub.f32 %v1230, %v2690
    %v2775 = vsub.f32 %v1235, %v2690
    %v2776 = vsub.f32 %v1238, %v2690
    %v2777 = vsub.f32 %v1243, %v2690
    %v2778 = vsub.f32 %v1246, %v2690
    %v2779 = vsub.f32 %v1251, %v2690
    %v2780 = vsub.f32 %v1254, %v2690
    %v2781 = vsub.f32 %v1259, %v2690
    %v2782 = vsub.f32 %v1262, %v2690
    %v2783 = vsub.f32 %v1267, %v2690
    %v2784 = vsub.f32 %v1270, %v2690
    %v2785 = vsub.f32 %v1275, %v2690
    %v2786 = vsub.f32 %v1278, %v2690
    %v2787 = vsub.f32 %v1283, %v2690
    %v2788 = vsub.f32 %v1286, %v2690
    %v2789 = vsub.f32 %v1291, %v2690
    %v2790 = vsub.f32 %v1294, %v2690
    %v2791 = vsub.f32 %v1299, %v2690
    %v2792 = vsub.f32 %v1302, %v2690
    %v2793 = vsub.f32 %v1307, %v2690
    %v2794 = vsub.f32 %v1310, %v2690
    %v2795 = vsub.f32 %v1315, %v2690
    %v2796 = vsub.f32 %v1318, %v2690
    %v2797 = vsub.f32 %v1323, %v2690
    %v2798 = vsub.f32 %v1326, %v2690
    %v2799 = vsub.f32 %v1331, %v2690
    %v2800 = vsub.f32 %v1334, %v2690
    %v2801 = vsub.f32 %v1339, %v2690
    %v2802 = vsub.f32 %v1342, %v2690
    %v2803 = vsub.f32 %v1347, %v2690
    %v2804 = vsub.f32 %v1350, %v2690
    %v2805 = vsub.f32 %v1355, %v2690
    %v2806 = vsub.f32 %v1358, %v2690
    %v2807 = vsub.f32 %v1363, %v2690
    %v2808 = vsub.f32 %v1366, %v2690
    %v2809 = vsub.f32 %v1371, %v2690
    %v2810 = vsub.f32 %v1374, %v2690
    %v2811 = vsub.f32 %v1379, %v2690
    %v2812 = vsub.f32 %v1382, %v2690
    %v2813 = vsub.f32 %v1387, %v2690
    %v2814 = vsub.f32 %v1390, %v2690
    %v2815 = vsub.f32 %v1395, %v2690
    %v2816 = vsub.f32 %v1398, %v2690
    %v2817 = vsub.f32 %v1403, %v2690
    %v2818 = vsub.f32 %v1406, %v2690
    %v2819 = vsub.f32 %v1411, %v2690
    %v2820 = vsub.f32 %v1414, %v2690
    %v2821 = vsub.f32 %v1419, %v2690
    %v2822 = vsub.f32 %v1422, %v2690
    %v2823 = vsub.f32 %v1427, %v2690
    %v2824 = vsub.f32 %v1430, %v2690
    %v2825 = vsub.f32 %v1435, %v2690
    %v2826 = vsub.f32 %v1438, %v2690
    %v2827 = vsub.f32 %v1443, %v2690
    %v2828 = vsub.f32 %v1446, %v2690
    %v2829 = vsub.f32 %v1451, %v2690
    %v2830 = vsub.f32 %v1454, %v2690
    %v2831 = vsub.f32 %v1459, %v2690
    %v2832 = vsub.f32 %v1462, %v2690
    %v2833 = vsub.f32 %v1467, %v2690
    %v2834 = vsub.f32 %v1470, %v2690
    %v2835 = vsub.f32 %v1475, %v2690
    %v2836 = vsub.f32 %v1478, %v2690
    %v2837 = vsub.f32 %v1483, %v2690
    %v2838 = vsub.f32 %v1486, %v2690
    %v2839 = vsub.f32 %v1491, %v2690
    %v2840 = vsub.f32 %v1494, %v2690
    %v2841 = vsub.f32 %v1499, %v2690
    %v2842 = vsub.f32 %v1502, %v2690
    %v2843 = vsub.f32 %v1507, %v2690
    %v2844 = vsub.f32 %v1510, %v2690
    %v2845 = vsub.f32 %v1515, %v2690
    %v2846 = vsub.f32 %v1518, %v2690
    %v2847 = vsub.f32 %v1523, %v2690
    %v2848 = vsub.f32 %v1526, %v2690
    %v2849 = vsub.f32 %v1531, %v2690
    %v2850 = vsub.f32 %v1534, %v2690
    %v2851 = vsub.f32 %v1539, %v2690
    %v2852 = vsub.f32 %v1542, %v2690
    %v2853 = vsub.f32 %v1547, %v2690
    %v2854 = vsub.f32 %v1550, %v2690
    %v2855 = vsub.f32 %v1555, %v2690
    %v2856 = vsub.f32 %v1558, %v2690
    %v2857 = vsub.f32 %v1563, %v2690
    %v2858 = vsub.f32 %v1566, %v2690
    %v2859 = vsub.f32 %v1571, %v2690
    %v2860 = vsub.f32 %v1574, %v2690
    %v2861 = vsub.f32 %v1579, %v2690
    %v2862 = vsub.f32 %v1582, %v2690
    %v2863 = vsub.f32 %v1587, %v2690
    %v2864 = vsub.f32 %v1590, %v2690
    %v2865 = vsub.f32 %v1595, %v2690
    %v2866 = vsub.f32 %v1598, %v2690
    %v2867 = vsub.f32 %v1603, %v2690
    %v2868 = vsub.f32 %v1606, %v2690
    %v2869 = vsub.f32 %v1611, %v2690
    %v2870 = vsub.f32 %v1614, %v2690
    %v2871 = vsub.f32 %v1619, %v2690
    %v2872 = vsub.f32 %v1622, %v2690
    %v2873 = vsub.f32 %v1627, %v2690
    %v2874 = vsub.f32 %v1630, %v2690
    %v2875 = vsub.f32 %v1635, %v2690
    %v2876 = vsub.f32 %v1638, %v2690
    %v2877 = vsub.f32 %v1643, %v2690
    %v2878 = vsub.f32 %v1646, %v2690
    %v2879 = vsub.f32 %v1651, %v2690
    %v2880 = vsub.f32 %v1654, %v2690
    %v2881 = vsub.f32 %v1659, %v2690
    %v2882 = vsub.f32 %v1662, %v2690
    %v2883 = vsub.f32 %v1667, %v2690
    %v2884 = vsub.f32 %v1670, %v2690
    %v2885 = vsub.f32 %v1675, %v2690
    %v2886 = vsub.f32 %v1678, %v2690
    %v2887 = vsub.f32 %v1683, %v2690
    %v2888 = vsub.f32 %v1686, %v2690
    %v2889 = vsub.f32 %v1691, %v2690
    %v2890 = vsub.f32 %v1694, %v2690
    %v2891 = vadd.f32 %v2694, 1e-05
    %v2892 = vrsqrt.pop %v2891
    %v2893 = vmul.f32 %v2695, %v2892
    %v2894 = vmul.f32 %v2696, %v2892
    %v2895 = vmul.f32 %v2697, %v2892
    %v2896 = vmul.f32 %v2698, %v2892
    %v2897 = vmul.f32 %v2699, %v2892
    %v2898 = vmul.f32 %v2700, %v2892
    %v2899 = vmul.f32 %v2701, %v2892
    %v2900 = vmul.f32 %v2702, %v2892
    %v2901 = vmul.f32 %v2703, %v2892
    %v2902 = vmul.f32 %v2704, %v2892
    %v2903 = vmul.f32 %v2705, %v2892
    %v2904 = vmul.f32 %v2706, %v2892
    %v2905 = vmul.f32 %v2707, %v2892
    %v2906 = vmul.f32 %v2708, %v2892
    %v2907 = vmul.f32 %v2709, %v2892
    %v2908 = vmul.f32 %v2710, %v2892
    %v2909 = vmul.f32 %v2711, %v2892
    %v2910 = vmul.f32 %v2712, %v2892
    %v2911 = vmul.f32 %v2713, %v2892
    %v2912 = vmul.f32 %v2714, %v2892
    %v2913 = vmul.f32 %v2715, %v2892
    %v2914 = vmul.f32 %v2716, %v2892
    %v2915 = vmul.f32 %v2717, %v2892
    %v2916 = vmul.f32 %v2718, %v2892
    %v2917 = vmul.f32 %v2719, %v2892
    %v2918 = vmul.f32 %v2720, %v2892
    %v2919 = vmul.f32 %v2721, %v2892
    %v2920 = vmul.f32 %v2722, %v2892
    %v2921 = vmul.f32 %v2723, %v2892
    %v2922 = vmul.f32 %v2724, %v2892
    %v2923 = vmul.f32 %v2725, %v2892
    %v2924 = vmul.f32 %v2726, %v2892
    %v2925 = vmul.f32 %v2727, %v2892
    %v2926 = vmul.f32 %v2728, %v2892
    %v2927 = vmul.f32 %v2729, %v2892
    %v2928 = vmul.f32 %v2730, %v2892
    %v2929 = vmul.f32 %v2731, %v2892
    %v2930 = vmul.f32 %v2732, %v2892
    %v2931 = vmul.f32 %v2733, %v2892
    %v2932 = vmul.f32 %v2734, %v2892
    %v2933 = vmul.f32 %v2735, %v2892
    %v2934 = vmul.f32 %v2736, %v2892
    %v2935 = vmul.f32 %v2737, %v2892
    %v2936 = vmul.f32 %v2738, %v2892
    %v2937 = vmul.f32 %v2739, %v2892
    %v2938 = vmul.f32 %v2740, %v2892
    %v2939 = vmul.f32 %v2741, %v2892
    %v2940 = vmul.f32 %v2742, %v2892
    %v2941 = vmul.f32 %v2743, %v2892
    %v2942 = vmul.f32 %v2744, %v2892
    %v2943 = vmul.f32 %v2745, %v2892
    %v2944 = vmul.f32 %v2746, %v2892
    %v2945 = vmul.f32 %v2747, %v2892
    %v2946 = vmul.f32 %v2748, %v2892
    %v2947 = vmul.f32 %v2749, %v2892
    %v2948 = vmul.f32 %v2750, %v2892
    %v2949 = vmul.f32 %v2751, %v2892
    %v2950 = vmul.f32 %v2752, %v2892
    %v2951 = vmul.f32 %v2753, %v2892
    %v2952 = vmul.f32 %v2754, %v2892
    %v2953 = vmul.f32 %v2755, %v2892
    %v2954 = vmul.f32 %v2756, %v2892
    %v2955 = vmul.f32 %v2757, %v2892
    %v2956 = vmul.f32 %v2758, %v2892
    %v2957 = vmul.f32 %v2759, %v2892
    %v2958 = vmul.f32 %v2760, %v2892
    %v2959 = vmul.f32 %v2761, %v2892
    %v2960 = vmul.f32 %v2762, %v2892
    %v2961 = vmul.f32 %v2763, %v2892
    %v2962 = vmul.f32 %v2764, %v2892
    %v2963 = vmul.f32 %v2765, %v2892
    %v2964 = vmul.f32 %v2766, %v2892
    %v2965 = vmul.f32 %v2767, %v2892
    %v2966 = vmul.f32 %v2768, %v2892
    %v2967 = vmul.f32 %v2769, %v2892
    %v2968 = vmul.f32 %v2770, %v2892
    %v2969 = vmul.f32 %v2771, %v2892
    %v2970 = vmul.f32 %v2772, %v2892
    %v2971 = vmul.f32 %v2773, %v2892
    %v2972 = vmul.f32 %v2774, %v2892
    %v2973 = vmul.f32 %v2775, %v2892
    %v2974 = vmul.f32 %v2776, %v2892
    %v2975 = vmul.f32 %v2777, %v2892
    %v2976 = vmul.f32 %v2778, %v2892
    %v2977 = vmul.f32 %v2779, %v2892
    %v2978 = vmul.f32 %v2780, %v2892
    %v2979 = vmul.f32 %v2781, %v2892
    %v2980 = vmul.f32 %v2782, %v2892
    %v2981 = vmul.f32 %v2783, %v2892
    %v2982 = vmul.f32 %v2784, %v2892
    %v2983 = vmul.f32 %v2785, %v2892
    %v2984 = vmul.f32 %v2786, %v2892
    %v2985 = vmul.f32 %v2787, %v2892
    %v2986 = vmul.f32 %v2788, %v2892
    %v2987 = vmul.f32 %v2789, %v2892
    %v2988 = vmul.f32 %v2790, %v2892
    %v2989 = vmul.f32 %v2791, %v2892
    %v2990 = vmul.f32 %v2792, %v2892
    %v2991 = vmul.f32 %v2793, %v2892
    %v2992 = vmul.f32 %v2794, %v2892
    %v2993 = vmul.f32 %v2795, %v2892
    %v2994 = vmul.f32 %v2796, %v2892
    %v2995 = vmul.f32 %v2797, %v2892
    %v2996 = vmul.f32 %v2798, %v2892
    %v2997 = vmul.f32 %v2799, %v2892
    %v2998 = vmul.f32 %v2800, %v2892
    %v2999 = vmul.f32 %v2801, %v2892
    %v3000 = vmul.f32 %v2802, %v2892
    %v3001 = vmul.f32 %v2803, %v2892
    %v3002 = vmul.f32 %v2804, %v2892
    %v3003 = vmul.f32 %v2805, %v2892
    %v3004 = vmul.f32 %v2806, %v2892
    %v3005 = vmul.f32 %v2807, %v2892
    %v3006 = vmul.f32 %v2808, %v2892
    %v3007 = vmul.f32 %v2809, %v2892
    %v3008 = vmul.f32 %v2810, %v2892
    %v3009 = vmul.f32 %v2811, %v2892
    %v3010 = vmul.f32 %v2812, %v2892
    %v3011 = vmul.f32 %v2813, %v2892
    %v3012 = vmul.f32 %v2814, %v2892
    %v3013 = vmul.f32 %v2815, %v2892
    %v3014 = vmul.f32 %v2816, %v2892
    %v3015 = vmul.f32 %v2817, %v2892
    %v3016 = vmul.f32 %v2818, %v2892
    %v3017 = vmul.f32 %v2819, %v2892
    %v3018 = vmul.f32 %v2820, %v2892
    %v3019 = vmul.f32 %v2821, %v2892
    %v3020 = vmul.f32 %v2822, %v2892
    %v3021 = vmul.f32 %v2823, %v2892
    %v3022 = vmul.f32 %v2824, %v2892
    %v3023 = vmul.f32 %v2825, %v2892
    %v3024 = vmul.f32 %v2826, %v2892
    %v3025 = vmul.f32 %v2827, %v2892
    %v3026 = vmul.f32 %v2828, %v2892
    %v3027 = vmul.f32 %v2829, %v2892
    %v3028 = vmul.f32 %v2830, %v2892
    %v3029 = vmul.f32 %v2831, %v2892
    %v3030 = vmul.f32 %v2832, %v2892
    %v3031 = vmul.f32 %v2833, %v2892
    %v3032 = vmul.f32 %v2834, %v2892
    %v3033 = vmul.f32 %v2835, %v2892
    %v3034 = vmul.f32 %v2836, %v2892
    %v3035 = vmul.f32 %v2837, %v2892
    %v3036 = vmul.f32 %v2838, %v2892
    %v3037 = vmul.f32 %v2839, %v2892
    %v3038 = vmul.f32 %v2840, %v2892
    %v3039 = vmul.f32 %v2841, %v2892
    %v3040 = vmul.f32 %v2842, %v2892
    %v3041 = vmul.f32 %v2843, %v2892
    %v3042 = vmul.f32 %v2844, %v2892
    %v3043 = vmul.f32 %v2845, %v2892
    %v3044 = vmul.f32 %v2846, %v2892
    %v3045 = vmul.f32 %v2847, %v2892
    %v3046 = vmul.f32 %v2848, %v2892
    %v3047 = vmul.f32 %v2849, %v2892
    %v3048 = vmul.f32 %v2850, %v2892
    %v3049 = vmul.f32 %v2851, %v2892
    %v3050 = vmul.f32 %v2852, %v2892
    %v3051 = vmul.f32 %v2853, %v2892
    %v3052 = vmul.f32 %v2854, %v2892
    %v3053 = vmul.f32 %v2855, %v2892
    %v3054 = vmul.f32 %v2856, %v2892
    %v3055 = vmul.f32 %v2857, %v2892
    %v3056 = vmul.f32 %v2858, %v2892
    %v3057 = vmul.f32 %v2859, %v2892
    %v3058 = vmul.f32 %v2860, %v2892
    %v3059 = vmul.f32 %v2861, %v2892
    %v3060 = vmul.f32 %v2862, %v2892
    %v3061 = vmul.f32 %v2863, %v2892
    %v3062 = vmul.f32 %v2864, %v2892
    %v3063 = vmul.f32 %v2865, %v2892
    %v3064 = vmul.f32 %v2866, %v2892
    %v3065 = vmul.f32 %v2867, %v2892
    %v3066 = vmul.f32 %v2868, %v2892
    %v3067 = vmul.f32 %v2869, %v2892
    %v3068 = vmul.f32 %v2870, %v2892
    %v3069 = vmul.f32 %v2871, %v2892
    %v3070 = vmul.f32 %v2872, %v2892
    %v3071 = vmul.f32 %v2873, %v2892
    %v3072 = vmul.f32 %v2874, %v2892
    %v3073 = vmul.f32 %v2875, %v2892
    %v3074 = vmul.f32 %v2876, %v2892
    %v3075 = vmul.f32 %v2877, %v2892
    %v3076 = vmul.f32 %v2878, %v2892
    %v3077 = vmul.f32 %v2879, %v2892
    %v3078 = vmul.f32 %v2880, %v2892
    %v3079 = vmul.f32 %v2881, %v2892
    %v3080 = vmul.f32 %v2882, %v2892
    %v3081 = vmul.f32 %v2883, %v2892
    %v3082 = vmul.f32 %v2884, %v2892
    %v3083 = vmul.f32 %v2885, %v2892
    %v3084 = vmul.f32 %v2886, %v2892
    %v3085 = vmul.f32 %v2887, %v2892
    %v3086 = vmul.f32 %v2888, %v2892
    %v3087 = vmul.f32 %v2889, %v2892
    %v3088 = vmul.f32 %v2890, %v2892
    %v3090 = vlaneseq
    %v3091 = vshrl.u32 %v3090, 7
    %v3092 = vsub.s32 0, %v3091
    %v3093 = vrot.slane %v1697, %v3092
    %v3095 = vmul.f32 %v2893, %v3093
    %v3096 = vmul.f32 %v2894, %v3093
    %v3097 = vmul.f32 %v2895, %v3093
    %v3098 = vmul.f32 %v2896, %v3093
    %v3099 = vmul.f32 %v2897, %v3093
    %v3100 = vmul.f32 %v2898, %v3093
    %v3101 = vmul.f32 %v2899, %v3093
    %v3102 = vmul.f32 %v2900, %v3093
    %v3103 = vmul.f32 %v2901, %v3093
    %v3104 = vmul.f32 %v2902, %v3093
    %v3105 = vmul.f32 %v2903, %v3093
    %v3106 = vmul.f32 %v2904, %v3093
    %v3107 = vmul.f32 %v2905, %v3093
    %v3108 = vmul.f32 %v2906, %v3093
    %v3109 = vmul.f32 %v2907, %v3093
    %v3110 = vmul.f32 %v2908, %v3093
    %v3111 = vmul.f32 %v2909, %v3093
    %v3112 = vmul.f32 %v2910, %v3093
    %v3113 = vmul.f32 %v2911, %v3093
    %v3114 = vmul.f32 %v2912, %v3093
    %v3115 = vmul.f32 %v2913, %v3093
    %v3116 = vmul.f32 %v2914, %v3093
    %v3117 = vmul.f32 %v2915, %v3093
    %v3118 = vmul.f32 %v2916, %v3093
    %v3119 = vmul.f32 %v2917, %v3093
    %v3120 = vmul.f32 %v2918, %v3093
    %v3121 = vmul.f32 %v2919, %v3093
    %v3122 = vmul.f32 %v2920, %v3093
    %v3123 = vmul.f32 %v2921, %v3093
    %v3124 = vmul.f32 %v2922, %v3093
    %v3125 = vmul.f32 %v2923, %v3093
    %v3126 = vmul.f32 %v2924, %v3093
    %v3127 = vmul.f32 %v2925, %v3093
    %v3128 = vmul.f32 %v2926, %v3093
    %v3129 = vmul.f32 %v2927, %v3093
    %v3130 = vmul.f32 %v2928, %v3093
    %v3131 = vmul.f32 %v2929, %v3093
    %v3132 = vmul.f32 %v2930, %v3093
    %v3133 = vmul.f32 %v2931, %v3093
    %v3134 = vmul.f32 %v2932, %v3093
    %v3135 = vmul.f32 %v2933, %v3093
    %v3136 = vmul.f32 %v2934, %v3093
    %v3137 = vmul.f32 %v2935, %v3093
    %v3138 = vmul.f32 %v2936, %v3093
    %v3139 = vmul.f32 %v2937, %v3093
    %v3140 = vmul.f32 %v2938, %v3093
    %v3141 = vmul.f32 %v2939, %v3093
    %v3142 = vmul.f32 %v2940, %v3093
    %v3143 = vmul.f32 %v2941, %v3093
    %v3144 = vmul.f32 %v2942, %v3093
    %v3145 = vmul.f32 %v2943, %v3093
    %v3146 = vmul.f32 %v2944, %v3093
    %v3147 = vmul.f32 %v2945, %v3093
    %v3148 = vmul.f32 %v2946, %v3093
    %v3149 = vmul.f32 %v2947, %v3093
    %v3150 = vmul.f32 %v2948, %v3093
    %v3151 = vmul.f32 %v2949, %v3093
    %v3152 = vmul.f32 %v2950, %v3093
    %v3153 = vmul.f32 %v2951, %v3093
    %v3154 = vmul.f32 %v2952, %v3093
    %v3155 = vmul.f32 %v2953, %v3093
    %v3156 = vmul.f32 %v2954, %v3093
    %v3157 = vmul.f32 %v2955, %v3093
    %v3158 = vmul.f32 %v2956, %v3093
    %v3159 = vmul.f32 %v2957, %v3093
    %v3160 = vmul.f32 %v2958, %v3093
    %v3161 = vmul.f32 %v2959, %v3093
    %v3162 = vmul.f32 %v2960, %v3093
    %v3163 = vmul.f32 %v2961, %v3093
    %v3164 = vmul.f32 %v2962, %v3093
    %v3165 = vmul.f32 %v2963, %v3093
    %v3166 = vmul.f32 %v2964, %v3093
    %v3167 = vmul.f32 %v2965, %v3093
    %v3168 = vmul.f32 %v2966, %v3093
    %v3169 = vmul.f32 %v2967, %v3093
    %v3170 = vmul.f32 %v2968, %v3093
    %v3171 = vmul.f32 %v2969, %v3093
    %v3172 = vmul.f32 %v2970, %v3093
    %v3173 = vmul.f32 %v2971, %v3093
    %v3174 = vmul.f32 %v2972, %v3093
    %v3175 = vmul.f32 %v2973, %v3093
    %v3176 = vmul.f32 %v2974, %v3093
    %v3177 = vmul.f32 %v2975, %v3093
    %v3178 = vmul.f32 %v2976, %v3093
    %v3179 = vmul.f32 %v2977, %v3093
    %v3180 = vmul.f32 %v2978, %v3093
    %v3181 = vmul.f32 %v2979, %v3093
    %v3182 = vmul.f32 %v2980, %v3093
    %v3183 = vmul.f32 %v2981, %v3093
    %v3184 = vmul.f32 %v2982, %v3093
    %v3185 = vmul.f32 %v2983, %v3093
    %v3186 = vmul.f32 %v2984, %v3093
    %v3187 = vmul.f32 %v2985, %v3093
    %v3188 = vmul.f32 %v2986, %v3093
    %v3189 = vmul.f32 %v2987, %v3093
    %v3190 = vmul.f32 %v2988, %v3093
    %v3191 = vmul.f32 %v2989, %v3093
    %v3192 = vmul.f32 %v2990, %v3093
    %v3193 = vmul.f32 %v2991, %v3093
    %v3194 = vmul.f32 %v2992, %v3093
    %v3195 = vmul.f32 %v2993, %v3093
    %v3196 = vmul.f32 %v2994, %v3093
    %v3197 = vmul.f32 %v2995, %v3093
    %v3198 = vmul.f32 %v2996, %v3093
    %v3199 = vmul.f32 %v2997, %v3093
    %v3200 = vmul.f32 %v2998, %v3093
    %v3201 = vmul.f32 %v2999, %v3093
    %v3202 = vmul.f32 %v3000, %v3093
    %v3203 = vmul.f32 %v3001, %v3093
    %v3204 = vmul.f32 %v3002, %v3093
    %v3205 = vmul.f32 %v3003, %v3093
    %v3206 = vmul.f32 %v3004, %v3093
    %v3207 = vmul.f32 %v3005, %v3093
    %v3208 = vmul.f32 %v3006, %v3093
    %v3209 = vmul.f32 %v3007, %v3093
    %v3210 = vmul.f32 %v3008, %v3093
    %v3211 = vmul.f32 %v3009, %v3093
    %v3212 = vmul.f32 %v3010, %v3093
    %v3213 = vmul.f32 %v3011, %v3093
    %v3214 = vmul.f32 %v3012, %v3093
    %v3215 = vmul.f32 %v3013, %v3093
    %v3216 = vmul.f32 %v3014, %v3093
    %v3217 = vmul.f32 %v3015, %v3093
    %v3218 = vmul.f32 %v3016, %v3093
    %v3219 = vmul.f32 %v3017, %v3093
    %v3220 = vmul.f32 %v3018, %v3093
    %v3221 = vmul.f32 %v3019, %v3093
    %v3222 = vmul.f32 %v3020, %v3093
    %v3223 = vmul.f32 %v3021, %v3093
    %v3224 = vmul.f32 %v3022, %v3093
    %v3225 = vmul.f32 %v3023, %v3093
    %v3226 = vmul.f32 %v3024, %v3093
    %v3227 = vmul.f32 %v3025, %v3093
    %v3228 = vmul.f32 %v3026, %v3093
    %v3229 = vmul.f32 %v3027, %v3093
    %v3230 = vmul.f32 %v3028, %v3093
    %v3231 = vmul.f32 %v3029, %v3093
    %v3232 = vmul.f32 %v3030, %v3093
    %v3233 = vmul.f32 %v3031, %v3093
    %v3234 = vmul.f32 %v3032, %v3093
    %v3235 = vmul.f32 %v3033, %v3093
    %v3236 = vmul.f32 %v3034, %v3093
    %v3237 = vmul.f32 %v3035, %v3093
    %v3238 = vmul.f32 %v3036, %v3093
    %v3239 = vmul.f32 %v3037, %v3093
    %v3240 = vmul.f32 %v3038, %v3093
    %v3241 = vmul.f32 %v3039, %v3093
    %v3242 = vmul.f32 %v3040, %v3093
    %v3243 = vmul.f32 %v3041, %v3093
    %v3244 = vmul.f32 %v3042, %v3093
    %v3245 = vmul.f32 %v3043, %v3093
    %v3246 = vmul.f32 %v3044, %v3093
    %v3247 = vmul.f32 %v3045, %v3093
    %v3248 = vmul.f32 %v3046, %v3093
    %v3249 = vmul.f32 %v3047, %v3093
    %v3250 = vmul.f32 %v3048, %v3093
    %v3251 = vmul.f32 %v3049, %v3093
    %v3252 = vmul.f32 %v3050, %v3093
    %v3253 = vmul.f32 %v3051, %v3093
    %v3254 = vmul.f32 %v3052, %v3093
    %v3255 = vmul.f32 %v3053, %v3093
    %v3256 = vmul.f32 %v3054, %v3093
    %v3257 = vmul.f32 %v3055, %v3093
    %v3258 = vmul.f32 %v3056, %v3093
    %v3259 = vmul.f32 %v3057, %v3093
    %v3260 = vmul.f32 %v3058, %v3093
    %v3261 = vmul.f32 %v3059, %v3093
    %v3262 = vmul.f32 %v3060, %v3093
    %v3263 = vmul.f32 %v3061, %v3093
    %v3264 = vmul.f32 %v3062, %v3093
    %v3265 = vmul.f32 %v3063, %v3093
    %v3266 = vmul.f32 %v3064, %v3093
    %v3267 = vmul.f32 %v3065, %v3093
    %v3268 = vmul.f32 %v3066, %v3093
    %v3269 = vmul.f32 %v3067, %v3093
    %v3270 = vmul.f32 %v3068, %v3093
    %v3271 = vmul.f32 %v3069, %v3093
    %v3272 = vmul.f32 %v3070, %v3093
    %v3273 = vmul.f32 %v3071, %v3093
    %v3274 = vmul.f32 %v3072, %v3093
    %v3275 = vmul.f32 %v3073, %v3093
    %v3276 = vmul.f32 %v3074, %v3093
    %v3277 = vmul.f32 %v3075, %v3093
    %v3278 = vmul.f32 %v3076, %v3093
    %v3279 = vmul.f32 %v3077, %v3093
    %v3280 = vmul.f32 %v3078, %v3093
    %v3281 = vmul.f32 %v3079, %v3093
    %v3282 = vmul.f32 %v3080, %v3093
    %v3283 = vmul.f32 %v3081, %v3093
    %v3284 = vmul.f32 %v3082, %v3093
    %v3285 = vmul.f32 %v3083, %v3093
    %v3286 = vmul.f32 %v3084, %v3093
    %v3287 = vmul.f32 %v3085, %v3093
    %v3288 = vmul.f32 %v3086, %v3093
    %v3289 = vmul.f32 %v3087, %v3093
    %v3290 = vmul.f32 %v3088, %v3093
    %v3292 = vlaneseq
    %v3293 = vshrl.u32 %v3292, 7
    %v3294 = vsub.s32 0, %v3293
    %v3295 = vrot.slane %v1698, %v3294
    %v3297 = vadd.f32 %v3095, %v3295
    %v3298 = vadd.f32 %v3096, %v3295
    %v3299 = vadd.f32 %v3097, %v3295
    %v3300 = vadd.f32 %v3098, %v3295
    %v3301 = vadd.f32 %v3099, %v3295
    %v3302 = vadd.f32 %v3100, %v3295
    %v3303 = vadd.f32 %v3101, %v3295
    %v3304 = vadd.f32 %v3102, %v3295
    %v3305 = vadd.f32 %v3103, %v3295
    %v3306 = vadd.f32 %v3104, %v3295
    %v3307 = vadd.f32 %v3105, %v3295
    %v3308 = vadd.f32 %v3106, %v3295
    %v3309 = vadd.f32 %v3107, %v3295
    %v3310 = vadd.f32 %v3108, %v3295
    %v3311 = vadd.f32 %v3109, %v3295
    %v3312 = vadd.f32 %v3110, %v3295
    %v3313 = vadd.f32 %v3111, %v3295
    %v3314 = vadd.f32 %v3112, %v3295
    %v3315 = vadd.f32 %v3113, %v3295
    %v3316 = vadd.f32 %v3114, %v3295
    %v3317 = vadd.f32 %v3115, %v3295
    %v3318 = vadd.f32 %v3116, %v3295
    %v3319 = vadd.f32 %v3117, %v3295
    %v3320 = vadd.f32 %v3118, %v3295
    %v3321 = vadd.f32 %v3119, %v3295
    %v3322 = vadd.f32 %v3120, %v3295
    %v3323 = vadd.f32 %v3121, %v3295
    %v3324 = vadd.f32 %v3122, %v3295
    %v3325 = vadd.f32 %v3123, %v3295
    %v3326 = vadd.f32 %v3124, %v3295
    %v3327 = vadd.f32 %v3125, %v3295
    %v3328 = vadd.f32 %v3126, %v3295
    %v3329 = vadd.f32 %v3127, %v3295
    %v3330 = vadd.f32 %v3128, %v3295
    %v3331 = vadd.f32 %v3129, %v3295
    %v3332 = vadd.f32 %v3130, %v3295
    %v3333 = vadd.f32 %v3131, %v3295
    %v3334 = vadd.f32 %v3132, %v3295
    %v3335 = vadd.f32 %v3133, %v3295
    %v3336 = vadd.f32 %v3134, %v3295
    %v3337 = vadd.f32 %v3135, %v3295
    %v3338 = vadd.f32 %v3136, %v3295
    %v3339 = vadd.f32 %v3137, %v3295
    %v3340 = vadd.f32 %v3138, %v3295
    %v3341 = vadd.f32 %v3139, %v3295
    %v3342 = vadd.f32 %v3140, %v3295
    %v3343 = vadd.f32 %v3141, %v3295
    %v3344 = vadd.f32 %v3142, %v3295
    %v3345 = vadd.f32 %v3143, %v3295
    %v3346 = vadd.f32 %v3144, %v3295
    %v3347 = vadd.f32 %v3145, %v3295
    %v3348 = vadd.f32 %v3146, %v3295
    %v3349 = vadd.f32 %v3147, %v3295
    %v3350 = vadd.f32 %v3148, %v3295
    %v3351 = vadd.f32 %v3149, %v3295
    %v3352 = vadd.f32 %v3150, %v3295
    %v3353 = vadd.f32 %v3151, %v3295
    %v3354 = vadd.f32 %v3152, %v3295
    %v3355 = vadd.f32 %v3153, %v3295
    %v3356 = vadd.f32 %v3154, %v3295
    %v3357 = vadd.f32 %v3155, %v3295
    %v3358 = vadd.f32 %v3156, %v3295
    %v3359 = vadd.f32 %v3157, %v3295
    %v3360 = vadd.f32 %v3158, %v3295
    %v3361 = vadd.f32 %v3159, %v3295
    %v3362 = vadd.f32 %v3160, %v3295
    %v3363 = vadd.f32 %v3161, %v3295
    %v3364 = vadd.f32 %v3162, %v3295
    %v3365 = vadd.f32 %v3163, %v3295
    %v3366 = vadd.f32 %v3164, %v3295
    %v3367 = vadd.f32 %v3165, %v3295
    %v3368 = vadd.f32 %v3166, %v3295
    %v3369 = vadd.f32 %v3167, %v3295
    %v3370 = vadd.f32 %v3168, %v3295
    %v3371 = vadd.f32 %v3169, %v3295
    %v3372 = vadd.f32 %v3170, %v3295
    %v3373 = vadd.f32 %v3171, %v3295
    %v3374 = vadd.f32 %v3172, %v3295
    %v3375 = vadd.f32 %v3173, %v3295
    %v3376 = vadd.f32 %v3174, %v3295
    %v3377 = vadd.f32 %v3175, %v3295
    %v3378 = vadd.f32 %v3176, %v3295
    %v3379 = vadd.f32 %v3177, %v3295
    %v3380 = vadd.f32 %v3178, %v3295
    %v3381 = vadd.f32 %v3179, %v3295
    %v3382 = vadd.f32 %v3180, %v3295
    %v3383 = vadd.f32 %v3181, %v3295
    %v3384 = vadd.f32 %v3182, %v3295
    %v3385 = vadd.f32 %v3183, %v3295
    %v3386 = vadd.f32 %v3184, %v3295
    %v3387 = vadd.f32 %v3185, %v3295
    %v3388 = vadd.f32 %v3186, %v3295
    %v3389 = vadd.f32 %v3187, %v3295
    %v3390 = vadd.f32 %v3188, %v3295
    %v3391 = vadd.f32 %v3189, %v3295
    %v3392 = vadd.f32 %v3190, %v3295
    %v3393 = vadd.f32 %v3191, %v3295
    %v3394 = vadd.f32 %v3192, %v3295
    %v3395 = vadd.f32 %v3193, %v3295
    %v3396 = vadd.f32 %v3194, %v3295
    %v3397 = vadd.f32 %v3195, %v3295
    %v3398 = vadd.f32 %v3196, %v3295
    %v3399 = vadd.f32 %v3197, %v3295
    %v3400 = vadd.f32 %v3198, %v3295
    %v3401 = vadd.f32 %v3199, %v3295
    %v3402 = vadd.f32 %v3200, %v3295
    %v3403 = vadd.f32 %v3201, %v3295
    %v3404 = vadd.f32 %v3202, %v3295
    %v3405 = vadd.f32 %v3203, %v3295
    %v3406 = vadd.f32 %v3204, %v3295
    %v3407 = vadd.f32 %v3205, %v3295
    %v3408 = vadd.f32 %v3206, %v3295
    %v3409 = vadd.f32 %v3207, %v3295
    %v3410 = vadd.f32 %v3208, %v3295
    %v3411 = vadd.f32 %v3209, %v3295
    %v3412 = vadd.f32 %v3210, %v3295
    %v3413 = vadd.f32 %v3211, %v3295
    %v3414 = vadd.f32 %v3212, %v3295
    %v3415 = vadd.f32 %v3213, %v3295
    %v3416 = vadd.f32 %v3214, %v3295
    %v3417 = vadd.f32 %v3215, %v3295
    %v3418 = vadd.f32 %v3216, %v3295
    %v3419 = vadd.f32 %v3217, %v3295
    %v3420 = vadd.f32 %v3218, %v3295
    %v3421 = vadd.f32 %v3219, %v3295
    %v3422 = vadd.f32 %v3220, %v3295
    %v3423 = vadd.f32 %v3221, %v3295
    %v3424 = vadd.f32 %v3222, %v3295
    %v3425 = vadd.f32 %v3223, %v3295
    %v3426 = vadd.f32 %v3224, %v3295
    %v3427 = vadd.f32 %v3225, %v3295
    %v3428 = vadd.f32 %v3226, %v3295
    %v3429 = vadd.f32 %v3227, %v3295
    %v3430 = vadd.f32 %v3228, %v3295
    %v3431 = vadd.f32 %v3229, %v3295
    %v3432 = vadd.f32 %v3230, %v3295
    %v3433 = vadd.f32 %v3231, %v3295
    %v3434 = vadd.f32 %v3232, %v3295
    %v3435 = vadd.f32 %v3233, %v3295
    %v3436 = vadd.f32 %v3234, %v3295
    %v3437 = vadd.f32 %v3235, %v3295
    %v3438 = vadd.f32 %v3236, %v3295
    %v3439 = vadd.f32 %v3237, %v3295
    %v3440 = vadd.f32 %v3238, %v3295
    %v3441 = vadd.f32 %v3239, %v3295
    %v3442 = vadd.f32 %v3240, %v3295
    %v3443 = vadd.f32 %v3241, %v3295
    %v3444 = vadd.f32 %v3242, %v3295
    %v3445 = vadd.f32 %v3243, %v3295
    %v3446 = vadd.f32 %v3244, %v3295
    %v3447 = vadd.f32 %v3245, %v3295
    %v3448 = vadd.f32 %v3246, %v3295
    %v3449 = vadd.f32 %v3247, %v3295
    %v3450 = vadd.f32 %v3248, %v3295
    %v3451 = vadd.f32 %v3249, %v3295
    %v3452 = vadd.f32 %v3250, %v3295
    %v3453 = vadd.f32 %v3251, %v3295
    %v3454 = vadd.f32 %v3252, %v3295
    %v3455 = vadd.f32 %v3253, %v3295
    %v3456 = vadd.f32 %v3254, %v3295
    %v3457 = vadd.f32 %v3255, %v3295
    %v3458 = vadd.f32 %v3256, %v3295
    %v3459 = vadd.f32 %v3257, %v3295
    %v3460 = vadd.f32 %v3258, %v3295
    %v3461 = vadd.f32 %v3259, %v3295
    %v3462 = vadd.f32 %v3260, %v3295
    %v3463 = vadd.f32 %v3261, %v3295
    %v3464 = vadd.f32 %v3262, %v3295
    %v3465 = vadd.f32 %v3263, %v3295
    %v3466 = vadd.f32 %v3264, %v3295
    %v3467 = vadd.f32 %v3265, %v3295
    %v3468 = vadd.f32 %v3266, %v3295
    %v3469 = vadd.f32 %v3267, %v3295
    %v3470 = vadd.f32 %v3268, %v3295
    %v3471 = vadd.f32 %v3269, %v3295
    %v3472 = vadd.f32 %v3270, %v3295
    %v3473 = vadd.f32 %v3271, %v3295
    %v3474 = vadd.f32 %v3272, %v3295
    %v3475 = vadd.f32 %v3273, %v3295
    %v3476 = vadd.f32 %v3274, %v3295
    %v3477 = vadd.f32 %v3275, %v3295
    %v3478 = vadd.f32 %v3276, %v3295
    %v3479 = vadd.f32 %v3277, %v3295
    %v3480 = vadd.f32 %v3278, %v3295
    %v3481 = vadd.f32 %v3279, %v3295
    %v3482 = vadd.f32 %v3280, %v3295
    %v3483 = vadd.f32 %v3281, %v3295
    %v3484 = vadd.f32 %v3282, %v3295
    %v3485 = vadd.f32 %v3283, %v3295
    %v3486 = vadd.f32 %v3284, %v3295
    %v3487 = vadd.f32 %v3285, %v3295
    %v3488 = vadd.f32 %v3286, %v3295
    %v3489 = vadd.f32 %v3287, %v3295
    %v3490 = vadd.f32 %v3288, %v3295
    %v3491 = vadd.f32 %v3289, %v3295
    %v3492 = vadd.f32 %v3290, %v3295
    %vm3493 = vcmp.gt.f32.partialorder %v3297, 0.0
    %vm3494 = vcmp.gt.f32.partialorder %v3298, 0.0
    %vm3495 = vcmp.gt.f32.partialorder %v3299, 0.0
    %vm3496 = vcmp.gt.f32.partialorder %v3300, 0.0
    %vm3497 = vcmp.gt.f32.partialorder %v3301, 0.0
    %vm3498 = vcmp.gt.f32.partialorder %v3302, 0.0
    %vm3499 = vcmp.gt.f32.partialorder %v3303, 0.0
    %vm3500 = vcmp.gt.f32.partialorder %v3304, 0.0
    %vm3501 = vcmp.gt.f32.partialorder %v3305, 0.0
    %vm3502 = vcmp.gt.f32.partialorder %v3306, 0.0
    %vm3503 = vcmp.gt.f32.partialorder %v3307, 0.0
    %vm3504 = vcmp.gt.f32.partialorder %v3308, 0.0
    %vm3505 = vcmp.gt.f32.partialorder %v3309, 0.0
    %vm3506 = vcmp.gt.f32.partialorder %v3310, 0.0
    %vm3507 = vcmp.gt.f32.partialorder %v3311, 0.0
    %vm3508 = vcmp.gt.f32.partialorder %v3312, 0.0
    %vm3509 = vcmp.gt.f32.partialorder %v3313, 0.0
    %vm3510 = vcmp.gt.f32.partialorder %v3314, 0.0
    %vm3511 = vcmp.gt.f32.partialorder %v3315, 0.0
    %vm3512 = vcmp.gt.f32.partialorder %v3316, 0.0
    %vm3513 = vcmp.gt.f32.partialorder %v3317, 0.0
    %vm3514 = vcmp.gt.f32.partialorder %v3318, 0.0
    %vm3515 = vcmp.gt.f32.partialorder %v3319, 0.0
    %vm3516 = vcmp.gt.f32.partialorder %v3320, 0.0
    %vm3517 = vcmp.gt.f32.partialorder %v3321, 0.0
    %vm3518 = vcmp.gt.f32.partialorder %v3322, 0.0
    %vm3519 = vcmp.gt.f32.partialorder %v3323, 0.0
    %vm3520 = vcmp.gt.f32.partialorder %v3324, 0.0
    %vm3521 = vcmp.gt.f32.partialorder %v3325, 0.0
    %vm3522 = vcmp.gt.f32.partialorder %v3326, 0.0
    %vm3523 = vcmp.gt.f32.partialorder %v3327, 0.0
    %vm3524 = vcmp.gt.f32.partialorder %v3328, 0.0
    %vm3525 = vcmp.gt.f32.partialorder %v3329, 0.0
    %vm3526 = vcmp.gt.f32.partialorder %v3330, 0.0
    %vm3527 = vcmp.gt.f32.partialorder %v3331, 0.0
    %vm3528 = vcmp.gt.f32.partialorder %v3332, 0.0
    %vm3529 = vcmp.gt.f32.partialorder %v3333, 0.0
    %vm3530 = vcmp.gt.f32.partialorder %v3334, 0.0
    %vm3531 = vcmp.gt.f32.partialorder %v3335, 0.0
    %vm3532 = vcmp.gt.f32.partialorder %v3336, 0.0
    %vm3533 = vcmp.gt.f32.partialorder %v3337, 0.0
    %vm3534 = vcmp.gt.f32.partialorder %v3338, 0.0
    %vm3535 = vcmp.gt.f32.partialorder %v3339, 0.0
    %vm3536 = vcmp.gt.f32.partialorder %v3340, 0.0
    %vm3537 = vcmp.gt.f32.partialorder %v3341, 0.0
    %vm3538 = vcmp.gt.f32.partialorder %v3342, 0.0
    %vm3539 = vcmp.gt.f32.partialorder %v3343, 0.0
    %vm3540 = vcmp.gt.f32.partialorder %v3344, 0.0
    %vm3541 = vcmp.gt.f32.partialorder %v3345, 0.0
    %vm3542 = vcmp.gt.f32.partialorder %v3346, 0.0
    %vm3543 = vcmp.gt.f32.partialorder %v3347, 0.0
    %vm3544 = vcmp.gt.f32.partialorder %v3348, 0.0
    %vm3545 = vcmp.gt.f32.partialorder %v3349, 0.0
    %vm3546 = vcmp.gt.f32.partialorder %v3350, 0.0
    %vm3547 = vcmp.gt.f32.partialorder %v3351, 0.0
    %vm3548 = vcmp.gt.f32.partialorder %v3352, 0.0
    %vm3549 = vcmp.gt.f32.partialorder %v3353, 0.0
    %vm3550 = vcmp.gt.f32.partialorder %v3354, 0.0
    %vm3551 = vcmp.gt.f32.partialorder %v3355, 0.0
    %vm3552 = vcmp.gt.f32.partialorder %v3356, 0.0
    %vm3553 = vcmp.gt.f32.partialorder %v3357, 0.0
    %vm3554 = vcmp.gt.f32.partialorder %v3358, 0.0
    %vm3555 = vcmp.gt.f32.partialorder %v3359, 0.0
    %vm3556 = vcmp.gt.f32.partialorder %v3360, 0.0
    %vm3557 = vcmp.gt.f32.partialorder %v3361, 0.0
    %vm3558 = vcmp.gt.f32.partialorder %v3362, 0.0
    %vm3559 = vcmp.gt.f32.partialorder %v3363, 0.0
    %vm3560 = vcmp.gt.f32.partialorder %v3364, 0.0
    %vm3561 = vcmp.gt.f32.partialorder %v3365, 0.0
    %vm3562 = vcmp.gt.f32.partialorder %v3366, 0.0
    %vm3563 = vcmp.gt.f32.partialorder %v3367, 0.0
    %vm3564 = vcmp.gt.f32.partialorder %v3368, 0.0
    %vm3565 = vcmp.gt.f32.partialorder %v3369, 0.0
    %vm3566 = vcmp.gt.f32.partialorder %v3370, 0.0
    %vm3567 = vcmp.gt.f32.partialorder %v3371, 0.0
    %vm3568 = vcmp.gt.f32.partialorder %v3372, 0.0
    %vm3569 = vcmp.gt.f32.partialorder %v3373, 0.0
    %vm3570 = vcmp.gt.f32.partialorder %v3374, 0.0
    %vm3571 = vcmp.gt.f32.partialorder %v3375, 0.0
    %vm3572 = vcmp.gt.f32.partialorder %v3376, 0.0
    %vm3573 = vcmp.gt.f32.partialorder %v3377, 0.0
    %vm3574 = vcmp.gt.f32.partialorder %v3378, 0.0
    %vm3575 = vcmp.gt.f32.partialorder %v3379, 0.0
    %vm3576 = vcmp.gt.f32.partialorder %v3380, 0.0
    %vm3577 = vcmp.gt.f32.partialorder %v3381, 0.0
    %vm3578 = vcmp.gt.f32.partialorder %v3382, 0.0
    %vm3579 = vcmp.gt.f32.partialorder %v3383, 0.0
    %vm3580 = vcmp.gt.f32.partialorder %v3384, 0.0
    %vm3581 = vcmp.gt.f32.partialorder %v3385, 0.0
    %vm3582 = vcmp.gt.f32.partialorder %v3386, 0.0
    %vm3583 = vcmp.gt.f32.partialorder %v3387, 0.0
    %vm3584 = vcmp.gt.f32.partialorder %v3388, 0.0
    %vm3585 = vcmp.gt.f32.partialorder %v3389, 0.0
    %vm3586 = vcmp.gt.f32.partialorder %v3390, 0.0
    %vm3587 = vcmp.gt.f32.partialorder %v3391, 0.0
    %vm3588 = vcmp.gt.f32.partialorder %v3392, 0.0
    %vm3589 = vcmp.gt.f32.partialorder %v3393, 0.0
    %vm3590 = vcmp.gt.f32.partialorder %v3394, 0.0
    %vm3591 = vcmp.gt.f32.partialorder %v3395, 0.0
    %vm3592 = vcmp.gt.f32.partialorder %v3396, 0.0
    %vm3593 = vcmp.gt.f32.partialorder %v3397, 0.0
    %vm3594 = vcmp.gt.f32.partialorder %v3398, 0.0
    %vm3595 = vcmp.gt.f32.partialorder %v3399, 0.0
    %vm3596 = vcmp.gt.f32.partialorder %v3400, 0.0
    %vm3597 = vcmp.gt.f32.partialorder %v3401, 0.0
    %vm3598 = vcmp.gt.f32.partialorder %v3402, 0.0
    %vm3599 = vcmp.gt.f32.partialorder %v3403, 0.0
    %vm3600 = vcmp.gt.f32.partialorder %v3404, 0.0
    %vm3601 = vcmp.gt.f32.partialorder %v3405, 0.0
    %vm3602 = vcmp.gt.f32.partialorder %v3406, 0.0
    %vm3603 = vcmp.gt.f32.partialorder %v3407, 0.0
    %vm3604 = vcmp.gt.f32.partialorder %v3408, 0.0
    %vm3605 = vcmp.gt.f32.partialorder %v3409, 0.0
    %vm3606 = vcmp.gt.f32.partialorder %v3410, 0.0
    %vm3607 = vcmp.gt.f32.partialorder %v3411, 0.0
    %vm3608 = vcmp.gt.f32.partialorder %v3412, 0.0
    %vm3609 = vcmp.gt.f32.partialorder %v3413, 0.0
    %vm3610 = vcmp.gt.f32.partialorder %v3414, 0.0
    %vm3611 = vcmp.gt.f32.partialorder %v3415, 0.0
    %vm3612 = vcmp.gt.f32.partialorder %v3416, 0.0
    %vm3613 = vcmp.gt.f32.partialorder %v3417, 0.0
    %vm3614 = vcmp.gt.f32.partialorder %v3418, 0.0
    %vm3615 = vcmp.gt.f32.partialorder %v3419, 0.0
    %vm3616 = vcmp.gt.f32.partialorder %v3420, 0.0
    %vm3617 = vcmp.gt.f32.partialorder %v3421, 0.0
    %vm3618 = vcmp.gt.f32.partialorder %v3422, 0.0
    %vm3619 = vcmp.gt.f32.partialorder %v3423, 0.0
    %vm3620 = vcmp.gt.f32.partialorder %v3424, 0.0
    %vm3621 = vcmp.gt.f32.partialorder %v3425, 0.0
    %vm3622 = vcmp.gt.f32.partialorder %v3426, 0.0
    %vm3623 = vcmp.gt.f32.partialorder %v3427, 0.0
    %vm3624 = vcmp.gt.f32.partialorder %v3428, 0.0
    %vm3625 = vcmp.gt.f32.partialorder %v3429, 0.0
    %vm3626 = vcmp.gt.f32.partialorder %v3430, 0.0
    %vm3627 = vcmp.gt.f32.partialorder %v3431, 0.0
    %vm3628 = vcmp.gt.f32.partialorder %v3432, 0.0
    %vm3629 = vcmp.gt.f32.partialorder %v3433, 0.0
    %vm3630 = vcmp.gt.f32.partialorder %v3434, 0.0
    %vm3631 = vcmp.gt.f32.partialorder %v3435, 0.0
    %vm3632 = vcmp.gt.f32.partialorder %v3436, 0.0
    %vm3633 = vcmp.gt.f32.partialorder %v3437, 0.0
    %vm3634 = vcmp.gt.f32.partialorder %v3438, 0.0
    %vm3635 = vcmp.gt.f32.partialorder %v3439, 0.0
    %vm3636 = vcmp.gt.f32.partialorder %v3440, 0.0
    %vm3637 = vcmp.gt.f32.partialorder %v3441, 0.0
    %vm3638 = vcmp.gt.f32.partialorder %v3442, 0.0
    %vm3639 = vcmp.gt.f32.partialorder %v3443, 0.0
    %vm3640 = vcmp.gt.f32.partialorder %v3444, 0.0
    %vm3641 = vcmp.gt.f32.partialorder %v3445, 0.0
    %vm3642 = vcmp.gt.f32.partialorder %v3446, 0.0
    %vm3643 = vcmp.gt.f32.partialorder %v3447, 0.0
    %vm3644 = vcmp.gt.f32.partialorder %v3448, 0.0
    %vm3645 = vcmp.gt.f32.partialorder %v3449, 0.0
    %vm3646 = vcmp.gt.f32.partialorder %v3450, 0.0
    %vm3647 = vcmp.gt.f32.partialorder %v3451, 0.0
    %vm3648 = vcmp.gt.f32.partialorder %v3452, 0.0
    %vm3649 = vcmp.gt.f32.partialorder %v3453, 0.0
    %vm3650 = vcmp.gt.f32.partialorder %v3454, 0.0
    %vm3651 = vcmp.gt.f32.partialorder %v3455, 0.0
    %vm3652 = vcmp.gt.f32.partialorder %v3456, 0.0
    %vm3653 = vcmp.gt.f32.partialorder %v3457, 0.0
    %vm3654 = vcmp.gt.f32.partialorder %v3458, 0.0
    %vm3655 = vcmp.gt.f32.partialorder %v3459, 0.0
    %vm3656 = vcmp.gt.f32.partialorder %v3460, 0.0
    %vm3657 = vcmp.gt.f32.partialorder %v3461, 0.0
    %vm3658 = vcmp.gt.f32.partialorder %v3462, 0.0
    %vm3659 = vcmp.gt.f32.partialorder %v3463, 0.0
    %vm3660 = vcmp.gt.f32.partialorder %v3464, 0.0
    %vm3661 = vcmp.gt.f32.partialorder %v3465, 0.0
    %vm3662 = vcmp.gt.f32.partialorder %v3466, 0.0
    %vm3663 = vcmp.gt.f32.partialorder %v3467, 0.0
    %vm3664 = vcmp.gt.f32.partialorder %v3468, 0.0
    %vm3665 = vcmp.gt.f32.partialorder %v3469, 0.0
    %vm3666 = vcmp.gt.f32.partialorder %v3470, 0.0
    %vm3667 = vcmp.gt.f32.partialorder %v3471, 0.0
    %vm3668 = vcmp.gt.f32.partialorder %v3472, 0.0
    %vm3669 = vcmp.gt.f32.partialorder %v3473, 0.0
    %vm3670 = vcmp.gt.f32.partialorder %v3474, 0.0
    %vm3671 = vcmp.gt.f32.partialorder %v3475, 0.0
    %vm3672 = vcmp.gt.f32.partialorder %v3476, 0.0
    %vm3673 = vcmp.gt.f32.partialorder %v3477, 0.0
    %vm3674 = vcmp.gt.f32.partialorder %v3478, 0.0
    %vm3675 = vcmp.gt.f32.partialorder %v3479, 0.0
    %vm3676 = vcmp.gt.f32.partialorder %v3480, 0.0
    %vm3677 = vcmp.gt.f32.partialorder %v3481, 0.0
    %vm3678 = vcmp.gt.f32.partialorder %v3482, 0.0
    %vm3679 = vcmp.gt.f32.partialorder %v3483, 0.0
    %vm3680 = vcmp.gt.f32.partialorder %v3484, 0.0
    %vm3681 = vcmp.gt.f32.partialorder %v3485, 0.0
    %vm3682 = vcmp.gt.f32.partialorder %v3486, 0.0
    %vm3683 = vcmp.gt.f32.partialorder %v3487, 0.0
    %vm3684 = vcmp.gt.f32.partialorder %v3488, 0.0
    %vm3685 = vcmp.gt.f32.partialorder %v3489, 0.0
    %vm3686 = vcmp.gt.f32.partialorder %v3490, 0.0
    %vm3687 = vcmp.gt.f32.partialorder %v3491, 0.0
    %vm3688 = vcmp.gt.f32.partialorder %v3492, 0.0
    %v3689 = vmul.f32 %v3297, 0.1
    %v3690 = vmul.f32 %v3298, 0.1
    %v3691 = vmul.f32 %v3299, 0.1
    %v3692 = vmul.f32 %v3300, 0.1
    %v3693 = vmul.f32 %v3301, 0.1
    %v3694 = vmul.f32 %v3302, 0.1
    %v3695 = vmul.f32 %v3303, 0.1
    %v3696 = vmul.f32 %v3304, 0.1
    %v3697 = vmul.f32 %v3305, 0.1
    %v3698 = vmul.f32 %v3306, 0.1
    %v3699 = vmul.f32 %v3307, 0.1
    %v3700 = vmul.f32 %v3308, 0.1
    %v3701 = vmul.f32 %v3309, 0.1
    %v3702 = vmul.f32 %v3310, 0.1
    %v3703 = vmul.f32 %v3311, 0.1
    %v3704 = vmul.f32 %v3312, 0.1
    %v3705 = vmul.f32 %v3313, 0.1
    %v3706 = vmul.f32 %v3314, 0.1
    %v3707 = vmul.f32 %v3315, 0.1
    %v3708 = vmul.f32 %v3316, 0.1
    %v3709 = vmul.f32 %v3317, 0.1
    %v3710 = vmul.f32 %v3318, 0.1
    %v3711 = vmul.f32 %v3319, 0.1
    %v3712 = vmul.f32 %v3320, 0.1
    %v3713 = vmul.f32 %v3321, 0.1
    %v3714 = vmul.f32 %v3322, 0.1
    %v3715 = vmul.f32 %v3323, 0.1
    %v3716 = vmul.f32 %v3324, 0.1
    %v3717 = vmul.f32 %v3325, 0.1
    %v3718 = vmul.f32 %v3326, 0.1
    %v3719 = vmul.f32 %v3327, 0.1
    %v3720 = vmul.f32 %v3328, 0.1
    %v3721 = vmul.f32 %v3329, 0.1
    %v3722 = vmul.f32 %v3330, 0.1
    %v3723 = vmul.f32 %v3331, 0.1
    %v3724 = vmul.f32 %v3332, 0.1
    %v3725 = vmul.f32 %v3333, 0.1
    %v3726 = vmul.f32 %v3334, 0.1
    %v3727 = vmul.f32 %v3335, 0.1
    %v3728 = vmul.f32 %v3336, 0.1
    %v3729 = vmul.f32 %v3337, 0.1
    %v3730 = vmul.f32 %v3338, 0.1
    %v3731 = vmul.f32 %v3339, 0.1
    %v3732 = vmul.f32 %v3340, 0.1
    %v3733 = vmul.f32 %v3341, 0.1
    %v3734 = vmul.f32 %v3342, 0.1
    %v3735 = vmul.f32 %v3343, 0.1
    %v3736 = vmul.f32 %v3344, 0.1
    %v3737 = vmul.f32 %v3345, 0.1
    %v3738 = vmul.f32 %v3346, 0.1
    %v3739 = vmul.f32 %v3347, 0.1
    %v3740 = vmul.f32 %v3348, 0.1
    %v3741 = vmul.f32 %v3349, 0.1
    %v3742 = vmul.f32 %v3350, 0.1
    %v3743 = vmul.f32 %v3351, 0.1
    %v3744 = vmul.f32 %v3352, 0.1
    %v3745 = vmul.f32 %v3353, 0.1
    %v3746 = vmul.f32 %v3354, 0.1
    %v3747 = vmul.f32 %v3355, 0.1
    %v3748 = vmul.f32 %v3356, 0.1
    %v3749 = vmul.f32 %v3357, 0.1
    %v3750 = vmul.f32 %v3358, 0.1
    %v3751 = vmul.f32 %v3359, 0.1
    %v3752 = vmul.f32 %v3360, 0.1
    %v3753 = vmul.f32 %v3361, 0.1
    %v3754 = vmul.f32 %v3362, 0.1
    %v3755 = vmul.f32 %v3363, 0.1
    %v3756 = vmul.f32 %v3364, 0.1
    %v3757 = vmul.f32 %v3365, 0.1
    %v3758 = vmul.f32 %v3366, 0.1
    %v3759 = vmul.f32 %v3367, 0.1
    %v3760 = vmul.f32 %v3368, 0.1
    %v3761 = vmul.f32 %v3369, 0.1
    %v3762 = vmul.f32 %v3370, 0.1
    %v3763 = vmul.f32 %v3371, 0.1
    %v3764 = vmul.f32 %v3372, 0.1
    %v3765 = vmul.f32 %v3373, 0.1
    %v3766 = vmul.f32 %v3374, 0.1
    %v3767 = vmul.f32 %v3375, 0.1
    %v3768 = vmul.f32 %v3376, 0.1
    %v3769 = vmul.f32 %v3377, 0.1
    %v3770 = vmul.f32 %v3378, 0.1
    %v3771 = vmul.f32 %v3379, 0.1
    %v3772 = vmul.f32 %v3380, 0.1
    %v3773 = vmul.f32 %v3381, 0.1
    %v3774 = vmul.f32 %v3382, 0.1
    %v3775 = vmul.f32 %v3383, 0.1
    %v3776 = vmul.f32 %v3384, 0.1
    %v3777 = vmul.f32 %v3385, 0.1
    %v3778 = vmul.f32 %v3386, 0.1
    %v3779 = vmul.f32 %v3387, 0.1
    %v3780 = vmul.f32 %v3388, 0.1
    %v3781 = vmul.f32 %v3389, 0.1
    %v3782 = vmul.f32 %v3390, 0.1
    %v3783 = vmul.f32 %v3391, 0.1
    %v3784 = vmul.f32 %v3392, 0.1
    %v3785 = vmul.f32 %v3393, 0.1
    %v3786 = vmul.f32 %v3394, 0.1
    %v3787 = vmul.f32 %v3395, 0.1
    %v3788 = vmul.f32 %v3396, 0.1
    %v3789 = vmul.f32 %v3397, 0.1
    %v3790 = vmul.f32 %v3398, 0.1
    %v3791 = vmul.f32 %v3399, 0.1
    %v3792 = vmul.f32 %v3400, 0.1
    %v3793 = vmul.f32 %v3401, 0.1
    %v3794 = vmul.f32 %v3402, 0.1
    %v3795 = vmul.f32 %v3403, 0.1
    %v3796 = vmul.f32 %v3404, 0.1
    %v3797 = vmul.f32 %v3405, 0.1
    %v3798 = vmul.f32 %v3406, 0.1
    %v3799 = vmul.f32 %v3407, 0.1
    %v3800 = vmul.f32 %v3408, 0.1
    %v3801 = vmul.f32 %v3409, 0.1
    %v3802 = vmul.f32 %v3410, 0.1
    %v3803 = vmul.f32 %v3411, 0.1
    %v3804 = vmul.f32 %v3412, 0.1
    %v3805 = vmul.f32 %v3413, 0.1
    %v3806 = vmul.f32 %v3414, 0.1
    %v3807 = vmul.f32 %v3415, 0.1
    %v3808 = vmul.f32 %v3416, 0.1
    %v3809 = vmul.f32 %v3417, 0.1
    %v3810 = vmul.f32 %v3418, 0.1
    %v3811 = vmul.f32 %v3419, 0.1
    %v3812 = vmul.f32 %v3420, 0.1
    %v3813 = vmul.f32 %v3421, 0.1
    %v3814 = vmul.f32 %v3422, 0.1
    %v3815 = vmul.f32 %v3423, 0.1
    %v3816 = vmul.f32 %v3424, 0.1
    %v3817 = vmul.f32 %v3425, 0.1
    %v3818 = vmul.f32 %v3426, 0.1
    %v3819 = vmul.f32 %v3427, 0.1
    %v3820 = vmul.f32 %v3428, 0.1
    %v3821 = vmul.f32 %v3429, 0.1
    %v3822 = vmul.f32 %v3430, 0.1
    %v3823 = vmul.f32 %v3431, 0.1
    %v3824 = vmul.f32 %v3432, 0.1
    %v3825 = vmul.f32 %v3433, 0.1
    %v3826 = vmul.f32 %v3434, 0.1
    %v3827 = vmul.f32 %v3435, 0.1
    %v3828 = vmul.f32 %v3436, 0.1
    %v3829 = vmul.f32 %v3437, 0.1
    %v3830 = vmul.f32 %v3438, 0.1
    %v3831 = vmul.f32 %v3439, 0.1
    %v3832 = vmul.f32 %v3440, 0.1
    %v3833 = vmul.f32 %v3441, 0.1
    %v3834 = vmul.f32 %v3442, 0.1
    %v3835 = vmul.f32 %v3443, 0.1
    %v3836 = vmul.f32 %v3444, 0.1
    %v3837 = vmul.f32 %v3445, 0.1
    %v3838 = vmul.f32 %v3446, 0.1
    %v3839 = vmul.f32 %v3447, 0.1
    %v3840 = vmul.f32 %v3448, 0.1
    %v3841 = vmul.f32 %v3449, 0.1
    %v3842 = vmul.f32 %v3450, 0.1
    %v3843 = vmul.f32 %v3451, 0.1
    %v3844 = vmul.f32 %v3452, 0.1
    %v3845 = vmul.f32 %v3453, 0.1
    %v3846 = vmul.f32 %v3454, 0.1
    %v3847 = vmul.f32 %v3455, 0.1
    %v3848 = vmul.f32 %v3456, 0.1
    %v3849 = vmul.f32 %v3457, 0.1
    %v3850 = vmul.f32 %v3458, 0.1
    %v3851 = vmul.f32 %v3459, 0.1
    %v3852 = vmul.f32 %v3460, 0.1
    %v3853 = vmul.f32 %v3461, 0.1
    %v3854 = vmul.f32 %v3462, 0.1
    %v3855 = vmul.f32 %v3463, 0.1
    %v3856 = vmul.f32 %v3464, 0.1
    %v3857 = vmul.f32 %v3465, 0.1
    %v3858 = vmul.f32 %v3466, 0.1
    %v3859 = vmul.f32 %v3467, 0.1
    %v3860 = vmul.f32 %v3468, 0.1
    %v3861 = vmul.f32 %v3469, 0.1
    %v3862 = vmul.f32 %v3470, 0.1
    %v3863 = vmul.f32 %v3471, 0.1
    %v3864 = vmul.f32 %v3472, 0.1
    %v3865 = vmul.f32 %v3473, 0.1
    %v3866 = vmul.f32 %v3474, 0.1
    %v3867 = vmul.f32 %v3475, 0.1
    %v3868 = vmul.f32 %v3476, 0.1
    %v3869 = vmul.f32 %v3477, 0.1
    %v3870 = vmul.f32 %v3478, 0.1
    %v3871 = vmul.f32 %v3479, 0.1
    %v3872 = vmul.f32 %v3480, 0.1
    %v3873 = vmul.f32 %v3481, 0.1
    %v3874 = vmul.f32 %v3482, 0.1
    %v3875 = vmul.f32 %v3483, 0.1
    %v3876 = vmul.f32 %v3484, 0.1
    %v3877 = vmul.f32 %v3485, 0.1
    %v3878 = vmul.f32 %v3486, 0.1
    %v3879 = vmul.f32 %v3487, 0.1
    %v3880 = vmul.f32 %v3488, 0.1
    %v3881 = vmul.f32 %v3489, 0.1
    %v3882 = vmul.f32 %v3490, 0.1
    %v3883 = vmul.f32 %v3491, 0.1
    %v3884 = vmul.f32 %v3492, 0.1
    %v3885 = vsel %vm3493, %v3297, %v3689
    %v3886 = vsel %vm3494, %v3298, %v3690
    %v3887 = vsel %vm3495, %v3299, %v3691
    %v3888 = vsel %vm3496, %v3300, %v3692
    %v3889 = vsel %vm3497, %v3301, %v3693
    %v3890 = vsel %vm3498, %v3302, %v3694
    %v3891 = vsel %vm3499, %v3303, %v3695
    %v3892 = vsel %vm3500, %v3304, %v3696
    %v3893 = vsel %vm3501, %v3305, %v3697
    %v3894 = vsel %vm3502, %v3306, %v3698
    %v3895 = vsel %vm3503, %v3307, %v3699
    %v3896 = vsel %vm3504, %v3308, %v3700
    %v3897 = vsel %vm3505, %v3309, %v3701
    %v3898 = vsel %vm3506, %v3310, %v3702
    %v3899 = vsel %vm3507, %v3311, %v3703
    %v3900 = vsel %vm3508, %v3312, %v3704
    %v3901 = vsel %vm3509, %v3313, %v3705
    %v3902 = vsel %vm3510, %v3314, %v3706
    %v3903 = vsel %vm3511, %v3315, %v3707
    %v3904 = vsel %vm3512, %v3316, %v3708
    %v3905 = vsel %vm3513, %v3317, %v3709
    %v3906 = vsel %vm3514, %v3318, %v3710
    %v3907 = vsel %vm3515, %v3319, %v3711
    %v3908 = vsel %vm3516, %v3320, %v3712
    %v3909 = vsel %vm3517, %v3321, %v3713
    %v3910 = vsel %vm3518, %v3322, %v3714
    %v3911 = vsel %vm3519, %v3323, %v3715
    %v3912 = vsel %vm3520, %v3324, %v3716
    %v3913 = vsel %vm3521, %v3325, %v3717
    %v3914 = vsel %vm3522, %v3326, %v3718
    %v3915 = vsel %vm3523, %v3327, %v3719
    %v3916 = vsel %vm3524, %v3328, %v3720
    %v3917 = vsel %vm3525, %v3329, %v3721
    %v3918 = vsel %vm3526, %v3330, %v3722
    %v3919 = vsel %vm3527, %v3331, %v3723
    %v3920 = vsel %vm3528, %v3332, %v3724
    %v3921 = vsel %vm3529, %v3333, %v3725
    %v3922 = vsel %vm3530, %v3334, %v3726
    %v3923 = vsel %vm3531, %v3335, %v3727
    %v3924 = vsel %vm3532, %v3336, %v3728
    %v3925 = vsel %vm3533, %v3337, %v3729
    %v3926 = vsel %vm3534, %v3338, %v3730
    %v3927 = vsel %vm3535, %v3339, %v3731
    %v3928 = vsel %vm3536, %v3340, %v3732
    %v3929 = vsel %vm3537, %v3341, %v3733
    %v3930 = vsel %vm3538, %v3342, %v3734
    %v3931 = vsel %vm3539, %v3343, %v3735
    %v3932 = vsel %vm3540, %v3344, %v3736
    %v3933 = vsel %vm3541, %v3345, %v3737
    %v3934 = vsel %vm3542, %v3346, %v3738
    %v3935 = vsel %vm3543, %v3347, %v3739
    %v3936 = vsel %vm3544, %v3348, %v3740
    %v3937 = vsel %vm3545, %v3349, %v3741
    %v3938 = vsel %vm3546, %v3350, %v3742
    %v3939 = vsel %vm3547, %v3351, %v3743
    %v3940 = vsel %vm3548, %v3352, %v3744
    %v3941 = vsel %vm3549, %v3353, %v3745
    %v3942 = vsel %vm3550, %v3354, %v3746
    %v3943 = vsel %vm3551, %v3355, %v3747
    %v3944 = vsel %vm3552, %v3356, %v3748
    %v3945 = vsel %vm3553, %v3357, %v3749
    %v3946 = vsel %vm3554, %v3358, %v3750
    %v3947 = vsel %vm3555, %v3359, %v3751
    %v3948 = vsel %vm3556, %v3360, %v3752
    %v3949 = vsel %vm3557, %v3361, %v3753
    %v3950 = vsel %vm3558, %v3362, %v3754
    %v3951 = vsel %vm3559, %v3363, %v3755
    %v3952 = vsel %vm3560, %v3364, %v3756
    %v3953 = vsel %vm3561, %v3365, %v3757
    %v3954 = vsel %vm3562, %v3366, %v3758
    %v3955 = vsel %vm3563, %v3367, %v3759
    %v3956 = vsel %vm3564, %v3368, %v3760
    %v3957 = vsel %vm3565, %v3369, %v3761
    %v3958 = vsel %vm3566, %v3370, %v3762
    %v3959 = vsel %vm3567, %v3371, %v3763
    %v3960 = vsel %vm3568, %v3372, %v3764
    %v3961 = vsel %vm3569, %v3373, %v3765
    %v3962 = vsel %vm3570, %v3374, %v3766
    %v3963 = vsel %vm3571, %v3375, %v3767
    %v3964 = vsel %vm3572, %v3376, %v3768
    %v3965 = vsel %vm3573, %v3377, %v3769
    %v3966 = vsel %vm3574, %v3378, %v3770
    %v3967 = vsel %vm3575, %v3379, %v3771
    %v3968 = vsel %vm3576, %v3380, %v3772
    %v3969 = vsel %vm3577, %v3381, %v3773
    %v3970 = vsel %vm3578, %v3382, %v3774
    %v3971 = vsel %vm3579, %v3383, %v3775
    %v3972 = vsel %vm3580, %v3384, %v3776
    %v3973 = vsel %vm3581, %v3385, %v3777
    %v3974 = vsel %vm3582, %v3386, %v3778
    %v3975 = vsel %vm3583, %v3387, %v3779
    %v3976 = vsel %vm3584, %v3388, %v3780
    %v3977 = vsel %vm3585, %v3389, %v3781
    %v3978 = vsel %vm3586, %v3390, %v3782
    %v3979 = vsel %vm3587, %v3391, %v3783
    %v3980 = vsel %vm3588, %v3392, %v3784
    %v3981 = vsel %vm3589, %v3393, %v3785
    %v3982 = vsel %vm3590, %v3394, %v3786
    %v3983 = vsel %vm3591, %v3395, %v3787
    %v3984 = vsel %vm3592, %v3396, %v3788
    %v3985 = vsel %vm3593, %v3397, %v3789
    %v3986 = vsel %vm3594, %v3398, %v3790
    %v3987 = vsel %vm3595, %v3399, %v3791
    %v3988 = vsel %vm3596, %v3400, %v3792
    %v3989 = vsel %vm3597, %v3401, %v3793
    %v3990 = vsel %vm3598, %v3402, %v3794
    %v3991 = vsel %vm3599, %v3403, %v3795
    %v3992 = vsel %vm3600, %v3404, %v3796
    %v3993 = vsel %vm3601, %v3405, %v3797
    %v3994 = vsel %vm3602, %v3406, %v3798
    %v3995 = vsel %vm3603, %v3407, %v3799
    %v3996 = vsel %vm3604, %v3408, %v3800
    %v3997 = vsel %vm3605, %v3409, %v3801
    %v3998 = vsel %vm3606, %v3410, %v3802
    %v3999 = vsel %vm3607, %v3411, %v3803
    %v4000 = vsel %vm3608, %v3412, %v3804
    %v4001 = vsel %vm3609, %v3413, %v3805
    %v4002 = vsel %vm3610, %v3414, %v3806
    %v4003 = vsel %vm3611, %v3415, %v3807
    %v4004 = vsel %vm3612, %v3416, %v3808
    %v4005 = vsel %vm3613, %v3417, %v3809
    %v4006 = vsel %vm3614, %v3418, %v3810
    %v4007 = vsel %vm3615, %v3419, %v3811
    %v4008 = vsel %vm3616, %v3420, %v3812
    %v4009 = vsel %vm3617, %v3421, %v3813
    %v4010 = vsel %vm3618, %v3422, %v3814
    %v4011 = vsel %vm3619, %v3423, %v3815
    %v4012 = vsel %vm3620, %v3424, %v3816
    %v4013 = vsel %vm3621, %v3425, %v3817
    %v4014 = vsel %vm3622, %v3426, %v3818
    %v4015 = vsel %vm3623, %v3427, %v3819
    %v4016 = vsel %vm3624, %v3428, %v3820
    %v4017 = vsel %vm3625, %v3429, %v3821
    %v4018 = vsel %vm3626, %v3430, %v3822
    %v4019 = vsel %vm3627, %v3431, %v3823
    %v4020 = vsel %vm3628, %v3432, %v3824
    %v4021 = vsel %vm3629, %v3433, %v3825
    %v4022 = vsel %vm3630, %v3434, %v3826
    %v4023 = vsel %vm3631, %v3435, %v3827
    %v4024 = vsel %vm3632, %v3436, %v3828
    %v4025 = vsel %vm3633, %v3437, %v3829
    %v4026 = vsel %vm3634, %v3438, %v3830
    %v4027 = vsel %vm3635, %v3439, %v3831
    %v4028 = vsel %vm3636, %v3440, %v3832
    %v4029 = vsel %vm3637, %v3441, %v3833
    %v4030 = vsel %vm3638, %v3442, %v3834
    %v4031 = vsel %vm3639, %v3443, %v3835
    %v4032 = vsel %vm3640, %v3444, %v3836
    %v4033 = vsel %vm3641, %v3445, %v3837
    %v4034 = vsel %vm3642, %v3446, %v3838
    %v4035 = vsel %vm3643, %v3447, %v3839
    %v4036 = vsel %vm3644, %v3448, %v3840
    %v4037 = vsel %vm3645, %v3449, %v3841
    %v4038 = vsel %vm3646, %v3450, %v3842
    %v4039 = vsel %vm3647, %v3451, %v3843
    %v4040 = vsel %vm3648, %v3452, %v3844
    %v4041 = vsel %vm3649, %v3453, %v3845
    %v4042 = vsel %vm3650, %v3454, %v3846
    %v4043 = vsel %vm3651, %v3455, %v3847
    %v4044 = vsel %vm3652, %v3456, %v3848
    %v4045 = vsel %vm3653, %v3457, %v3849
    %v4046 = vsel %vm3654, %v3458, %v3850
    %v4047 = vsel %vm3655, %v3459, %v3851
    %v4048 = vsel %vm3656, %v3460, %v3852
    %v4049 = vsel %vm3657, %v3461, %v3853
    %v4050 = vsel %vm3658, %v3462, %v3854
    %v4051 = vsel %vm3659, %v3463, %v3855
    %v4052 = vsel %vm3660, %v3464, %v3856
    %v4053 = vsel %vm3661, %v3465, %v3857
    %v4054 = vsel %vm3662, %v3466, %v3858
    %v4055 = vsel %vm3663, %v3467, %v3859
    %v4056 = vsel %vm3664, %v3468, %v3860
    %v4057 = vsel %vm3665, %v3469, %v3861
    %v4058 = vsel %vm3666, %v3470, %v3862
    %v4059 = vsel %vm3667, %v3471, %v3863
    %v4060 = vsel %vm3668, %v3472, %v3864
    %v4061 = vsel %vm3669, %v3473, %v3865
    %v4062 = vsel %vm3670, %v3474, %v3866
    %v4063 = vsel %vm3671, %v3475, %v3867
    %v4064 = vsel %vm3672, %v3476, %v3868
    %v4065 = vsel %vm3673, %v3477, %v3869
    %v4066 = vsel %vm3674, %v3478, %v3870
    %v4067 = vsel %vm3675, %v3479, %v3871
    %v4068 = vsel %vm3676, %v3480, %v3872
    %v4069 = vsel %vm3677, %v3481, %v3873
    %v4070 = vsel %vm3678, %v3482, %v3874
    %v4071 = vsel %vm3679, %v3483, %v3875
    %v4072 = vsel %vm3680, %v3484, %v3876
    %v4073 = vsel %vm3681, %v3485, %v3877
    %v4074 = vsel %vm3682, %v3486, %v3878
    %v4075 = vsel %vm3683, %v3487, %v3879
    %v4076 = vsel %vm3684, %v3488, %v3880
    %v4077 = vsel %vm3685, %v3489, %v3881
    %v4078 = vsel %vm3686, %v3490, %v3882
    %v4079 = vsel %vm3687, %v3491, %v3883
    %v4080 = vsel %vm3688, %v3492, %v3884
    %4081 = vst.msk [vmem:[%s4] sm:$0xff] %vm1699, %v3885
    %4082 = vst.msk [vmem:[%s4 + $0x8] sm:$0xff] %vm1699, %v3886
    %4083 = vst.msk [vmem:[%s4 + $0x10] sm:$0xff] %vm1699, %v3887
    %4084 = vst.msk [vmem:[%s4 + $0x18] sm:$0xff] %vm1699, %v3888
    %4085 = vst.msk [vmem:[%s4 + $0x20] sm:$0xff] %vm1699, %v3889
    %4086 = vst.msk [vmem:[%s4 + $0x28] sm:$0xff] %vm1699, %v3890
    %4087 = vst.msk [vmem:[%s4 + $0x30] sm:$0xff] %vm1699, %v3891
    %4088 = vst.msk [vmem:[%s4 + $0x38] sm:$0xff] %vm1699, %v3892
    %4089 = vst.msk [vmem:[%s4 + $0x40] sm:$0xff] %vm1699, %v3893
    %4090 = vst.msk [vmem:[%s4 + $0x48] sm:$0xff] %vm1699, %v3894
    %4091 = vst.msk [vmem:[%s4 + $0x50] sm:$0xff] %vm1699, %v3895
    %4092 = vst.msk [vmem:[%s4 + $0x58] sm:$0xff] %vm1699, %v3896
    %4093 = vst.msk [vmem:[%s4 + $0x60] sm:$0xff] %vm1699, %v3897
    %4094 = vst.msk [vmem:[%s4 + $0x68] sm:$0xff] %vm1699, %v3898
    %4095 = vst.msk [vmem:[%s4 + $0x70] sm:$0xff] %vm1699, %v3899
    %4096 = vst.msk [vmem:[%s4 + $0x78] sm:$0xff] %vm1699, %v3900
    %4097 = vst.msk [vmem:[%s4 + $0x80] sm:$0xff] %vm1699, %v3901
    %4098 = vst.msk [vmem:[%s4 + $0x88] sm:$0xff] %vm1699, %v3902
    %4099 = vst.msk [vmem:[%s4 + $0x90] sm:$0xff] %vm1699, %v3903
    %4100 = vst.msk [vmem:[%s4 + $0x98] sm:$0xff] %vm1699, %v3904
    %4101 = vst.msk [vmem:[%s4 + $0xa0] sm:$0xff] %vm1699, %v3905
    %4102 = vst.msk [vmem:[%s4 + $0xa8] sm:$0xff] %vm1699, %v3906
    %4103 = vst.msk [vmem:[%s4 + $0xb0] sm:$0xff] %vm1699, %v3907
    %4104 = vst.msk [vmem:[%s4 + $0xb8] sm:$0xff] %vm1699, %v3908
    %4105 = vst.msk [vmem:[%s4 + $0xc0] sm:$0xff] %vm1699, %v3909
    %4106 = vst.msk [vmem:[%s4 + $0xc8] sm:$0xff] %vm1699, %v3910
    %4107 = vst.msk [vmem:[%s4 + $0xd0] sm:$0xff] %vm1699, %v3911
    %4108 = vst.msk [vmem:[%s4 + $0xd8] sm:$0xff] %vm1699, %v3912
    %4109 = vst.msk [vmem:[%s4 + $0xe0] sm:$0xff] %vm1699, %v3913
    %4110 = vst.msk [vmem:[%s4 + $0xe8] sm:$0xff] %vm1699, %v3914
    %4111 = vst.msk [vmem:[%s4 + $0xf0] sm:$0xff] %vm1699, %v3915
    %4112 = vst.msk [vmem:[%s4 + $0xf8] sm:$0xff] %vm1699, %v3916
    %4113 = vst.msk [vmem:[%s4 + $0x100] sm:$0xff] %vm1699, %v3917
    %4114 = vst.msk [vmem:[%s4 + $0x108] sm:$0xff] %vm1699, %v3918
    %4115 = vst.msk [vmem:[%s4 + $0x110] sm:$0xff] %vm1699, %v3919
    %4116 = vst.msk [vmem:[%s4 + $0x118] sm:$0xff] %vm1699, %v3920
    %4117 = vst.msk [vmem:[%s4 + $0x120] sm:$0xff] %vm1699, %v3921
    %4118 = vst.msk [vmem:[%s4 + $0x128] sm:$0xff] %vm1699, %v3922
    %4119 = vst.msk [vmem:[%s4 + $0x130] sm:$0xff] %vm1699, %v3923
    %4120 = vst.msk [vmem:[%s4 + $0x138] sm:$0xff] %vm1699, %v3924
    %4121 = vst.msk [vmem:[%s4 + $0x140] sm:$0xff] %vm1699, %v3925
    %4122 = vst.msk [vmem:[%s4 + $0x148] sm:$0xff] %vm1699, %v3926
    %4123 = vst.msk [vmem:[%s4 + $0x150] sm:$0xff] %vm1699, %v3927
    %4124 = vst.msk [vmem:[%s4 + $0x158] sm:$0xff] %vm1699, %v3928
    %4125 = vst.msk [vmem:[%s4 + $0x160] sm:$0xff] %vm1699, %v3929
    %4126 = vst.msk [vmem:[%s4 + $0x168] sm:$0xff] %vm1699, %v3930
    %4127 = vst.msk [vmem:[%s4 + $0x170] sm:$0xff] %vm1699, %v3931
    %4128 = vst.msk [vmem:[%s4 + $0x178] sm:$0xff] %vm1699, %v3932
    %4129 = vst.msk [vmem:[%s4 + $0x180] sm:$0xff] %vm1699, %v3933
    %4130 = vst.msk [vmem:[%s4 + $0x188] sm:$0xff] %vm1699, %v3934
    %4131 = vst.msk [vmem:[%s4 + $0x190] sm:$0xff] %vm1699, %v3935
    %4132 = vst.msk [vmem:[%s4 + $0x198] sm:$0xff] %vm1699, %v3936
    %4133 = vst.msk [vmem:[%s4 + $0x1a0] sm:$0xff] %vm1699, %v3937
    %4134 = vst.msk [vmem:[%s4 + $0x1a8] sm:$0xff] %vm1699, %v3938
    %4135 = vst.msk [vmem:[%s4 + $0x1b0] sm:$0xff] %vm1699, %v3939
    %4136 = vst.msk [vmem:[%s4 + $0x1b8] sm:$0xff] %vm1699, %v3940
    %4137 = vst.msk [vmem:[%s4 + $0x1c0] sm:$0xff] %vm1699, %v3941
    %4138 = vst.msk [vmem:[%s4 + $0x1c8] sm:$0xff] %vm1699, %v3942
    %4139 = vst.msk [vmem:[%s4 + $0x1d0] sm:$0xff] %vm1699, %v3943
    %4140 = vst.msk [vmem:[%s4 + $0x1d8] sm:$0xff] %vm1699, %v3944
    %4141 = vst.msk [vmem:[%s4 + $0x1e0] sm:$0xff] %vm1699, %v3945
    %4142 = vst.msk [vmem:[%s4 + $0x1e8] sm:$0xff] %vm1699, %v3946
    %4143 = vst.msk [vmem:[%s4 + $0x1f0] sm:$0xff] %vm1699, %v3947
    %4144 = vst.msk [vmem:[%s4 + $0x1f8] sm:$0xff] %vm1699, %v3948
    %4145 = vst.msk [vmem:[%s4 + $0x200] sm:$0xff] %vm1699, %v3949
    %4146 = vst.msk [vmem:[%s4 + $0x208] sm:$0xff] %vm1699, %v3950
    %4147 = vst.msk [vmem:[%s4 + $0x210] sm:$0xff] %vm1699, %v3951
    %4148 = vst.msk [vmem:[%s4 + $0x218] sm:$0xff] %vm1699, %v3952
    %4149 = vst.msk [vmem:[%s4 + $0x220] sm:$0xff] %vm1699, %v3953
    %4150 = vst.msk [vmem:[%s4 + $0x228] sm:$0xff] %vm1699, %v3954
    %4151 = vst.msk [vmem:[%s4 + $0x230] sm:$0xff] %vm1699, %v3955
    %4152 = vst.msk [vmem:[%s4 + $0x238] sm:$0xff] %vm1699, %v3956
    %4153 = vst.msk [vmem:[%s4 + $0x240] sm:$0xff] %vm1699, %v3957
    %4154 = vst.msk [vmem:[%s4 + $0x248] sm:$0xff] %vm1699, %v3958
    %4155 = vst.msk [vmem:[%s4 + $0x250] sm:$0xff] %vm1699, %v3959
    %4156 = vst.msk [vmem:[%s4 + $0x258] sm:$0xff] %vm1699, %v3960
    %4157 = vst.msk [vmem:[%s4 + $0x260] sm:$0xff] %vm1699, %v3961
    %4158 = vst.msk [vmem:[%s4 + $0x268] sm:$0xff] %vm1699, %v3962
    %4159 = vst.msk [vmem:[%s4 + $0x270] sm:$0xff] %vm1699, %v3963
    %4160 = vst.msk [vmem:[%s4 + $0x278] sm:$0xff] %vm1699, %v3964
    %4161 = vst.msk [vmem:[%s4 + $0x280] sm:$0xff] %vm1699, %v3965
    %4162 = vst.msk [vmem:[%s4 + $0x288] sm:$0xff] %vm1699, %v3966
    %4163 = vst.msk [vmem:[%s4 + $0x290] sm:$0xff] %vm1699, %v3967
    %4164 = vst.msk [vmem:[%s4 + $0x298] sm:$0xff] %vm1699, %v3968
    %4165 = vst.msk [vmem:[%s4 + $0x2a0] sm:$0xff] %vm1699, %v3969
    %4166 = vst.msk [vmem:[%s4 + $0x2a8] sm:$0xff] %vm1699, %v3970
    %4167 = vst.msk [vmem:[%s4 + $0x2b0] sm:$0xff] %vm1699, %v3971
    %4168 = vst.msk [vmem:[%s4 + $0x2b8] sm:$0xff] %vm1699, %v3972
    %4169 = vst.msk [vmem:[%s4 + $0x2c0] sm:$0xff] %vm1699, %v3973
    %4170 = vst.msk [vmem:[%s4 + $0x2c8] sm:$0xff] %vm1699, %v3974
    %4171 = vst.msk [vmem:[%s4 + $0x2d0] sm:$0xff] %vm1699, %v3975
    %4172 = vst.msk [vmem:[%s4 + $0x2d8] sm:$0xff] %vm1699, %v3976
    %4173 = vst.msk [vmem:[%s4 + $0x2e0] sm:$0xff] %vm1699, %v3977
    %4174 = vst.msk [vmem:[%s4 + $0x2e8] sm:$0xff] %vm1699, %v3978
    %4175 = vst.msk [vmem:[%s4 + $0x2f0] sm:$0xff] %vm1699, %v3979
    %4176 = vst.msk [vmem:[%s4 + $0x2f8] sm:$0xff] %vm1699, %v3980
    %4177 = vst.msk [vmem:[%s4 + $0x300] sm:$0xff] %vm1699, %v3981
    %4178 = vst.msk [vmem:[%s4 + $0x308] sm:$0xff] %vm1699, %v3982
    %4179 = vst.msk [vmem:[%s4 + $0x310] sm:$0xff] %vm1699, %v3983
    %4180 = vst.msk [vmem:[%s4 + $0x318] sm:$0xff] %vm1699, %v3984
    %4181 = vst.msk [vmem:[%s4 + $0x320] sm:$0xff] %vm1699, %v3985
    %4182 = vst.msk [vmem:[%s4 + $0x328] sm:$0xff] %vm1699, %v3986
    %4183 = vst.msk [vmem:[%s4 + $0x330] sm:$0xff] %vm1699, %v3987
    %4184 = vst.msk [vmem:[%s4 + $0x338] sm:$0xff] %vm1699, %v3988
    %4185 = vst.msk [vmem:[%s4 + $0x340] sm:$0xff] %vm1699, %v3989
    %4186 = vst.msk [vmem:[%s4 + $0x348] sm:$0xff] %vm1699, %v3990
    %4187 = vst.msk [vmem:[%s4 + $0x350] sm:$0xff] %vm1699, %v3991
    %4188 = vst.msk [vmem:[%s4 + $0x358] sm:$0xff] %vm1699, %v3992
    %4189 = vst.msk [vmem:[%s4 + $0x360] sm:$0xff] %vm1699, %v3993
    %4190 = vst.msk [vmem:[%s4 + $0x368] sm:$0xff] %vm1699, %v3994
    %4191 = vst.msk [vmem:[%s4 + $0x370] sm:$0xff] %vm1699, %v3995
    %4192 = vst.msk [vmem:[%s4 + $0x378] sm:$0xff] %vm1699, %v3996
    %4193 = vst.msk [vmem:[%s4 + $0x380] sm:$0xff] %vm1699, %v3997
    %4194 = vst.msk [vmem:[%s4 + $0x388] sm:$0xff] %vm1699, %v3998
    %4195 = vst.msk [vmem:[%s4 + $0x390] sm:$0xff] %vm1699, %v3999
    %4196 = vst.msk [vmem:[%s4 + $0x398] sm:$0xff] %vm1699, %v4000
    %4197 = vst.msk [vmem:[%s4 + $0x3a0] sm:$0xff] %vm1699, %v4001
    %4198 = vst.msk [vmem:[%s4 + $0x3a8] sm:$0xff] %vm1699, %v4002
    %4199 = vst.msk [vmem:[%s4 + $0x3b0] sm:$0xff] %vm1699, %v4003
    %4200 = vst.msk [vmem:[%s4 + $0x3b8] sm:$0xff] %vm1699, %v4004
    %4201 = vst.msk [vmem:[%s4 + $0x3c0] sm:$0xff] %vm1699, %v4005
    %4202 = vst.msk [vmem:[%s4 + $0x3c8] sm:$0xff] %vm1699, %v4006
    %4203 = vst.msk [vmem:[%s4 + $0x3d0] sm:$0xff] %vm1699, %v4007
    %4204 = vst.msk [vmem:[%s4 + $0x3d8] sm:$0xff] %vm1699, %v4008
    %4205 = vst.msk [vmem:[%s4 + $0x3e0] sm:$0xff] %vm1699, %v4009
    %4206 = vst.msk [vmem:[%s4 + $0x3e8] sm:$0xff] %vm1699, %v4010
    %4207 = vst.msk [vmem:[%s4 + $0x3f0] sm:$0xff] %vm1699, %v4011
    %4208 = vst.msk [vmem:[%s4 + $0x3f8] sm:$0xff] %vm1699, %v4012
    %4209 = vst.msk [vmem:[%s4 + $0x400] sm:$0xff] %vm1699, %v4013
    %4210 = vst.msk [vmem:[%s4 + $0x408] sm:$0xff] %vm1699, %v4014
    %4211 = vst.msk [vmem:[%s4 + $0x410] sm:$0xff] %vm1699, %v4015
    %4212 = vst.msk [vmem:[%s4 + $0x418] sm:$0xff] %vm1699, %v4016
    %4213 = vst.msk [vmem:[%s4 + $0x420] sm:$0xff] %vm1699, %v4017
    %4214 = vst.msk [vmem:[%s4 + $0x428] sm:$0xff] %vm1699, %v4018
    %4215 = vst.msk [vmem:[%s4 + $0x430] sm:$0xff] %vm1699, %v4019
    %4216 = vst.msk [vmem:[%s4 + $0x438] sm:$0xff] %vm1699, %v4020
    %4217 = vst.msk [vmem:[%s4 + $0x440] sm:$0xff] %vm1699, %v4021
    %4218 = vst.msk [vmem:[%s4 + $0x448] sm:$0xff] %vm1699, %v4022
    %4219 = vst.msk [vmem:[%s4 + $0x450] sm:$0xff] %vm1699, %v4023
    %4220 = vst.msk [vmem:[%s4 + $0x458] sm:$0xff] %vm1699, %v4024
    %4221 = vst.msk [vmem:[%s4 + $0x460] sm:$0xff] %vm1699, %v4025
    %4222 = vst.msk [vmem:[%s4 + $0x468] sm:$0xff] %vm1699, %v4026
    %4223 = vst.msk [vmem:[%s4 + $0x470] sm:$0xff] %vm1699, %v4027
    %4224 = vst.msk [vmem:[%s4 + $0x478] sm:$0xff] %vm1699, %v4028
    %4225 = vst.msk [vmem:[%s4 + $0x480] sm:$0xff] %vm1699, %v4029
    %4226 = vst.msk [vmem:[%s4 + $0x488] sm:$0xff] %vm1699, %v4030
    %4227 = vst.msk [vmem:[%s4 + $0x490] sm:$0xff] %vm1699, %v4031
    %4228 = vst.msk [vmem:[%s4 + $0x498] sm:$0xff] %vm1699, %v4032
    %4229 = vst.msk [vmem:[%s4 + $0x4a0] sm:$0xff] %vm1699, %v4033
    %4230 = vst.msk [vmem:[%s4 + $0x4a8] sm:$0xff] %vm1699, %v4034
    %4231 = vst.msk [vmem:[%s4 + $0x4b0] sm:$0xff] %vm1699, %v4035
    %4232 = vst.msk [vmem:[%s4 + $0x4b8] sm:$0xff] %vm1699, %v4036
    %4233 = vst.msk [vmem:[%s4 + $0x4c0] sm:$0xff] %vm1699, %v4037
    %4234 = vst.msk [vmem:[%s4 + $0x4c8] sm:$0xff] %vm1699, %v4038
    %4235 = vst.msk [vmem:[%s4 + $0x4d0] sm:$0xff] %vm1699, %v4039
    %4236 = vst.msk [vmem:[%s4 + $0x4d8] sm:$0xff] %vm1699, %v4040
    %4237 = vst.msk [vmem:[%s4 + $0x4e0] sm:$0xff] %vm1699, %v4041
    %4238 = vst.msk [vmem:[%s4 + $0x4e8] sm:$0xff] %vm1699, %v4042
    %4239 = vst.msk [vmem:[%s4 + $0x4f0] sm:$0xff] %vm1699, %v4043
    %4240 = vst.msk [vmem:[%s4 + $0x4f8] sm:$0xff] %vm1699, %v4044
    %4241 = vst.msk [vmem:[%s4 + $0x500] sm:$0xff] %vm1699, %v4045
    %4242 = vst.msk [vmem:[%s4 + $0x508] sm:$0xff] %vm1699, %v4046
    %4243 = vst.msk [vmem:[%s4 + $0x510] sm:$0xff] %vm1699, %v4047
    %4244 = vst.msk [vmem:[%s4 + $0x518] sm:$0xff] %vm1699, %v4048
    %4245 = vst.msk [vmem:[%s4 + $0x520] sm:$0xff] %vm1699, %v4049
    %4246 = vst.msk [vmem:[%s4 + $0x528] sm:$0xff] %vm1699, %v4050
    %4247 = vst.msk [vmem:[%s4 + $0x530] sm:$0xff] %vm1699, %v4051
    %4248 = vst.msk [vmem:[%s4 + $0x538] sm:$0xff] %vm1699, %v4052
    %4249 = vst.msk [vmem:[%s4 + $0x540] sm:$0xff] %vm1699, %v4053
    %4250 = vst.msk [vmem:[%s4 + $0x548] sm:$0xff] %vm1699, %v4054
    %4251 = vst.msk [vmem:[%s4 + $0x550] sm:$0xff] %vm1699, %v4055
    %4252 = vst.msk [vmem:[%s4 + $0x558] sm:$0xff] %vm1699, %v4056
    %4253 = vst.msk [vmem:[%s4 + $0x560] sm:$0xff] %vm1699, %v4057
    %4254 = vst.msk [vmem:[%s4 + $0x568] sm:$0xff] %vm1699, %v4058
    %4255 = vst.msk [vmem:[%s4 + $0x570] sm:$0xff] %vm1699, %v4059
    %4256 = vst.msk [vmem:[%s4 + $0x578] sm:$0xff] %vm1699, %v4060
    %4257 = vst.msk [vmem:[%s4 + $0x580] sm:$0xff] %vm1699, %v4061
    %4258 = vst.msk [vmem:[%s4 + $0x588] sm:$0xff] %vm1699, %v4062
    %4259 = vst.msk [vmem:[%s4 + $0x590] sm:$0xff] %vm1699, %v4063
    %4260 = vst.msk [vmem:[%s4 + $0x598] sm:$0xff] %vm1699, %v4064
    %4261 = vst.msk [vmem:[%s4 + $0x5a0] sm:$0xff] %vm1699, %v4065
    %4262 = vst.msk [vmem:[%s4 + $0x5a8] sm:$0xff] %vm1699, %v4066
    %4263 = vst.msk [vmem:[%s4 + $0x5b0] sm:$0xff] %vm1699, %v4067
    %4264 = vst.msk [vmem:[%s4 + $0x5b8] sm:$0xff] %vm1699, %v4068
    %4265 = vst.msk [vmem:[%s4 + $0x5c0] sm:$0xff] %vm1699, %v4069
    %4266 = vst.msk [vmem:[%s4 + $0x5c8] sm:$0xff] %vm1699, %v4070
    %4267 = vst.msk [vmem:[%s4 + $0x5d0] sm:$0xff] %vm1699, %v4071
    %4268 = vst.msk [vmem:[%s4 + $0x5d8] sm:$0xff] %vm1699, %v4072
    %4269 = vst.msk [vmem:[%s4 + $0x5e0] sm:$0xff] %vm1699, %v4073
    %4270 = vst.msk [vmem:[%s4 + $0x5e8] sm:$0xff] %vm1699, %v4074
    %4271 = vst.msk [vmem:[%s4 + $0x5f0] sm:$0xff] %vm1699, %v4075
    %4272 = vst.msk [vmem:[%s4 + $0x5f8] sm:$0xff] %vm1699, %v4076
    %4273 = vst.msk [vmem:[%s4 + $0x600] sm:$0xff] %vm1699, %v4077
    %4274 = vst.msk [vmem:[%s4 + $0x608] sm:$0xff] %vm1699, %v4078
    %4275 = vst.msk [vmem:[%s4 + $0x610] sm:$0xff] %vm1699, %v4079
    %4276 = vst.msk [vmem:[%s4 + $0x618] sm:$0xff] %vm1699, %v4080
    // Predicated region
    $region22: #{tpu_custom_call.1} parent=1 // pred_check
      _
    $region23: #{tpu_custom_call.1} parent=1 // pred_check_branch
      %4278 = sbr.rel (0) target = $region25
    $region24: #{tpu_custom_call.1} parent=1 // pred_region
      _
    $region25: #{tpu_custom_call.1} parent=1 // pred_fallthru
      _
    // Predicated region
    $region26: #{tpu_custom_call.1} parent=1 // pred_check
      _
    $region27: #{tpu_custom_call.1} parent=1 // pred_check_branch
      %4280 = sbr.rel (0) target = $region29
    $region28: #{tpu_custom_call.1} parent=1 // pred_region
      _
    $region29: #{tpu_custom_call.1} parent=1 // pred_fallthru
      _
    %4281 = vsyncpa [#allocation3], 1

</llo_original>
